<compile_context>
chip_gen: v5e
topology: v5e:2x2
jax: 0.10.0
libtpu: 0.0.40
codegen_flags: <defaults>
</compile_context>

<pallas_src>
import functools
from typing import NamedTuple

import jax
import jax.numpy as jnp
from jax.experimental import pallas as pl
from jax.experimental.pallas import tpu as pltpu


# ----------------------------- small helpers -----------------------------

def _round_up(x, m):
    return ((x + m - 1) // m) * m


def _pick_tm(m, target=1024, align=16):
    """Row-tile size: multiple of `align`, >=2 grid blocks when possible, <= target."""
    if m <= align:
        return align
    return min(target, _round_up((m + 1) // 2, align))


def _fold_factor(m, c):
    """Fold r rows into the lane axis so the minor dim is >=128 (lane-dense stores)."""
    r = 1
    while (c * r) < 128 and (m % (r * 2) == 0):
        r *= 2
    return r


def _parallel(n_axes):
    return pltpu.CompilerParams(dimension_semantics=("parallel",) * n_axes)


# ------------------ Pallas: fused 3x3 conv + BN statistics ------------------

def _conv3x3_kernel(*refs, taps, mo, use_transform):
    """9-tap conv accumulation (static flat-shift slices -> MXU), optional fused
    input scale/shift+ReLU (previous BN), per-channel sum/ssq epilogue."""
    if use_transform:
        (x_ref, w_ref, omask_ref, scale_ref, shift_ref, imask_ref,
         y_ref, sum_ref, ssq_ref) = refs
        xin = x_ref[0].astype(jnp.float32)                         # (Pr, Cin)
        act = jnp.maximum(xin * scale_ref[...] + shift_ref[...], 0.0)
        act = (act * imask_ref[...]).astype(jnp.bfloat16)          # keep padding zero

        def tap_lhs(ph, off):
            return act[off:off + mo, :]
    else:
        (x_ref, w_ref, omask_ref, y_ref, sum_ref, ssq_ref) = refs

        def tap_lhs(ph, off):
            return x_ref[ph, off:off + mo, :]

    acc = None
    for t, (ph, off) in enumerate(taps):                           # static unroll, 9 taps
        part = jnp.dot(tap_lhs(ph, off), w_ref[t],
                       preferred_element_type=jnp.float32)
        acc = part if acc is None else acc + part

    y_ref[...] = acc.astype(y_ref.dtype)
    masked = acc * omask_ref[...]                                  # drop junk accumulator cols
    sum_ref[...] = jnp.sum(masked, axis=0, keepdims=True)
    ssq_ref[...] = jnp.sum(masked * acc, axis=0, keepdims=True)


def conv3x3_bn_stats(x, w_taps, stride, transform=None):
    """3x3 conv (pad=1, no bias) on NHWC bf16 input.
    Optionally fuses a per-channel scale/shift + ReLU applied to the *input*
    (the previous BN+ReLU).  Emits per-channel sum / sum-of-squares of the conv
    output from the same kernel.  Returns (y_clean_bf16, psum, pssq, valid_count)."""
    N, Hin, Win, Cin = x.shape
    Cout = w_taps.shape[-1]
    assert w_taps.shape == (9, Cin, Cout)
    s = stride
    Ho = (Hin - 1) // s + 1
    Wo = (Win - 1) // s + 1

    x = x.astype(jnp.bfloat16)
    xp = jnp.pad(x, ((0, 0), (1, 1), (1, 1), (0, 0)))
    Hp, Wp = Hin + 2, Win + 2

    if s == 1:
        Hph, Wph, nph = Hp, Wp, 1
        phases = xp.reshape(N, 1, Hp * Wp, Cin)
    else:
        Hpe, Wpe = _round_up(Hp, s), _round_up(Wp, s)
        if (Hpe, Wpe) != (Hp, Wp):
            xp = jnp.pad(xp, ((0, 0), (0, Hpe - Hp), (0, Wpe - Wp), (0, 0)))
        Hph, Wph, nph = Hpe // s, Wpe // s, s * s
        phs = [xp[:, p::s, q::s, :] for p in range(s) for q in range(s)]
        phases = jnp.stack(phs, axis=1).reshape(N, nph, Hph * Wph, Cin)

    # Static tap table: phase index + flat row offset inside that phase.
    taps = []
    for kh in range(3):
        for kw in range(3):
            taps.append(((kh % s) * s + (kw % s), (kh // s) * Wph + (kw // s)))
    mo = Ho * Wph                                  # accumulator rows (incl. junk cols)

    need = max(off for _, off in taps) + mo        # guard rows so all tap reads are in range
    pr = _round_up(max(need, Hph * Wph), 8)
    if pr > Hph * Wph:
        phases = jnp.pad(phases, ((0, 0), (0, 0), (0, pr - Hph * Wph), (0, 0)))

    col = jnp.arange(mo, dtype=jnp.int32) % Wph
    omask = (col < Wo).astype(jnp.float32).reshape(mo, 1)

    use_transform = transform is not None
    inputs = [phases, w_taps.astype(jnp.bfloat16), omask]
    in_specs = [
        pl.BlockSpec((None, nph, pr, Cin), lambda n: (n, 0, 0, 0)),
        pl.BlockSpec((9, Cin, Cout), lambda n: (0, 0, 0)),
        pl.BlockSpec((mo, 1), lambda n: (0, 0)),
    ]
    if use_transform:
        assert s == 1, "fused input scale/shift is only used for stride-1 convs"
        scale, shift = transform
        idx = jnp.arange(pr, dtype=jnp.int32)
        ii, jj = idx // Wph, idx % Wph
        imask = ((ii >= 1) & (ii <= Hin) & (jj >= 1) & (jj <= Win))
        imask = imask.astype(jnp.float32).reshape(pr, 1)
        inputs += [scale.reshape(1, Cin).astype(jnp.float32),
                   shift.reshape(1, Cin).astype(jnp.float32),
                   imask]
        in_specs += [
            pl.BlockSpec((1, Cin), lambda n: (0, 0)),
            pl.BlockSpec((1, Cin), lambda n: (0, 0)),
            pl.BlockSpec((pr, 1), lambda n: (0, 0)),
        ]

    kernel = functools.partial(_conv3x3_kernel, taps=tuple(taps), mo=mo,
                               use_transform=use_transform)

    y, psum, pssq = pl.pallas_call(
        kernel,
        out_shape=(jax.ShapeDtypeStruct((N, mo, Cout), jnp.bfloat16),
                   jax.ShapeDtypeStruct((N, 1, Cout), jnp.float32),
                   jax.ShapeDtypeStruct((N, 1, Cout), jnp.float32)),
        grid=(N,),
        in_specs=in_specs,
        out_specs=(pl.BlockSpec((None, mo, Cout), lambda n: (n, 0, 0)),
                   pl.BlockSpec((None, 1, Cout), lambda n: (n, 0, 0)),
                   pl.BlockSpec((None, 1, Cout), lambda n: (n, 0, 0))),
        compiler_params=_parallel(1),
    )(*inputs)

    y = y.reshape(N, Ho, Wph, Cout)[:, :, :Wo, :]   # drop junk accumulator columns
    return y, psum, pssq, N * Ho * Wo


# ------------------ Pallas: 1x1 shortcut matmul + BN statistics ------------------

def _matmul_stats_kernel(x_ref, w_ref, y_ref, sum_ref, ssq_ref):
    acc = jnp.dot(x_ref[...], w_ref[...], preferred_element_type=jnp.float32)
    y_ref[...] = acc.astype(y_ref.dtype)
    sum_ref[...] = jnp.sum(acc, axis=0, keepdims=True)
    ssq_ref[...] = jnp.sum(acc * acc, axis=0, keepdims=True)


def matmul_bn_stats(x, w, tm_target=1024):
    """(M, K) @ (K, Cout) bf16 matmul with per-channel sum/ssq emitted per row tile."""
    M, K = x.shape
    Cout = w.shape[-1]
    x = x.astype(jnp.bfloat16)
    w = w.astype(jnp.bfloat16)
    tm = _pick_tm(M, tm_target, 16)
    Mp = _round_up(M, tm)
    if Mp != M:
        x = jnp.pad(x, ((0, Mp - M), (0, 0)))       # zero rows contribute 0 to the sums
    nt = Mp // tm
    y, psum, pssq = pl.pallas_call(
        _matmul_stats_kernel,
        out_shape=(jax.ShapeDtypeStruct((Mp, Cout), jnp.bfloat16),
                   jax.ShapeDtypeStruct((nt, 1, Cout), jnp.float32),
                   jax.ShapeDtypeStruct((nt, 1, Cout), jnp.float32)),
        grid=(nt,),
        in_specs=[pl.BlockSpec((tm, K), lambda i: (i, 0)),
                  pl.BlockSpec((K, Cout), lambda i: (0, 0))],
        out_specs=(pl.BlockSpec((tm, Cout), lambda i: (i, 0)),
                   pl.BlockSpec((None, 1, Cout), lambda i: (i, 0, 0)),
                   pl.BlockSpec((None, 1, Cout), lambda i: (i, 0, 0))),
        compiler_params=_parallel(1),
    )(x, w)
    return y[:M], psum, pssq, M


# ------------------ Pallas: fused BN2 apply + residual + ReLU ------------------

def _bn_res_relu_ident_kernel(h_ref, s_ref, b_ref, r_ref, o_ref):
    y = h_ref[...].astype(jnp.float32) * s_ref[...] + b_ref[...]
    y = y + r_ref[...].astype(jnp.float32)
    o_ref[...] = jnp.maximum(y, 0.0).astype(o_ref.dtype)


def _bn_res_relu_proj_kernel(h_ref, s_ref, b_ref, r_ref, rs_ref, rb_ref, o_ref):
    y = h_ref[...].astype(jnp.float32) * s_ref[...] + b_ref[...]
    y = y + r_ref[...].astype(jnp.float32) * rs_ref[...] + rb_ref[...]
    o_ref[...] = jnp.maximum(y, 0.0).astype(o_ref.dtype)


def bn_residual_relu(h2, scale, shift, resid, res_scale=None, res_shift=None,
                     tm_target=1024):
    """relu(h2*scale + shift + resid[*res_scale + res_shift]); lane-dense row folding."""
    M, C = h2.shape
    r = _fold_factor(M, C)
    Mf, Cf = M // r, C * r
    hf = h2.reshape(Mf, Cf)
    rf = resid.astype(jnp.bfloat16).reshape(Mf, Cf)

    def tile_params(v):
        return jnp.tile(v.reshape(-1).astype(jnp.float32), r).reshape(1, Cf)

    st, bt = tile_params(scale), tile_params(shift)

    tm = _pick_tm(Mf, tm_target, 16)
    Mp = _round_up(Mf, tm)
    if Mp != Mf:
        hf = jnp.pad(hf, ((0, Mp - Mf), (0, 0)))
        rf = jnp.pad(rf, ((0, Mp - Mf), (0, 0)))

    row = pl.BlockSpec((tm, Cf), lambda i: (i, 0))
    par = pl.BlockSpec((1, Cf), lambda i: (0, 0))

    if res_scale is None:
        out = pl.pallas_call(
            _bn_res_relu_ident_kernel,
            out_shape=jax.ShapeDtypeStruct((Mp, Cf), jnp.bfloat16),
            grid=(Mp // tm,),
            in_specs=[row, par, par, row],
            out_specs=row,
            compiler_params=_parallel(1),
        )(hf, st, bt, rf)
    else:
        rst, rbt = tile_params(res_scale), tile_params(res_shift)
        out = pl.pallas_call(
            _bn_res_relu_proj_kernel,
            out_shape=jax.ShapeDtypeStruct((Mp, Cf), jnp.bfloat16),
            grid=(Mp // tm,),
            in_specs=[row, par, par, row, par, par],
            out_specs=row,
            compiler_params=_parallel(1),
        )(hf, st, bt, rf, rst, rbt)
    return out[:Mf].reshape(M, C)


# ------------------ BatchNorm scale/shift from fused statistics ------------------

def bn_scale_shift_from_stats(psum, pssq, count, gamma, beta, eps):
    """Training-mode batch statistics (biased variance) folded into scale/shift."""
    s = jnp.sum(psum, axis=(0, 1))
    ss = jnp.sum(pssq, axis=(0, 1))
    mean = s / count
    var = jnp.maximum(ss / count - mean * mean, 0.0)
    inv = jax.lax.rsqrt(var + eps)
    scale = gamma * inv
    shift = beta - mean * scale
    return scale, shift


# ----------------------------- BasicBlock -----------------------------

class BlockCfg(NamedTuple):        # static Python configuration (never jit-traced)
    in_planes: int
    planes: int
    stride: int
    has_shortcut: bool


def make_block_cfg(in_planes, planes, stride=1):
    return BlockCfg(in_planes, planes, stride,
                    has_shortcut=(stride != 1 or in_planes != planes))


def _kaiming(key, cout, cin, kh, kw):
    fan_in = cin * kh * kw
    std = (2.0 / fan_in) ** 0.5
    return std * jax.random.normal(key, (cout, cin, kh, kw), jnp.float32)


def conv_w_to_taps(w):
    """Torch conv weight (Cout, Cin, 3, 3) -> (9, Cin, Cout) bf16 tap matrices."""
    cout, cin, kh, kw = w.shape
    return jnp.transpose(w, (2, 3, 1, 0)).reshape(kh * kw, cin, cout).astype(jnp.bfloat16)


def make_block_params(key, cfg):
    k1, k2, k3 = jax.random.split(key, 3)
    p = {
        "conv1_w": conv_w_to_taps(_kaiming(k1, cfg.planes, cfg.in_planes, 3, 3)),
        "bn1_g": jnp.ones((cfg.planes,), jnp.float32),
        "bn1_b": jnp.zeros((cfg.planes,), jnp.float32),
        "conv2_w": conv_w_to_taps(_kaiming(k2, cfg.planes, cfg.planes, 3, 3)),
        "bn2_g": jnp.ones((cfg.planes,), jnp.float32),
        "bn2_b": jnp.zeros((cfg.planes,), jnp.float32),
    }
    if cfg.has_shortcut:
        w = _kaiming(k3, cfg.planes, cfg.in_planes, 1, 1)
        p["sc_w"] = jnp.transpose(w[:, :, 0, 0], (1, 0)).astype(jnp.bfloat16)  # (Cin, Cout)
        p["sc_bn_g"] = jnp.ones((cfg.planes,), jnp.float32)
        p["sc_bn_b"] = jnp.zeros((cfg.planes,), jnp.float32)
    return p


def basic_block(params, x_nhwc, cfg, eps=1e-5):
    """relu( bn2(conv2(relu(bn1(conv1(x))))) + shortcut(x) ) -- NHWC in / NHWC out (bf16)."""
    x = x_nhwc.astype(jnp.bfloat16)
    N, H, W, Cin = x.shape

    # conv1 + BN1 statistics in one fused kernel (raw conv1 output stays bf16)
    h1, s1, q1, c1 = conv3x3_bn_stats(x, params["conv1_w"], cfg.stride)
    sc1, sh1 = bn_scale_shift_from_stats(s1, q1, c1, params["bn1_g"], params["bn1_b"], eps)

    # conv2 with BN1-apply + ReLU fused into its input load, + BN2 statistics
    h2, s2, q2, c2 = conv3x3_bn_stats(h1, params["conv2_w"], 1, transform=(sc1, sh1))
    sc2, sh2 = bn_scale_shift_from_stats(s2, q2, c2, params["bn2_g"], params["bn2_b"], eps)

    Nb, Ho, Wo, P = h2.shape
    M = Nb * Ho * Wo
    h2f = h2.reshape(M, P)

    if cfg.has_shortcut:
        xs = x[:, ::cfg.stride, ::cfg.stride, :].reshape(-1, Cin)   # 1x1 conv, stride s
        scr, ss, qs, cs = matmul_bn_stats(xs, params["sc_w"])
        scs, shs = bn_scale_shift_from_stats(ss, qs, cs,
                                             params["sc_bn_g"], params["sc_bn_b"], eps)
        out = bn_residual_relu(h2f, sc2, sh2, scr, scs, shs)
    else:
        out = bn_residual_relu(h2f, sc2, sh2, x.reshape(M, P))       # identity residual
    return out.reshape(Nb, Ho, Wo, P)


# ----------------------------- main -----------------------------

if __name__ == "__main__":
    key = jax.random.PRNGKey(0)
    kA, kB, kx = jax.random.split(key, 3)

    # Block A: projection shortcut (1x1 conv + BN, stride 2); Block B: identity shortcut.
    cfgA = make_block_cfg(in_planes=4, planes=64, stride=2)
    cfgB = make_block_cfg(in_planes=64, planes=64, stride=1)
    paramsA = make_block_params(kA, cfgA)
    paramsB = make_block_params(kB, cfgB)

    x = jax.random.normal(kx, (2, 4, 16, 16), jnp.float32)   # NCHW, like the torch module

    @jax.jit
    def forward(pA, pB, x_nchw):
        h = jnp.transpose(x_nchw, (0, 2, 3, 1))              # single NCHW -> NHWC transpose
        h = basic_block(pA, h, cfgA)                         # (2, 8, 8, 64), NHWC bf16
        h = basic_block(pB, h, cfgB)                         # NHWC chaining, no transposes
        return jnp.transpose(h, (0, 3, 1, 2)).astype(jnp.float32)

    out = jax.block_until_ready(forward(paramsA, paramsB, x))

    assert out.shape == (2, 64, 8, 8), out.shape
    assert bool(jnp.all(jnp.isfinite(out)))
    assert bool(jnp.all(out >= 0.0))   # final ReLU
    print("KERNEL_OK")
</pallas_src>

<mosaic_0001>
module attributes {stable_mosaic.version = 11 : i64} {
  func.func @_conv3x3_kernel(%arg0: i32, %arg1: memref<1x4x88x4xbf16, #tpu.memory_space<vmem>>, %arg2: memref<9x4x64xbf16, #tpu.memory_space<vmem>>, %arg3: memref<72x1xf32, #tpu.memory_space<vmem>>, %arg4: memref<1x72x64xbf16, #tpu.memory_space<vmem>>, %arg5: memref<1x1x64xf32, #tpu.memory_space<vmem>>, %arg6: memref<1x1x64xf32, #tpu.memory_space<vmem>>) attributes {dimension_semantics = [#tpu.dimension_semantics<parallel>], iteration_bounds = array<i64: 2>, scalar_prefetch = 0 : i64, scratch_operands = 0 : i64, tpu.core_type = #tpu.core_type<tc>, window_params = [{transform_indices = @transform_0, window_bounds = array<i64: 1, 4, 88, 4>}, {pipeline_mode = #tpu.pipeline_mode<synchronous>, transform_indices = @transform_1, window_bounds = array<i64: 9, 4, 64>}, {pipeline_mode = #tpu.pipeline_mode<synchronous>, transform_indices = @transform_2, window_bounds = array<i64: 72, 1>}, {transform_indices = @transform_3, window_bounds = array<i64: 1, 72, 64>}, {transform_indices = @transform_4, window_bounds = array<i64: 1, 1, 64>}, {transform_indices = @transform_5, window_bounds = array<i64: 1, 1, 64>}]} {
    %c0 = arith.constant 0 : index
    %c0_0 = arith.constant 0 : index
    %c0_1 = arith.constant 0 : index
    %c0_2 = arith.constant 0 : index
    %0 = vector.load %arg1[%c0, %c0_0, %c0_1, %c0_2] : memref<1x4x88x4xbf16, #tpu.memory_space<vmem>>, vector<1x1x72x4xbf16>
    %1 = vector.shape_cast %0 : vector<1x1x72x4xbf16> to vector<72x4xbf16>
    %c0_3 = arith.constant 0 : index
    %c0_4 = arith.constant 0 : index
    %c0_5 = arith.constant 0 : index
    %2 = vector.load %arg2[%c0_3, %c0_4, %c0_5] : memref<9x4x64xbf16, #tpu.memory_space<vmem>>, vector<1x4x64xbf16>
    %3 = vector.shape_cast %2 : vector<1x4x64xbf16> to vector<4x64xbf16>
    %cst = arith.constant dense<0.000000e+00> : vector<72x64xf32>
    %4 = tpu.matmul %1, %3, %cst {dimension_numbers = #tpu.dot_dimension_numbers<[1], [0], [0], [1], [0, 0, 1, 1], [], []>} : vector<72x4xbf16>, vector<4x64xbf16>, vector<72x64xf32> -> vector<72x64xf32>
    %c0_6 = arith.constant 0 : index
    %c1 = arith.constant 1 : index
    %c0_7 = arith.constant 0 : index
    %c0_8 = arith.constant 0 : index
    %5 = vector.load %arg1[%c0_6, %c1, %c0_7, %c0_8] : memref<1x4x88x4xbf16, #tpu.memory_space<vmem>>, vector<1x1x72x4xbf16>
    %6 = vector.shape_cast %5 : vector<1x1x72x4xbf16> to vector<72x4xbf16>
    %c1_9 = arith.constant 1 : index
    %c0_10 = arith.constant 0 : index
    %c0_11 = arith.constant 0 : index
    %7 = vector.load %arg2[%c1_9, %c0_10, %c0_11] : memref<9x4x64xbf16, #tpu.memory_space<vmem>>, vector<1x4x64xbf16>
    %8 = vector.shape_cast %7 : vector<1x4x64xbf16> to vector<4x64xbf16>
    %cst_12 = arith.constant dense<0.000000e+00> : vector<72x64xf32>
    %9 = tpu.matmul %6, %8, %cst_12 {dimension_numbers = #tpu.dot_dimension_numbers<[1], [0], [0], [1], [0, 0, 1, 1], [], []>} : vector<72x4xbf16>, vector<4x64xbf16>, vector<72x64xf32> -> vector<72x64xf32>
    %10 = arith.addf %4, %9 : vector<72x64xf32>
    %c0_13 = arith.constant 0 : index
    %c0_14 = arith.constant 0 : index
    %c1_15 = arith.constant 1 : index
    %c0_16 = arith.constant 0 : index
    %11 = vector.load %arg1[%c0_13, %c0_14, %c1_15, %c0_16] : memref<1x4x88x4xbf16, #tpu.memory_space<vmem>>, vector<1x1x72x4xbf16>
    %12 = vector.shape_cast %11 : vector<1x1x72x4xbf16> to vector<72x4xbf16>
    %c2 = arith.constant 2 : index
    %c0_17 = arith.constant 0 : index
    %c0_18 = arith.constant 0 : index
    %13 = vector.load %arg2[%c2, %c0_17, %c0_18] : memref<9x4x64xbf16, #tpu.memory_space<vmem>>, vector<1x4x64xbf16>
    %14 = vector.shape_cast %13 : vector<1x4x64xbf16> to vector<4x64xbf16>
    %cst_19 = arith.constant dense<0.000000e+00> : vector<72x64xf32>
    %15 = tpu.matmul %12, %14, %cst_19 {dimension_numbers = #tpu.dot_dimension_numbers<[1], [0], [0], [1], [0, 0, 1, 1], [], []>} : vector<72x4xbf16>, vector<4x64xbf16>, vector<72x64xf32> -> vector<72x64xf32>
    %16 = arith.addf %10, %15 : vector<72x64xf32>
    %c0_20 = arith.constant 0 : index
    %c2_21 = arith.constant 2 : index
    %c0_22 = arith.constant 0 : index
    %c0_23 = arith.constant 0 : index
    %17 = vector.load %arg1[%c0_20, %c2_21, %c0_22, %c0_23] : memref<1x4x88x4xbf16, #tpu.memory_space<vmem>>, vector<1x1x72x4xbf16>
    %18 = vector.shape_cast %17 : vector<1x1x72x4xbf16> to vector<72x4xbf16>
    %c3 = arith.constant 3 : index
    %c0_24 = arith.constant 0 : index
    %c0_25 = arith.constant 0 : index
    %19 = vector.load %arg2[%c3, %c0_24, %c0_25] : memref<9x4x64xbf16, #tpu.memory_space<vmem>>, vector<1x4x64xbf16>
    %20 = vector.shape_cast %19 : vector<1x4x64xbf16> to vector<4x64xbf16>
    %cst_26 = arith.constant dense<0.000000e+00> : vector<72x64xf32>
    %21 = tpu.matmul %18, %20, %cst_26 {dimension_numbers = #tpu.dot_dimension_numbers<[1], [0], [0], [1], [0, 0, 1, 1], [], []>} : vector<72x4xbf16>, vector<4x64xbf16>, vector<72x64xf32> -> vector<72x64xf32>
    %22 = arith.addf %16, %21 : vector<72x64xf32>
    %c0_27 = arith.constant 0 : index
    %c3_28 = arith.constant 3 : index
    %c0_29 = arith.constant 0 : index
    %c0_30 = arith.constant 0 : index
    %23 = vector.load %arg1[%c0_27, %c3_28, %c0_29, %c0_30] : memref<1x4x88x4xbf16, #tpu.memory_space<vmem>>, vector<1x1x72x4xbf16>
    %24 = vector.shape_cast %23 : vector<1x1x72x4xbf16> to vector<72x4xbf16>
    %c4 = arith.constant 4 : index
    %c0_31 = arith.constant 0 : index
    %c0_32 = arith.constant 0 : index
    %25 = vector.load %arg2[%c4, %c0_31, %c0_32] : memref<9x4x64xbf16, #tpu.memory_space<vmem>>, vector<1x4x64xbf16>
    %26 = vector.shape_cast %25 : vector<1x4x64xbf16> to vector<4x64xbf16>
    %cst_33 = arith.constant dense<0.000000e+00> : vector<72x64xf32>
    %27 = tpu.matmul %24, %26, %cst_33 {dimension_numbers = #tpu.dot_dimension_numbers<[1], [0], [0], [1], [0, 0, 1, 1], [], []>} : vector<72x4xbf16>, vector<4x64xbf16>, vector<72x64xf32> -> vector<72x64xf32>
    %28 = arith.addf %22, %27 : vector<72x64xf32>
    %c0_34 = arith.constant 0 : index
    %c2_35 = arith.constant 2 : index
    %c1_36 = arith.constant 1 : index
    %c0_37 = arith.constant 0 : index
    %29 = vector.load %arg1[%c0_34, %c2_35, %c1_36, %c0_37] : memref<1x4x88x4xbf16, #tpu.memory_space<vmem>>, vector<1x1x72x4xbf16>
    %30 = vector.shape_cast %29 : vector<1x1x72x4xbf16> to vector<72x4xbf16>
    %c5 = arith.constant 5 : index
    %c0_38 = arith.constant 0 : index
    %c0_39 = arith.constant 0 : index
    %31 = vector.load %arg2[%c5, %c0_38, %c0_39] : memref<9x4x64xbf16, #tpu.memory_space<vmem>>, vector<1x4x64xbf16>
    %32 = vector.shape_cast %31 : vector<1x4x64xbf16> to vector<4x64xbf16>
    %cst_40 = arith.constant dense<0.000000e+00> : vector<72x64xf32>
    %33 = tpu.matmul %30, %32, %cst_40 {dimension_numbers = #tpu.dot_dimension_numbers<[1], [0], [0], [1], [0, 0, 1, 1], [], []>} : vector<72x4xbf16>, vector<4x64xbf16>, vector<72x64xf32> -> vector<72x64xf32>
    %34 = arith.addf %28, %33 : vector<72x64xf32>
    %c0_41 = arith.constant 0 : index
    %c0_42 = arith.constant 0 : index
    %c9 = arith.constant 9 : index
    %c0_43 = arith.constant 0 : index
    %35 = vector.load %arg1[%c0_41, %c0_42, %c9, %c0_43] : memref<1x4x88x4xbf16, #tpu.memory_space<vmem>>, vector<1x1x72x4xbf16>
    %36 = vector.shape_cast %35 : vector<1x1x72x4xbf16> to vector<72x4xbf16>
    %c6 = arith.constant 6 : index
    %c0_44 = arith.constant 0 : index
    %c0_45 = arith.constant 0 : index
    %37 = vector.load %arg2[%c6, %c0_44, %c0_45] : memref<9x4x64xbf16, #tpu.memory_space<vmem>>, vector<1x4x64xbf16>
    %38 = vector.shape_cast %37 : vector<1x4x64xbf16> to vector<4x64xbf16>
    %cst_46 = arith.constant dense<0.000000e+00> : vector<72x64xf32>
    %39 = tpu.matmul %36, %38, %cst_46 {dimension_numbers = #tpu.dot_dimension_numbers<[1], [0], [0], [1], [0, 0, 1, 1], [], []>} : vector<72x4xbf16>, vector<4x64xbf16>, vector<72x64xf32> -> vector<72x64xf32>
    %40 = arith.addf %34, %39 : vector<72x64xf32>
    %c0_47 = arith.constant 0 : index
    %c1_48 = arith.constant 1 : index
    %c9_49 = arith.constant 9 : index
    %c0_50 = arith.constant 0 : index
    %41 = vector.load %arg1[%c0_47, %c1_48, %c9_49, %c0_50] : memref<1x4x88x4xbf16, #tpu.memory_space<vmem>>, vector<1x1x72x4xbf16>
    %42 = vector.shape_cast %41 : vector<1x1x72x4xbf16> to vector<72x4xbf16>
    %c7 = arith.constant 7 : index
    %c0_51 = arith.constant 0 : index
    %c0_52 = arith.constant 0 : index
    %43 = vector.load %arg2[%c7, %c0_51, %c0_52] : memref<9x4x64xbf16, #tpu.memory_space<vmem>>, vector<1x4x64xbf16>
    %44 = vector.shape_cast %43 : vector<1x4x64xbf16> to vector<4x64xbf16>
    %cst_53 = arith.constant dense<0.000000e+00> : vector<72x64xf32>
    %45 = tpu.matmul %42, %44, %cst_53 {dimension_numbers = #tpu.dot_dimension_numbers<[1], [0], [0], [1], [0, 0, 1, 1], [], []>} : vector<72x4xbf16>, vector<4x64xbf16>, vector<72x64xf32> -> vector<72x64xf32>
    %46 = arith.addf %40, %45 : vector<72x64xf32>
    %c0_54 = arith.constant 0 : index
    %c0_55 = arith.constant 0 : index
    %c10 = arith.constant 10 : index
    %c0_56 = arith.constant 0 : index
    %47 = vector.load %arg1[%c0_54, %c0_55, %c10, %c0_56] : memref<1x4x88x4xbf16, #tpu.memory_space<vmem>>, vector<1x1x72x4xbf16>
    %48 = vector.shape_cast %47 : vector<1x1x72x4xbf16> to vector<72x4xbf16>
    %c8 = arith.constant 8 : index
    %c0_57 = arith.constant 0 : index
    %c0_58 = arith.constant 0 : index
    %49 = vector.load %arg2[%c8, %c0_57, %c0_58] : memref<9x4x64xbf16, #tpu.memory_space<vmem>>, vector<1x4x64xbf16>
    %50 = vector.shape_cast %49 : vector<1x4x64xbf16> to vector<4x64xbf16>
    %cst_59 = arith.constant dense<0.000000e+00> : vector<72x64xf32>
    %51 = tpu.matmul %48, %50, %cst_59 {dimension_numbers = #tpu.dot_dimension_numbers<[1], [0], [0], [1], [0, 0, 1, 1], [], []>} : vector<72x4xbf16>, vector<4x64xbf16>, vector<72x64xf32> -> vector<72x64xf32>
    %52 = arith.addf %46, %51 : vector<72x64xf32>
    %53 = arith.truncf %52 : vector<72x64xf32> to vector<72x64xbf16>
    %c0_60 = arith.constant 0 : index
    %c0_61 = arith.constant 0 : index
    %c0_62 = arith.constant 0 : index
    %54 = vector.load %arg4[%c0_60, %c0_61, %c0_62] : memref<1x72x64xbf16, #tpu.memory_space<vmem>>, vector<1x72x64xbf16>
    %55 = vector.shape_cast %54 : vector<1x72x64xbf16> to vector<72x64xbf16>
    %56 = vector.shape_cast %53 : vector<72x64xbf16> to vector<1x72x64xbf16>
    tpu.vector_store %arg4[%c0_60, %c0_61, %c0_62], %56 {strides = array<i32>} : memref<1x72x64xbf16, #tpu.memory_space<vmem>>, vector<1x72x64xbf16>,
    %c0_63 = arith.constant 0 : index
    %c0_64 = arith.constant 0 : index
    %57 = vector.load %arg3[%c0_63, %c0_64] : memref<72x1xf32, #tpu.memory_space<vmem>>, vector<72x1xf32>
    %58 = vector.broadcast %57 : vector<72x1xf32> to vector<72x64xf32>
    %59 = arith.mulf %52, %58 : vector<72x64xf32>
    %cst_65 = arith.constant dense<0.000000e+00> : vector<64xf32>
    %60 = vector.multi_reduction <add>, %59, %cst_65 [0] : vector<72x64xf32> to vector<64xf32>
    %61 = vector.shape_cast %60 : vector<64xf32> to vector<1x64xf32>
    %c0_66 = arith.constant 0 : index
    %c0_67 = arith.constant 0 : index
    %c0_68 = arith.constant 0 : index
    %62 = vector.load %arg5[%c0_66, %c0_67, %c0_68] : memref<1x1x64xf32, #tpu.memory_space<vmem>>, vector<1x1x64xf32>
    %63 = vector.shape_cast %62 : vector<1x1x64xf32> to vector<1x64xf32>
    %64 = vector.shape_cast %61 : vector<1x64xf32> to vector<1x1x64xf32>
    tpu.vector_store %arg5[%c0_66, %c0_67, %c0_68], %64 {strides = array<i32>} : memref<1x1x64xf32, #tpu.memory_space<vmem>>, vector<1x1x64xf32>,
    %65 = arith.mulf %59, %52 : vector<72x64xf32>
    %cst_69 = arith.constant dense<0.000000e+00> : vector<64xf32>
    %66 = vector.multi_reduction <add>, %65, %cst_69 [0] : vector<72x64xf32> to vector<64xf32>
    %67 = vector.shape_cast %66 : vector<64xf32> to vector<1x64xf32>
    %c0_70 = arith.constant 0 : index
    %c0_71 = arith.constant 0 : index
    %c0_72 = arith.constant 0 : index
    %68 = vector.load %arg6[%c0_70, %c0_71, %c0_72] : memref<1x1x64xf32, #tpu.memory_space<vmem>>, vector<1x1x64xf32>
    %69 = vector.shape_cast %68 : vector<1x1x64xf32> to vector<1x64xf32>
    %70 = vector.shape_cast %67 : vector<1x64xf32> to vector<1x1x64xf32>
    tpu.vector_store %arg6[%c0_70, %c0_71, %c0_72], %70 {strides = array<i32>} : memref<1x1x64xf32, #tpu.memory_space<vmem>>, vector<1x1x64xf32>,
    return
  }
  func.func @transform_0(%arg0: i32) -> (i32, i32, i32, i32) {
    %c0_i32 = arith.constant 0 : i32
    %c0_i32_0 = arith.constant 0 : i32
    %c0_i32_1 = arith.constant 0 : i32
    %c0_i32_2 = arith.constant 0 : i32
    return %arg0, %c0_i32, %c0_i32_0, %c0_i32_1 : i32, i32, i32, i32
  }
  func.func @transform_1(%arg0: i32) -> (i32, i32, i32) {
    %c0_i32 = arith.constant 0 : i32
    %c0_i32_0 = arith.constant 0 : i32
    %c0_i32_1 = arith.constant 0 : i32
    %c0_i32_2 = arith.constant 0 : i32
    return %c0_i32, %c0_i32_0, %c0_i32_1 : i32, i32, i32
  }
  func.func @transform_2(%arg0: i32) -> (i32, i32) {
    %c0_i32 = arith.constant 0 : i32
    %c0_i32_0 = arith.constant 0 : i32
    %c0_i32_1 = arith.constant 0 : i32
    return %c0_i32, %c0_i32_0 : i32, i32
  }
  func.func @transform_3(%arg0: i32) -> (i32, i32, i32) {
    %c0_i32 = arith.constant 0 : i32
    %c0_i32_0 = arith.constant 0 : i32
    %c0_i32_1 = arith.constant 0 : i32
    return %arg0, %c0_i32, %c0_i32_0 : i32, i32, i32
  }
  func.func @transform_4(%arg0: i32) -> (i32, i32, i32) {
    %c0_i32 = arith.constant 0 : i32
    %c0_i32_0 = arith.constant 0 : i32
    %c0_i32_1 = arith.constant 0 : i32
    return %arg0, %c0_i32, %c0_i32_0 : i32, i32, i32
  }
  func.func @transform_5(%arg0: i32) -> (i32, i32, i32) {
    %c0_i32 = arith.constant 0 : i32
    %c0_i32_0 = arith.constant 0 : i32
    %c0_i32_1 = arith.constant 0 : i32
    return %arg0, %c0_i32, %c0_i32_0 : i32, i32, i32
  }
}

module attributes {stable_mosaic.version = 11 : i64} {
  func.func @_conv3x3_kernel(%arg0: i32, %arg1: memref<1x1x104x64xbf16, #tpu.memory_space<vmem>>, %arg2: memref<9x64x64xbf16, #tpu.memory_space<vmem>>, %arg3: memref<80x1xf32, #tpu.memory_space<vmem>>, %arg4: memref<1x64xf32, #tpu.memory_space<vmem>>, %arg5: memref<1x64xf32, #tpu.memory_space<vmem>>, %arg6: memref<104x1xf32, #tpu.memory_space<vmem>>, %arg7: memref<1x80x64xbf16, #tpu.memory_space<vmem>>, %arg8: memref<1x1x64xf32, #tpu.memory_space<vmem>>, %arg9: memref<1x1x64xf32, #tpu.memory_space<vmem>>) attributes {dimension_semantics = [#tpu.dimension_semantics<parallel>], iteration_bounds = array<i64: 2>, scalar_prefetch = 0 : i64, scratch_operands = 0 : i64, tpu.core_type = #tpu.core_type<tc>, window_params = [{transform_indices = @transform_0, window_bounds = array<i64: 1, 1, 104, 64>}, {pipeline_mode = #tpu.pipeline_mode<synchronous>, transform_indices = @transform_1, window_bounds = array<i64: 9, 64, 64>}, {pipeline_mode = #tpu.pipeline_mode<synchronous>, transform_indices = @transform_2, window_bounds = array<i64: 80, 1>}, {pipeline_mode = #tpu.pipeline_mode<synchronous>, transform_indices = @transform_3, window_bounds = array<i64: 1, 64>}, {pipeline_mode = #tpu.pipeline_mode<synchronous>, transform_indices = @transform_4, window_bounds = array<i64: 1, 64>}, {pipeline_mode = #tpu.pipeline_mode<synchronous>, transform_indices = @transform_5, window_bounds = array<i64: 104, 1>}, {transform_indices = @transform_6, window_bounds = array<i64: 1, 80, 64>}, {transform_indices = @transform_7, window_bounds = array<i64: 1, 1, 64>}, {transform_indices = @transform_8, window_bounds = array<i64: 1, 1, 64>}]} {
    %c0 = arith.constant 0 : index
    %c0_0 = arith.constant 0 : index
    %c0_1 = arith.constant 0 : index
    %c0_2 = arith.constant 0 : index
    %0 = vector.load %arg1[%c0, %c0_0, %c0_1, %c0_2] : memref<1x1x104x64xbf16, #tpu.memory_space<vmem>>, vector<1x1x104x64xbf16>
    %1 = vector.shape_cast %0 : vector<1x1x104x64xbf16> to vector<104x64xbf16>
    %2 = arith.extf %1 : vector<104x64xbf16> to vector<104x64xf32>
    %c0_3 = arith.constant 0 : index
    %c0_4 = arith.constant 0 : index
    %3 = vector.load %arg4[%c0_3, %c0_4] : memref<1x64xf32, #tpu.memory_space<vmem>>, vector<1x64xf32>
    %4 = vector.broadcast %3 : vector<1x64xf32> to vector<104x64xf32>
    %5 = arith.mulf %2, %4 : vector<104x64xf32>
    %c0_5 = arith.constant 0 : index
    %c0_6 = arith.constant 0 : index
    %6 = vector.load %arg5[%c0_5, %c0_6] : memref<1x64xf32, #tpu.memory_space<vmem>>, vector<1x64xf32>
    %7 = vector.broadcast %6 : vector<1x64xf32> to vector<104x64xf32>
    %8 = arith.addf %5, %7 : vector<104x64xf32>
    %cst = arith.constant 0.000000e+00 : f32
    %9 = vector.broadcast %cst : f32 to vector<104x64xf32>
    %10 = arith.maximumf %8, %9 : vector<104x64xf32>
    %c0_7 = arith.constant 0 : index
    %c0_8 = arith.constant 0 : index
    %11 = vector.load %arg6[%c0_7, %c0_8] : memref<104x1xf32, #tpu.memory_space<vmem>>, vector<104x1xf32>
    %12 = vector.broadcast %11 : vector<104x1xf32> to vector<104x64xf32>
    %13 = arith.mulf %10, %12 : vector<104x64xf32>
    %14 = arith.truncf %13 : vector<104x64xf32> to vector<104x64xbf16>
    %15 = vector.extract_strided_slice %14 {offsets = [0, 0], sizes = [80, 64], strides = [1, 1]} : vector<104x64xbf16> to vector<80x64xbf16>
    %c0_9 = arith.constant 0 : index
    %c0_10 = arith.constant 0 : index
    %c0_11 = arith.constant 0 : index
    %16 = vector.load %arg2[%c0_9, %c0_10, %c0_11] : memref<9x64x64xbf16, #tpu.memory_space<vmem>>, vector<1x64x64xbf16>
    %17 = vector.shape_cast %16 : vector<1x64x64xbf16> to vector<64x64xbf16>
    %cst_12 = arith.constant dense<0.000000e+00> : vector<80x64xf32>
    %18 = tpu.matmul %15, %17, %cst_12 {dimension_numbers = #tpu.dot_dimension_numbers<[1], [0], [0], [1], [0, 0, 1, 1], [], []>} : vector<80x64xbf16>, vector<64x64xbf16>, vector<80x64xf32> -> vector<80x64xf32>
    %19 = vector.extract_strided_slice %14 {offsets = [1, 0], sizes = [80, 64], strides = [1, 1]} : vector<104x64xbf16> to vector<80x64xbf16>
    %c1 = arith.constant 1 : index
    %c0_13 = arith.constant 0 : index
    %c0_14 = arith.constant 0 : index
    %20 = vector.load %arg2[%c1, %c0_13, %c0_14] : memref<9x64x64xbf16, #tpu.memory_space<vmem>>, vector<1x64x64xbf16>
    %21 = vector.shape_cast %20 : vector<1x64x64xbf16> to vector<64x64xbf16>
    %cst_15 = arith.constant dense<0.000000e+00> : vector<80x64xf32>
    %22 = tpu.matmul %19, %21, %cst_15 {dimension_numbers = #tpu.dot_dimension_numbers<[1], [0], [0], [1], [0, 0, 1, 1], [], []>} : vector<80x64xbf16>, vector<64x64xbf16>, vector<80x64xf32> -> vector<80x64xf32>
    %23 = arith.addf %18, %22 : vector<80x64xf32>
    %24 = vector.extract_strided_slice %14 {offsets = [2, 0], sizes = [80, 64], strides = [1, 1]} : vector<104x64xbf16> to vector<80x64xbf16>
    %c2 = arith.constant 2 : index
    %c0_16 = arith.constant 0 : index
    %c0_17 = arith.constant 0 : index
    %25 = vector.load %arg2[%c2, %c0_16, %c0_17] : memref<9x64x64xbf16, #tpu.memory_space<vmem>>, vector<1x64x64xbf16>
    %26 = vector.shape_cast %25 : vector<1x64x64xbf16> to vector<64x64xbf16>
    %cst_18 = arith.constant dense<0.000000e+00> : vector<80x64xf32>
    %27 = tpu.matmul %24, %26, %cst_18 {dimension_numbers = #tpu.dot_dimension_numbers<[1], [0], [0], [1], [0, 0, 1, 1], [], []>} : vector<80x64xbf16>, vector<64x64xbf16>, vector<80x64xf32> -> vector<80x64xf32>
    %28 = arith.addf %23, %27 : vector<80x64xf32>
    %29 = vector.extract_strided_slice %14 {offsets = [10, 0], sizes = [80, 64], strides = [1, 1]} : vector<104x64xbf16> to vector<80x64xbf16>
    %c3 = arith.constant 3 : index
    %c0_19 = arith.constant 0 : index
    %c0_20 = arith.constant 0 : index
    %30 = vector.load %arg2[%c3, %c0_19, %c0_20] : memref<9x64x64xbf16, #tpu.memory_space<vmem>>, vector<1x64x64xbf16>
    %31 = vector.shape_cast %30 : vector<1x64x64xbf16> to vector<64x64xbf16>
    %cst_21 = arith.constant dense<0.000000e+00> : vector<80x64xf32>
    %32 = tpu.matmul %29, %31, %cst_21 {dimension_numbers = #tpu.dot_dimension_numbers<[1], [0], [0], [1], [0, 0, 1, 1], [], []>} : vector<80x64xbf16>, vector<64x64xbf16>, vector<80x64xf32> -> vector<80x64xf32>
    %33 = arith.addf %28, %32 : vector<80x64xf32>
    %34 = vector.extract_strided_slice %14 {offsets = [11, 0], sizes = [80, 64], strides = [1, 1]} : vector<104x64xbf16> to vector<80x64xbf16>
    %c4 = arith.constant 4 : index
    %c0_22 = arith.constant 0 : index
    %c0_23 = arith.constant 0 : index
    %35 = vector.load %arg2[%c4, %c0_22, %c0_23] : memref<9x64x64xbf16, #tpu.memory_space<vmem>>, vector<1x64x64xbf16>
    %36 = vector.shape_cast %35 : vector<1x64x64xbf16> to vector<64x64xbf16>
    %cst_24 = arith.constant dense<0.000000e+00> : vector<80x64xf32>
    %37 = tpu.matmul %34, %36, %cst_24 {dimension_numbers = #tpu.dot_dimension_numbers<[1], [0], [0], [1], [0, 0, 1, 1], [], []>} : vector<80x64xbf16>, vector<64x64xbf16>, vector<80x64xf32> -> vector<80x64xf32>
    %38 = arith.addf %33, %37 : vector<80x64xf32>
    %39 = vector.extract_strided_slice %14 {offsets = [12, 0], sizes = [80, 64], strides = [1, 1]} : vector<104x64xbf16> to vector<80x64xbf16>
    %c5 = arith.constant 5 : index
    %c0_25 = arith.constant 0 : index
    %c0_26 = arith.constant 0 : index
    %40 = vector.load %arg2[%c5, %c0_25, %c0_26] : memref<9x64x64xbf16, #tpu.memory_space<vmem>>, vector<1x64x64xbf16>
    %41 = vector.shape_cast %40 : vector<1x64x64xbf16> to vector<64x64xbf16>
    %cst_27 = arith.constant dense<0.000000e+00> : vector<80x64xf32>
    %42 = tpu.matmul %39, %41, %cst_27 {dimension_numbers = #tpu.dot_dimension_numbers<[1], [0], [0], [1], [0, 0, 1, 1], [], []>} : vector<80x64xbf16>, vector<64x64xbf16>, vector<80x64xf32> -> vector<80x64xf32>
    %43 = arith.addf %38, %42 : vector<80x64xf32>
    %44 = vector.extract_strided_slice %14 {offsets = [20, 0], sizes = [80, 64], strides = [1, 1]} : vector<104x64xbf16> to vector<80x64xbf16>
    %c6 = arith.constant 6 : index
    %c0_28 = arith.constant 0 : index
    %c0_29 = arith.constant 0 : index
    %45 = vector.load %arg2[%c6, %c0_28, %c0_29] : memref<9x64x64xbf16, #tpu.memory_space<vmem>>, vector<1x64x64xbf16>
    %46 = vector.shape_cast %45 : vector<1x64x64xbf16> to vector<64x64xbf16>
    %cst_30 = arith.constant dense<0.000000e+00> : vector<80x64xf32>
    %47 = tpu.matmul %44, %46, %cst_30 {dimension_numbers = #tpu.dot_dimension_numbers<[1], [0], [0], [1], [0, 0, 1, 1], [], []>} : vector<80x64xbf16>, vector<64x64xbf16>, vector<80x64xf32> -> vector<80x64xf32>
    %48 = arith.addf %43, %47 : vector<80x64xf32>
    %49 = vector.extract_strided_slice %14 {offsets = [21, 0], sizes = [80, 64], strides = [1, 1]} : vector<104x64xbf16> to vector<80x64xbf16>
    %c7 = arith.constant 7 : index
    %c0_31 = arith.constant 0 : index
    %c0_32 = arith.constant 0 : index
    %50 = vector.load %arg2[%c7, %c0_31, %c0_32] : memref<9x64x64xbf16, #tpu.memory_space<vmem>>, vector<1x64x64xbf16>
    %51 = vector.shape_cast %50 : vector<1x64x64xbf16> to vector<64x64xbf16>
    %cst_33 = arith.constant dense<0.000000e+00> : vector<80x64xf32>
    %52 = tpu.matmul %49, %51, %cst_33 {dimension_numbers = #tpu.dot_dimension_numbers<[1], [0], [0], [1], [0, 0, 1, 1], [], []>} : vector<80x64xbf16>, vector<64x64xbf16>, vector<80x64xf32> -> vector<80x64xf32>
    %53 = arith.addf %48, %52 : vector<80x64xf32>
    %54 = vector.extract_strided_slice %14 {offsets = [22, 0], sizes = [80, 64], strides = [1, 1]} : vector<104x64xbf16> to vector<80x64xbf16>
    %c8 = arith.constant 8 : index
    %c0_34 = arith.constant 0 : index
    %c0_35 = arith.constant 0 : index
    %55 = vector.load %arg2[%c8, %c0_34, %c0_35] : memref<9x64x64xbf16, #tpu.memory_space<vmem>>, vector<1x64x64xbf16>
    %56 = vector.shape_cast %55 : vector<1x64x64xbf16> to vector<64x64xbf16>
    %cst_36 = arith.constant dense<0.000000e+00> : vector<80x64xf32>
    %57 = tpu.matmul %54, %56, %cst_36 {dimension_numbers = #tpu.dot_dimension_numbers<[1], [0], [0], [1], [0, 0, 1, 1], [], []>} : vector<80x64xbf16>, vector<64x64xbf16>, vector<80x64xf32> -> vector<80x64xf32>
    %58 = arith.addf %53, %57 : vector<80x64xf32>
    %59 = arith.truncf %58 : vector<80x64xf32> to vector<80x64xbf16>
    %c0_37 = arith.constant 0 : index
    %c0_38 = arith.constant 0 : index
    %c0_39 = arith.constant 0 : index
    %60 = vector.load %arg7[%c0_37, %c0_38, %c0_39] : memref<1x80x64xbf16, #tpu.memory_space<vmem>>, vector<1x80x64xbf16>
    %61 = vector.shape_cast %60 : vector<1x80x64xbf16> to vector<80x64xbf16>
    %62 = vector.shape_cast %59 : vector<80x64xbf16> to vector<1x80x64xbf16>
    tpu.vector_store %arg7[%c0_37, %c0_38, %c0_39], %62 {strides = array<i32>} : memref<1x80x64xbf16, #tpu.memory_space<vmem>>, vector<1x80x64xbf16>,
    %c0_40 = arith.constant 0 : index
    %c0_41 = arith.constant 0 : index
    %63 = vector.load %arg3[%c0_40, %c0_41] : memref<80x1xf32, #tpu.memory_space<vmem>>, vector<80x1xf32>
    %64 = vector.broadcast %63 : vector<80x1xf32> to vector<80x64xf32>
    %65 = arith.mulf %58, %64 : vector<80x64xf32>
    %cst_42 = arith.constant dense<0.000000e+00> : vector<64xf32>
    %66 = vector.multi_reduction <add>, %65, %cst_42 [0] : vector<80x64xf32> to vector<64xf32>
    %67 = vector.shape_cast %66 : vector<64xf32> to vector<1x64xf32>
    %c0_43 = arith.constant 0 : index
    %c0_44 = arith.constant 0 : index
    %c0_45 = arith.constant 0 : index
    %68 = vector.load %arg8[%c0_43, %c0_44, %c0_45] : memref<1x1x64xf32, #tpu.memory_space<vmem>>, vector<1x1x64xf32>
    %69 = vector.shape_cast %68 : vector<1x1x64xf32> to vector<1x64xf32>
    %70 = vector.shape_cast %67 : vector<1x64xf32> to vector<1x1x64xf32>
    tpu.vector_store %arg8[%c0_43, %c0_44, %c0_45], %70 {strides = array<i32>} : memref<1x1x64xf32, #tpu.memory_space<vmem>>, vector<1x1x64xf32>,
    %71 = arith.mulf %65, %58 : vector<80x64xf32>
    %cst_46 = arith.constant dense<0.000000e+00> : vector<64xf32>
    %72 = vector.multi_reduction <add>, %71, %cst_46 [0] : vector<80x64xf32> to vector<64xf32>
    %73 = vector.shape_cast %72 : vector<64xf32> to vector<1x64xf32>
    %c0_47 = arith.constant 0 : index
    %c0_48 = arith.constant 0 : index
    %c0_49 = arith.constant 0 : index
    %74 = vector.load %arg9[%c0_47, %c0_48, %c0_49] : memref<1x1x64xf32, #tpu.memory_space<vmem>>, vector<1x1x64xf32>
    %75 = vector.shape_cast %74 : vector<1x1x64xf32> to vector<1x64xf32>
    %76 = vector.shape_cast %73 : vector<1x64xf32> to vector<1x1x64xf32>
    tpu.vector_store %arg9[%c0_47, %c0_48, %c0_49], %76 {strides = array<i32>} : memref<1x1x64xf32, #tpu.memory_space<vmem>>, vector<1x1x64xf32>,
    return
  }
  func.func @transform_0(%arg0: i32) -> (i32, i32, i32, i32) {
    %c0_i32 = arith.constant 0 : i32
    %c0_i32_0 = arith.constant 0 : i32
    %c0_i32_1 = arith.constant 0 : i32
    %c0_i32_2 = arith.constant 0 : i32
    return %arg0, %c0_i32, %c0_i32_0, %c0_i32_1 : i32, i32, i32, i32
  }
  func.func @transform_1(%arg0: i32) -> (i32, i32, i32) {
    %c0_i32 = arith.constant 0 : i32
    %c0_i32_0 = arith.constant 0 : i32
    %c0_i32_1 = arith.constant 0 : i32
    %c0_i32_2 = arith.constant 0 : i32
    return %c0_i32, %c0_i32_0, %c0_i32_1 : i32, i32, i32
  }
  func.func @transform_2(%arg0: i32) -> (i32, i32) {
    %c0_i32 = arith.constant 0 : i32
    %c0_i32_0 = arith.constant 0 : i32
    %c0_i32_1 = arith.constant 0 : i32
    return %c0_i32, %c0_i32_0 : i32, i32
  }
  func.func @transform_3(%arg0: i32) -> (i32, i32) {
    %c0_i32 = arith.constant 0 : i32
    %c0_i32_0 = arith.constant 0 : i32
    %c0_i32_1 = arith.constant 0 : i32
    return %c0_i32, %c0_i32_0 : i32, i32
  }
  func.func @transform_4(%arg0: i32) -> (i32, i32) {
    %c0_i32 = arith.constant 0 : i32
    %c0_i32_0 = arith.constant 0 : i32
    %c0_i32_1 = arith.constant 0 : i32
    return %c0_i32, %c0_i32_0 : i32, i32
  }
  func.func @transform_5(%arg0: i32) -> (i32, i32) {
    %c0_i32 = arith.constant 0 : i32
    %c0_i32_0 = arith.constant 0 : i32
    %c0_i32_1 = arith.constant 0 : i32
    return %c0_i32, %c0_i32_0 : i32, i32
  }
  func.func @transform_6(%arg0: i32) -> (i32, i32, i32) {
    %c0_i32 = arith.constant 0 : i32
    %c0_i32_0 = arith.constant 0 : i32
    %c0_i32_1 = arith.constant 0 : i32
    return %arg0, %c0_i32, %c0_i32_0 : i32, i32, i32
  }
  func.func @transform_7(%arg0: i32) -> (i32, i32, i32) {
    %c0_i32 = arith.constant 0 : i32
    %c0_i32_0 = arith.constant 0 : i32
    %c0_i32_1 = arith.constant 0 : i32
    return %arg0, %c0_i32, %c0_i32_0 : i32, i32, i32
  }
  func.func @transform_8(%arg0: i32) -> (i32, i32, i32) {
    %c0_i32 = arith.constant 0 : i32
    %c0_i32_0 = arith.constant 0 : i32
    %c0_i32_1 = arith.constant 0 : i32
    return %arg0, %c0_i32, %c0_i32_0 : i32, i32, i32
  }
}

module attributes {stable_mosaic.version = 11 : i64} {
  func.func @_matmul_stats_kernel(%arg0: i32, %arg1: memref<64x4xbf16, #tpu.memory_space<vmem>>, %arg2: memref<4x64xbf16, #tpu.memory_space<vmem>>, %arg3: memref<64x64xbf16, #tpu.memory_space<vmem>>, %arg4: memref<1x1x64xf32, #tpu.memory_space<vmem>>, %arg5: memref<1x1x64xf32, #tpu.memory_space<vmem>>) attributes {dimension_semantics = [#tpu.dimension_semantics<parallel>], iteration_bounds = array<i64: 2>, scalar_prefetch = 0 : i64, scratch_operands = 0 : i64, tpu.core_type = #tpu.core_type<tc>, window_params = [{transform_indices = @transform_0, window_bounds = array<i64: 64, 4>}, {pipeline_mode = #tpu.pipeline_mode<synchronous>, transform_indices = @transform_1, window_bounds = array<i64: 4, 64>}, {transform_indices = @transform_2, window_bounds = array<i64: 64, 64>}, {transform_indices = @transform_3, window_bounds = array<i64: 1, 1, 64>}, {transform_indices = @transform_4, window_bounds = array<i64: 1, 1, 64>}]} {
    %c0 = arith.constant 0 : index
    %c0_0 = arith.constant 0 : index
    %0 = vector.load %arg1[%c0, %c0_0] : memref<64x4xbf16, #tpu.memory_space<vmem>>, vector<64x4xbf16>
    %c0_1 = arith.constant 0 : index
    %c0_2 = arith.constant 0 : index
    %1 = vector.load %arg2[%c0_1, %c0_2] : memref<4x64xbf16, #tpu.memory_space<vmem>>, vector<4x64xbf16>
    %cst = arith.constant dense<0.000000e+00> : vector<64x64xf32>
    %2 = tpu.matmul %0, %1, %cst {dimension_numbers = #tpu.dot_dimension_numbers<[1], [0], [0], [1], [0, 0, 1, 1], [], []>} : vector<64x4xbf16>, vector<4x64xbf16>, vector<64x64xf32> -> vector<64x64xf32>
    %3 = arith.truncf %2 : vector<64x64xf32> to vector<64x64xbf16>
    %c0_3 = arith.constant 0 : index
    %c0_4 = arith.constant 0 : index
    %4 = vector.load %arg3[%c0_3, %c0_4] : memref<64x64xbf16, #tpu.memory_space<vmem>>, vector<64x64xbf16>
    tpu.vector_store %arg3[%c0_3, %c0_4], %3 {strides = array<i32>} : memref<64x64xbf16, #tpu.memory_space<vmem>>, vector<64x64xbf16>,
    %cst_5 = arith.constant dense<0.000000e+00> : vector<64xf32>
    %5 = vector.multi_reduction <add>, %2, %cst_5 [0] : vector<64x64xf32> to vector<64xf32>
    %6 = vector.shape_cast %5 : vector<64xf32> to vector<1x64xf32>
    %c0_6 = arith.constant 0 : index
    %c0_7 = arith.constant 0 : index
    %c0_8 = arith.constant 0 : index
    %7 = vector.load %arg4[%c0_6, %c0_7, %c0_8] : memref<1x1x64xf32, #tpu.memory_space<vmem>>, vector<1x1x64xf32>
    %8 = vector.shape_cast %7 : vector<1x1x64xf32> to vector<1x64xf32>
    %9 = vector.shape_cast %6 : vector<1x64xf32> to vector<1x1x64xf32>
    tpu.vector_store %arg4[%c0_6, %c0_7, %c0_8], %9 {strides = array<i32>} : memref<1x1x64xf32, #tpu.memory_space<vmem>>, vector<1x1x64xf32>,
    %10 = arith.mulf %2, %2 : vector<64x64xf32>
    %cst_9 = arith.constant dense<0.000000e+00> : vector<64xf32>
    %11 = vector.multi_reduction <add>, %10, %cst_9 [0] : vector<64x64xf32> to vector<64xf32>
    %12 = vector.shape_cast %11 : vector<64xf32> to vector<1x64xf32>
    %c0_10 = arith.constant 0 : index
    %c0_11 = arith.constant 0 : index
    %c0_12 = arith.constant 0 : index
    %13 = vector.load %arg5[%c0_10, %c0_11, %c0_12] : memref<1x1x64xf32, #tpu.memory_space<vmem>>, vector<1x1x64xf32>
    %14 = vector.shape_cast %13 : vector<1x1x64xf32> to vector<1x64xf32>
    %15 = vector.shape_cast %12 : vector<1x64xf32> to vector<1x1x64xf32>
    tpu.vector_store %arg5[%c0_10, %c0_11, %c0_12], %15 {strides = array<i32>} : memref<1x1x64xf32, #tpu.memory_space<vmem>>, vector<1x1x64xf32>,
    return
  }
  func.func @transform_0(%arg0: i32) -> (i32, i32) {
    %c0_i32 = arith.constant 0 : i32
    %c0_i32_0 = arith.constant 0 : i32
    return %arg0, %c0_i32 : i32, i32
  }
  func.func @transform_1(%arg0: i32) -> (i32, i32) {
    %c0_i32 = arith.constant 0 : i32
    %c0_i32_0 = arith.constant 0 : i32
    %c0_i32_1 = arith.constant 0 : i32
    return %c0_i32, %c0_i32_0 : i32, i32
  }
  func.func @transform_2(%arg0: i32) -> (i32, i32) {
    %c0_i32 = arith.constant 0 : i32
    %c0_i32_0 = arith.constant 0 : i32
    return %arg0, %c0_i32 : i32, i32
  }
  func.func @transform_3(%arg0: i32) -> (i32, i32, i32) {
    %c0_i32 = arith.constant 0 : i32
    %c0_i32_0 = arith.constant 0 : i32
    %c0_i32_1 = arith.constant 0 : i32
    return %arg0, %c0_i32, %c0_i32_0 : i32, i32, i32
  }
  func.func @transform_4(%arg0: i32) -> (i32, i32, i32) {
    %c0_i32 = arith.constant 0 : i32
    %c0_i32_0 = arith.constant 0 : i32
    %c0_i32_1 = arith.constant 0 : i32
    return %arg0, %c0_i32, %c0_i32_0 : i32, i32, i32
  }
}

module attributes {stable_mosaic.version = 11 : i64} {
  func.func @_bn_res_relu_proj_kernel(%arg0: i32, %arg1: memref<32x128xbf16, #tpu.memory_space<vmem>>, %arg2: memref<1x128xf32, #tpu.memory_space<vmem>>, %arg3: memref<1x128xf32, #tpu.memory_space<vmem>>, %arg4: memref<32x128xbf16, #tpu.memory_space<vmem>>, %arg5: memref<1x128xf32, #tpu.memory_space<vmem>>, %arg6: memref<1x128xf32, #tpu.memory_space<vmem>>, %arg7: memref<32x128xbf16, #tpu.memory_space<vmem>>) attributes {dimension_semantics = [#tpu.dimension_semantics<parallel>], iteration_bounds = array<i64: 2>, scalar_prefetch = 0 : i64, scratch_operands = 0 : i64, tpu.core_type = #tpu.core_type<tc>, window_params = [{transform_indices = @transform_0, window_bounds = array<i64: 32, 128>}, {pipeline_mode = #tpu.pipeline_mode<synchronous>, transform_indices = @transform_1, window_bounds = array<i64: 1, 128>}, {pipeline_mode = #tpu.pipeline_mode<synchronous>, transform_indices = @transform_2, window_bounds = array<i64: 1, 128>}, {transform_indices = @transform_3, window_bounds = array<i64: 32, 128>}, {pipeline_mode = #tpu.pipeline_mode<synchronous>, transform_indices = @transform_4, window_bounds = array<i64: 1, 128>}, {pipeline_mode = #tpu.pipeline_mode<synchronous>, transform_indices = @transform_5, window_bounds = array<i64: 1, 128>}, {transform_indices = @transform_6, window_bounds = array<i64: 32, 128>}]} {
    %c0 = arith.constant 0 : index
    %c0_0 = arith.constant 0 : index
    %0 = vector.load %arg1[%c0, %c0_0] : memref<32x128xbf16, #tpu.memory_space<vmem>>, vector<32x128xbf16>
    %1 = arith.extf %0 : vector<32x128xbf16> to vector<32x128xf32>
    %c0_1 = arith.constant 0 : index
    %c0_2 = arith.constant 0 : index
    %2 = vector.load %arg2[%c0_1, %c0_2] : memref<1x128xf32, #tpu.memory_space<vmem>>, vector<1x128xf32>
    %3 = vector.broadcast %2 : vector<1x128xf32> to vector<32x128xf32>
    %4 = arith.mulf %1, %3 : vector<32x128xf32>
    %c0_3 = arith.constant 0 : index
    %c0_4 = arith.constant 0 : index
    %5 = vector.load %arg3[%c0_3, %c0_4] : memref<1x128xf32, #tpu.memory_space<vmem>>, vector<1x128xf32>
    %6 = vector.broadcast %5 : vector<1x128xf32> to vector<32x128xf32>
    %7 = arith.addf %4, %6 : vector<32x128xf32>
    %c0_5 = arith.constant 0 : index
    %c0_6 = arith.constant 0 : index
    %8 = vector.load %arg4[%c0_5, %c0_6] : memref<32x128xbf16, #tpu.memory_space<vmem>>, vector<32x128xbf16>
    %9 = arith.extf %8 : vector<32x128xbf16> to vector<32x128xf32>
    %c0_7 = arith.constant 0 : index
    %c0_8 = arith.constant 0 : index
    %10 = vector.load %arg5[%c0_7, %c0_8] : memref<1x128xf32, #tpu.memory_space<vmem>>, vector<1x128xf32>
    %11 = vector.broadcast %10 : vector<1x128xf32> to vector<32x128xf32>
    %12 = arith.mulf %9, %11 : vector<32x128xf32>
    %13 = arith.addf %7, %12 : vector<32x128xf32>
    %c0_9 = arith.constant 0 : index
    %c0_10 = arith.constant 0 : index
    %14 = vector.load %arg6[%c0_9, %c0_10] : memref<1x128xf32, #tpu.memory_space<vmem>>, vector<1x128xf32>
    %15 = vector.broadcast %14 : vector<1x128xf32> to vector<32x128xf32>
    %16 = arith.addf %13, %15 : vector<32x128xf32>
    %cst = arith.constant 0.000000e+00 : f32
    %17 = vector.broadcast %cst : f32 to vector<32x128xf32>
    %18 = arith.maximumf %16, %17 : vector<32x128xf32>
    %19 = arith.truncf %18 : vector<32x128xf32> to vector<32x128xbf16>
    %c0_11 = arith.constant 0 : index
    %c0_12 = arith.constant 0 : index
    %20 = vector.load %arg7[%c0_11, %c0_12] : memref<32x128xbf16, #tpu.memory_space<vmem>>, vector<32x128xbf16>
    tpu.vector_store %arg7[%c0_11, %c0_12], %19 {strides = array<i32>} : memref<32x128xbf16, #tpu.memory_space<vmem>>, vector<32x128xbf16>,
    return
  }
  func.func @transform_0(%arg0: i32) -> (i32, i32) {
    %c0_i32 = arith.constant 0 : i32
    %c0_i32_0 = arith.constant 0 : i32
    return %arg0, %c0_i32 : i32, i32
  }
  func.func @transform_1(%arg0: i32) -> (i32, i32) {
    %c0_i32 = arith.constant 0 : i32
    %c0_i32_0 = arith.constant 0 : i32
    %c0_i32_1 = arith.constant 0 : i32
    return %c0_i32, %c0_i32_0 : i32, i32
  }
  func.func @transform_2(%arg0: i32) -> (i32, i32) {
    %c0_i32 = arith.constant 0 : i32
    %c0_i32_0 = arith.constant 0 : i32
    %c0_i32_1 = arith.constant 0 : i32
    return %c0_i32, %c0_i32_0 : i32, i32
  }
  func.func @transform_3(%arg0: i32) -> (i32, i32) {
    %c0_i32 = arith.constant 0 : i32
    %c0_i32_0 = arith.constant 0 : i32
    return %arg0, %c0_i32 : i32, i32
  }
  func.func @transform_4(%arg0: i32) -> (i32, i32) {
    %c0_i32 = arith.constant 0 : i32
    %c0_i32_0 = arith.constant 0 : i32
    %c0_i32_1 = arith.constant 0 : i32
    return %c0_i32, %c0_i32_0 : i32, i32
  }
  func.func @transform_5(%arg0: i32) -> (i32, i32) {
    %c0_i32 = arith.constant 0 : i32
    %c0_i32_0 = arith.constant 0 : i32
    %c0_i32_1 = arith.constant 0 : i32
    return %c0_i32, %c0_i32_0 : i32, i32
  }
  func.func @transform_6(%arg0: i32) -> (i32, i32) {
    %c0_i32 = arith.constant 0 : i32
    %c0_i32_0 = arith.constant 0 : i32
    return %arg0, %c0_i32 : i32, i32
  }
}

module attributes {stable_mosaic.version = 11 : i64} {
  func.func @_bn_res_relu_ident_kernel(%arg0: i32, %arg1: memref<32x128xbf16, #tpu.memory_space<vmem>>, %arg2: memref<1x128xf32, #tpu.memory_space<vmem>>, %arg3: memref<1x128xf32, #tpu.memory_space<vmem>>, %arg4: memref<32x128xbf16, #tpu.memory_space<vmem>>, %arg5: memref<32x128xbf16, #tpu.memory_space<vmem>>) attributes {dimension_semantics = [#tpu.dimension_semantics<parallel>], iteration_bounds = array<i64: 2>, scalar_prefetch = 0 : i64, scratch_operands = 0 : i64, tpu.core_type = #tpu.core_type<tc>, window_params = [{transform_indices = @transform_0, window_bounds = array<i64: 32, 128>}, {pipeline_mode = #tpu.pipeline_mode<synchronous>, transform_indices = @transform_1, window_bounds = array<i64: 1, 128>}, {pipeline_mode = #tpu.pipeline_mode<synchronous>, transform_indices = @transform_2, window_bounds = array<i64: 1, 128>}, {transform_indices = @transform_3, window_bounds = array<i64: 32, 128>}, {transform_indices = @transform_4, window_bounds = array<i64: 32, 128>}]} {
    %c0 = arith.constant 0 : index
    %c0_0 = arith.constant 0 : index
    %0 = vector.load %arg1[%c0, %c0_0] : memref<32x128xbf16, #tpu.memory_space<vmem>>, vector<32x128xbf16>
    %1 = arith.extf %0 : vector<32x128xbf16> to vector<32x128xf32>
    %c0_1 = arith.constant 0 : index
    %c0_2 = arith.constant 0 : index
    %2 = vector.load %arg2[%c0_1, %c0_2] : memref<1x128xf32, #tpu.memory_space<vmem>>, vector<1x128xf32>
    %3 = vector.broadcast %2 : vector<1x128xf32> to vector<32x128xf32>
    %4 = arith.mulf %1, %3 : vector<32x128xf32>
    %c0_3 = arith.constant 0 : index
    %c0_4 = arith.constant 0 : index
    %5 = vector.load %arg3[%c0_3, %c0_4] : memref<1x128xf32, #tpu.memory_space<vmem>>, vector<1x128xf32>
    %6 = vector.broadcast %5 : vector<1x128xf32> to vector<32x128xf32>
    %7 = arith.addf %4, %6 : vector<32x128xf32>
    %c0_5 = arith.constant 0 : index
    %c0_6 = arith.constant 0 : index
    %8 = vector.load %arg4[%c0_5, %c0_6] : memref<32x128xbf16, #tpu.memory_space<vmem>>, vector<32x128xbf16>
    %9 = arith.extf %8 : vector<32x128xbf16> to vector<32x128xf32>
    %10 = arith.addf %7, %9 : vector<32x128xf32>
    %cst = arith.constant 0.000000e+00 : f32
    %11 = vector.broadcast %cst : f32 to vector<32x128xf32>
    %12 = arith.maximumf %10, %11 : vector<32x128xf32>
    %13 = arith.truncf %12 : vector<32x128xf32> to vector<32x128xbf16>
    %c0_7 = arith.constant 0 : index
    %c0_8 = arith.constant 0 : index
    %14 = vector.load %arg5[%c0_7, %c0_8] : memref<32x128xbf16, #tpu.memory_space<vmem>>, vector<32x128xbf16>
    tpu.vector_store %arg5[%c0_7, %c0_8], %13 {strides = array<i32>} : memref<32x128xbf16, #tpu.memory_space<vmem>>, vector<32x128xbf16>,
    return
  }
  func.func @transform_0(%arg0: i32) -> (i32, i32) {
    %c0_i32 = arith.constant 0 : i32
    %c0_i32_0 = arith.constant 0 : i32
    return %arg0, %c0_i32 : i32, i32
  }
  func.func @transform_1(%arg0: i32) -> (i32, i32) {
    %c0_i32 = arith.constant 0 : i32
    %c0_i32_0 = arith.constant 0 : i32
    %c0_i32_1 = arith.constant 0 : i32
    return %c0_i32, %c0_i32_0 : i32, i32
  }
  func.func @transform_2(%arg0: i32) -> (i32, i32) {
    %c0_i32 = arith.constant 0 : i32
    %c0_i32_0 = arith.constant 0 : i32
    %c0_i32_1 = arith.constant 0 : i32
    return %c0_i32, %c0_i32_0 : i32, i32
  }
  func.func @transform_3(%arg0: i32) -> (i32, i32) {
    %c0_i32 = arith.constant 0 : i32
    %c0_i32_0 = arith.constant 0 : i32
    return %arg0, %c0_i32 : i32, i32
  }
  func.func @transform_4(%arg0: i32) -> (i32, i32) {
    %c0_i32 = arith.constant 0 : i32
    %c0_i32_0 = arith.constant 0 : i32
    return %arg0, %c0_i32 : i32, i32
  }
}

module attributes {stable_mosaic.version = 11 : i64} {
  func.func @_conv3x3_kernel(%arg0: i32, %arg1: memref<1x1x104x64xbf16, #tpu.memory_space<vmem>>, %arg2: memref<9x64x64xbf16, #tpu.memory_space<vmem>>, %arg3: memref<80x1xf32, #tpu.memory_space<vmem>>, %arg4: memref<1x80x64xbf16, #tpu.memory_space<vmem>>, %arg5: memref<1x1x64xf32, #tpu.memory_space<vmem>>, %arg6: memref<1x1x64xf32, #tpu.memory_space<vmem>>) attributes {dimension_semantics = [#tpu.dimension_semantics<parallel>], iteration_bounds = array<i64: 2>, scalar_prefetch = 0 : i64, scratch_operands = 0 : i64, tpu.core_type = #tpu.core_type<tc>, window_params = [{transform_indices = @transform_0, window_bounds = array<i64: 1, 1, 104, 64>}, {pipeline_mode = #tpu.pipeline_mode<synchronous>, transform_indices = @transform_1, window_bounds = array<i64: 9, 64, 64>}, {pipeline_mode = #tpu.pipeline_mode<synchronous>, transform_indices = @transform_2, window_bounds = array<i64: 80, 1>}, {transform_indices = @transform_3, window_bounds = array<i64: 1, 80, 64>}, {transform_indices = @transform_4, window_bounds = array<i64: 1, 1, 64>}, {transform_indices = @transform_5, window_bounds = array<i64: 1, 1, 64>}]} {
    %c0 = arith.constant 0 : index
    %c0_0 = arith.constant 0 : index
    %c0_1 = arith.constant 0 : index
    %c0_2 = arith.constant 0 : index
    %0 = vector.load %arg1[%c0, %c0_0, %c0_1, %c0_2] : memref<1x1x104x64xbf16, #tpu.memory_space<vmem>>, vector<1x1x80x64xbf16>
    %1 = vector.shape_cast %0 : vector<1x1x80x64xbf16> to vector<80x64xbf16>
    %c0_3 = arith.constant 0 : index
    %c0_4 = arith.constant 0 : index
    %c0_5 = arith.constant 0 : index
    %2 = vector.load %arg2[%c0_3, %c0_4, %c0_5] : memref<9x64x64xbf16, #tpu.memory_space<vmem>>, vector<1x64x64xbf16>
    %3 = vector.shape_cast %2 : vector<1x64x64xbf16> to vector<64x64xbf16>
    %cst = arith.constant dense<0.000000e+00> : vector<80x64xf32>
    %4 = tpu.matmul %1, %3, %cst {dimension_numbers = #tpu.dot_dimension_numbers<[1], [0], [0], [1], [0, 0, 1, 1], [], []>} : vector<80x64xbf16>, vector<64x64xbf16>, vector<80x64xf32> -> vector<80x64xf32>
    %c0_6 = arith.constant 0 : index
    %c0_7 = arith.constant 0 : index
    %c1 = arith.constant 1 : index
    %c0_8 = arith.constant 0 : index
    %5 = vector.load %arg1[%c0_6, %c0_7, %c1, %c0_8] : memref<1x1x104x64xbf16, #tpu.memory_space<vmem>>, vector<1x1x80x64xbf16>
    %6 = vector.shape_cast %5 : vector<1x1x80x64xbf16> to vector<80x64xbf16>
    %c1_9 = arith.constant 1 : index
    %c0_10 = arith.constant 0 : index
    %c0_11 = arith.constant 0 : index
    %7 = vector.load %arg2[%c1_9, %c0_10, %c0_11] : memref<9x64x64xbf16, #tpu.memory_space<vmem>>, vector<1x64x64xbf16>
    %8 = vector.shape_cast %7 : vector<1x64x64xbf16> to vector<64x64xbf16>
    %cst_12 = arith.constant dense<0.000000e+00> : vector<80x64xf32>
    %9 = tpu.matmul %6, %8, %cst_12 {dimension_numbers = #tpu.dot_dimension_numbers<[1], [0], [0], [1], [0, 0, 1, 1], [], []>} : vector<80x64xbf16>, vector<64x64xbf16>, vector<80x64xf32> -> vector<80x64xf32>
    %10 = arith.addf %4, %9 : vector<80x64xf32>
    %c0_13 = arith.constant 0 : index
    %c0_14 = arith.constant 0 : index
    %c2 = arith.constant 2 : index
    %c0_15 = arith.constant 0 : index
    %11 = vector.load %arg1[%c0_13, %c0_14, %c2, %c0_15] : memref<1x1x104x64xbf16, #tpu.memory_space<vmem>>, vector<1x1x80x64xbf16>
    %12 = vector.shape_cast %11 : vector<1x1x80x64xbf16> to vector<80x64xbf16>
    %c2_16 = arith.constant 2 : index
    %c0_17 = arith.constant 0 : index
    %c0_18 = arith.constant 0 : index
    %13 = vector.load %arg2[%c2_16, %c0_17, %c0_18] : memref<9x64x64xbf16, #tpu.memory_space<vmem>>, vector<1x64x64xbf16>
    %14 = vector.shape_cast %13 : vector<1x64x64xbf16> to vector<64x64xbf16>
    %cst_19 = arith.constant dense<0.000000e+00> : vector<80x64xf32>
    %15 = tpu.matmul %12, %14, %cst_19 {dimension_numbers = #tpu.dot_dimension_numbers<[1], [0], [0], [1], [0, 0, 1, 1], [], []>} : vector<80x64xbf16>, vector<64x64xbf16>, vector<80x64xf32> -> vector<80x64xf32>
    %16 = arith.addf %10, %15 : vector<80x64xf32>
    %c0_20 = arith.constant 0 : index
    %c0_21 = arith.constant 0 : index
    %c10 = arith.constant 10 : index
    %c0_22 = arith.constant 0 : index
    %17 = vector.load %arg1[%c0_20, %c0_21, %c10, %c0_22] : memref<1x1x104x64xbf16, #tpu.memory_space<vmem>>, vector<1x1x80x64xbf16>
    %18 = vector.shape_cast %17 : vector<1x1x80x64xbf16> to vector<80x64xbf16>
    %c3 = arith.constant 3 : index
    %c0_23 = arith.constant 0 : index
    %c0_24 = arith.constant 0 : index
    %19 = vector.load %arg2[%c3, %c0_23, %c0_24] : memref<9x64x64xbf16, #tpu.memory_space<vmem>>, vector<1x64x64xbf16>
    %20 = vector.shape_cast %19 : vector<1x64x64xbf16> to vector<64x64xbf16>
    %cst_25 = arith.constant dense<0.000000e+00> : vector<80x64xf32>
    %21 = tpu.matmul %18, %20, %cst_25 {dimension_numbers = #tpu.dot_dimension_numbers<[1], [0], [0], [1], [0, 0, 1, 1], [], []>} : vector<80x64xbf16>, vector<64x64xbf16>, vector<80x64xf32> -> vector<80x64xf32>
    %22 = arith.addf %16, %21 : vector<80x64xf32>
    %c0_26 = arith.constant 0 : index
    %c0_27 = arith.constant 0 : index
    %c11 = arith.constant 11 : index
    %c0_28 = arith.constant 0 : index
    %23 = vector.load %arg1[%c0_26, %c0_27, %c11, %c0_28] : memref<1x1x104x64xbf16, #tpu.memory_space<vmem>>, vector<1x1x80x64xbf16>
    %24 = vector.shape_cast %23 : vector<1x1x80x64xbf16> to vector<80x64xbf16>
    %c4 = arith.constant 4 : index
    %c0_29 = arith.constant 0 : index
    %c0_30 = arith.constant 0 : index
    %25 = vector.load %arg2[%c4, %c0_29, %c0_30] : memref<9x64x64xbf16, #tpu.memory_space<vmem>>, vector<1x64x64xbf16>
    %26 = vector.shape_cast %25 : vector<1x64x64xbf16> to vector<64x64xbf16>
    %cst_31 = arith.constant dense<0.000000e+00> : vector<80x64xf32>
    %27 = tpu.matmul %24, %26, %cst_31 {dimension_numbers = #tpu.dot_dimension_numbers<[1], [0], [0], [1], [0, 0, 1, 1], [], []>} : vector<80x64xbf16>, vector<64x64xbf16>, vector<80x64xf32> -> vector<80x64xf32>
    %28 = arith.addf %22, %27 : vector<80x64xf32>
    %c0_32 = arith.constant 0 : index
    %c0_33 = arith.constant 0 : index
    %c12 = arith.constant 12 : index
    %c0_34 = arith.constant 0 : index
    %29 = vector.load %arg1[%c0_32, %c0_33, %c12, %c0_34] : memref<1x1x104x64xbf16, #tpu.memory_space<vmem>>, vector<1x1x80x64xbf16>
    %30 = vector.shape_cast %29 : vector<1x1x80x64xbf16> to vector<80x64xbf16>
    %c5 = arith.constant 5 : index
    %c0_35 = arith.constant 0 : index
    %c0_36 = arith.constant 0 : index
    %31 = vector.load %arg2[%c5, %c0_35, %c0_36] : memref<9x64x64xbf16, #tpu.memory_space<vmem>>, vector<1x64x64xbf16>
    %32 = vector.shape_cast %31 : vector<1x64x64xbf16> to vector<64x64xbf16>
    %cst_37 = arith.constant dense<0.000000e+00> : vector<80x64xf32>
    %33 = tpu.matmul %30, %32, %cst_37 {dimension_numbers = #tpu.dot_dimension_numbers<[1], [0], [0], [1], [0, 0, 1, 1], [], []>} : vector<80x64xbf16>, vector<64x64xbf16>, vector<80x64xf32> -> vector<80x64xf32>
    %34 = arith.addf %28, %33 : vector<80x64xf32>
    %c0_38 = arith.constant 0 : index
    %c0_39 = arith.constant 0 : index
    %c20 = arith.constant 20 : index
    %c0_40 = arith.constant 0 : index
    %35 = vector.load %arg1[%c0_38, %c0_39, %c20, %c0_40] : memref<1x1x104x64xbf16, #tpu.memory_space<vmem>>, vector<1x1x80x64xbf16>
    %36 = vector.shape_cast %35 : vector<1x1x80x64xbf16> to vector<80x64xbf16>
    %c6 = arith.constant 6 : index
    %c0_41 = arith.constant 0 : index
    %c0_42 = arith.constant 0 : index
    %37 = vector.load %arg2[%c6, %c0_41, %c0_42] : memref<9x64x64xbf16, #tpu.memory_space<vmem>>, vector<1x64x64xbf16>
    %38 = vector.shape_cast %37 : vector<1x64x64xbf16> to vector<64x64xbf16>
    %cst_43 = arith.constant dense<0.000000e+00> : vector<80x64xf32>
    %39 = tpu.matmul %36, %38, %cst_43 {dimension_numbers = #tpu.dot_dimension_numbers<[1], [0], [0], [1], [0, 0, 1, 1], [], []>} : vector<80x64xbf16>, vector<64x64xbf16>, vector<80x64xf32> -> vector<80x64xf32>
    %40 = arith.addf %34, %39 : vector<80x64xf32>
    %c0_44 = arith.constant 0 : index
    %c0_45 = arith.constant 0 : index
    %c21 = arith.constant 21 : index
    %c0_46 = arith.constant 0 : index
    %41 = vector.load %arg1[%c0_44, %c0_45, %c21, %c0_46] : memref<1x1x104x64xbf16, #tpu.memory_space<vmem>>, vector<1x1x80x64xbf16>
    %42 = vector.shape_cast %41 : vector<1x1x80x64xbf16> to vector<80x64xbf16>
    %c7 = arith.constant 7 : index
    %c0_47 = arith.constant 0 : index
    %c0_48 = arith.constant 0 : index
    %43 = vector.load %arg2[%c7, %c0_47, %c0_48] : memref<9x64x64xbf16, #tpu.memory_space<vmem>>, vector<1x64x64xbf16>
    %44 = vector.shape_cast %43 : vector<1x64x64xbf16> to vector<64x64xbf16>
    %cst_49 = arith.constant dense<0.000000e+00> : vector<80x64xf32>
    %45 = tpu.matmul %42, %44, %cst_49 {dimension_numbers = #tpu.dot_dimension_numbers<[1], [0], [0], [1], [0, 0, 1, 1], [], []>} : vector<80x64xbf16>, vector<64x64xbf16>, vector<80x64xf32> -> vector<80x64xf32>
    %46 = arith.addf %40, %45 : vector<80x64xf32>
    %c0_50 = arith.constant 0 : index
    %c0_51 = arith.constant 0 : index
    %c22 = arith.constant 22 : index
    %c0_52 = arith.constant 0 : index
    %47 = vector.load %arg1[%c0_50, %c0_51, %c22, %c0_52] : memref<1x1x104x64xbf16, #tpu.memory_space<vmem>>, vector<1x1x80x64xbf16>
    %48 = vector.shape_cast %47 : vector<1x1x80x64xbf16> to vector<80x64xbf16>
    %c8 = arith.constant 8 : index
    %c0_53 = arith.constant 0 : index
    %c0_54 = arith.constant 0 : index
    %49 = vector.load %arg2[%c8, %c0_53, %c0_54] : memref<9x64x64xbf16, #tpu.memory_space<vmem>>, vector<1x64x64xbf16>
    %50 = vector.shape_cast %49 : vector<1x64x64xbf16> to vector<64x64xbf16>
    %cst_55 = arith.constant dense<0.000000e+00> : vector<80x64xf32>
    %51 = tpu.matmul %48, %50, %cst_55 {dimension_numbers = #tpu.dot_dimension_numbers<[1], [0], [0], [1], [0, 0, 1, 1], [], []>} : vector<80x64xbf16>, vector<64x64xbf16>, vector<80x64xf32> -> vector<80x64xf32>
    %52 = arith.addf %46, %51 : vector<80x64xf32>
    %53 = arith.truncf %52 : vector<80x64xf32> to vector<80x64xbf16>
    %c0_56 = arith.constant 0 : index
    %c0_57 = arith.constant 0 : index
    %c0_58 = arith.constant 0 : index
    %54 = vector.load %arg4[%c0_56, %c0_57, %c0_58] : memref<1x80x64xbf16, #tpu.memory_space<vmem>>, vector<1x80x64xbf16>
    %55 = vector.shape_cast %54 : vector<1x80x64xbf16> to vector<80x64xbf16>
    %56 = vector.shape_cast %53 : vector<80x64xbf16> to vector<1x80x64xbf16>
    tpu.vector_store %arg4[%c0_56, %c0_57, %c0_58], %56 {strides = array<i32>} : memref<1x80x64xbf16, #tpu.memory_space<vmem>>, vector<1x80x64xbf16>,
    %c0_59 = arith.constant 0 : index
    %c0_60 = arith.constant 0 : index
    %57 = vector.load %arg3[%c0_59, %c0_60] : memref<80x1xf32, #tpu.memory_space<vmem>>, vector<80x1xf32>
    %58 = vector.broadcast %57 : vector<80x1xf32> to vector<80x64xf32>
    %59 = arith.mulf %52, %58 : vector<80x64xf32>
    %cst_61 = arith.constant dense<0.000000e+00> : vector<64xf32>
    %60 = vector.multi_reduction <add>, %59, %cst_61 [0] : vector<80x64xf32> to vector<64xf32>
    %61 = vector.shape_cast %60 : vector<64xf32> to vector<1x64xf32>
    %c0_62 = arith.constant 0 : index
    %c0_63 = arith.constant 0 : index
    %c0_64 = arith.constant 0 : index
    %62 = vector.load %arg5[%c0_62, %c0_63, %c0_64] : memref<1x1x64xf32, #tpu.memory_space<vmem>>, vector<1x1x64xf32>
    %63 = vector.shape_cast %62 : vector<1x1x64xf32> to vector<1x64xf32>
    %64 = vector.shape_cast %61 : vector<1x64xf32> to vector<1x1x64xf32>
    tpu.vector_store %arg5[%c0_62, %c0_63, %c0_64], %64 {strides = array<i32>} : memref<1x1x64xf32, #tpu.memory_space<vmem>>, vector<1x1x64xf32>,
    %65 = arith.mulf %59, %52 : vector<80x64xf32>
    %cst_65 = arith.constant dense<0.000000e+00> : vector<64xf32>
    %66 = vector.multi_reduction <add>, %65, %cst_65 [0] : vector<80x64xf32> to vector<64xf32>
    %67 = vector.shape_cast %66 : vector<64xf32> to vector<1x64xf32>
    %c0_66 = arith.constant 0 : index
    %c0_67 = arith.constant 0 : index
    %c0_68 = arith.constant 0 : index
    %68 = vector.load %arg6[%c0_66, %c0_67, %c0_68] : memref<1x1x64xf32, #tpu.memory_space<vmem>>, vector<1x1x64xf32>
    %69 = vector.shape_cast %68 : vector<1x1x64xf32> to vector<1x64xf32>
    %70 = vector.shape_cast %67 : vector<1x64xf32> to vector<1x1x64xf32>
    tpu.vector_store %arg6[%c0_66, %c0_67, %c0_68], %70 {strides = array<i32>} : memref<1x1x64xf32, #tpu.memory_space<vmem>>, vector<1x1x64xf32>,
    return
  }
  func.func @transform_0(%arg0: i32) -> (i32, i32, i32, i32) {
    %c0_i32 = arith.constant 0 : i32
    %c0_i32_0 = arith.constant 0 : i32
    %c0_i32_1 = arith.constant 0 : i32
    %c0_i32_2 = arith.constant 0 : i32
    return %arg0, %c0_i32, %c0_i32_0, %c0_i32_1 : i32, i32, i32, i32
  }
  func.func @transform_1(%arg0: i32) -> (i32, i32, i32) {
    %c0_i32 = arith.constant 0 : i32
    %c0_i32_0 = arith.constant 0 : i32
    %c0_i32_1 = arith.constant 0 : i32
    %c0_i32_2 = arith.constant 0 : i32
    return %c0_i32, %c0_i32_0, %c0_i32_1 : i32, i32, i32
  }
  func.func @transform_2(%arg0: i32) -> (i32, i32) {
    %c0_i32 = arith.constant 0 : i32
    %c0_i32_0 = arith.constant 0 : i32
    %c0_i32_1 = arith.constant 0 : i32
    return %c0_i32, %c0_i32_0 : i32, i32
  }
  func.func @transform_3(%arg0: i32) -> (i32, i32, i32) {
    %c0_i32 = arith.constant 0 : i32
    %c0_i32_0 = arith.constant 0 : i32
    %c0_i32_1 = arith.constant 0 : i32
    return %arg0, %c0_i32, %c0_i32_0 : i32, i32, i32
  }
  func.func @transform_4(%arg0: i32) -> (i32, i32, i32) {
    %c0_i32 = arith.constant 0 : i32
    %c0_i32_0 = arith.constant 0 : i32
    %c0_i32_1 = arith.constant 0 : i32
    return %arg0, %c0_i32, %c0_i32_0 : i32, i32, i32
  }
  func.func @transform_5(%arg0: i32) -> (i32, i32, i32) {
    %c0_i32 = arith.constant 0 : i32
    %c0_i32_0 = arith.constant 0 : i32
    %c0_i32_1 = arith.constant 0 : i32
    return %arg0, %c0_i32, %c0_i32_0 : i32, i32, i32
  }
}

</mosaic_0001>

<llo_original>
// kernel: tile.33
$region0: #{tile.33}
  #allocation0 [shape = 's32[1]{0}', space=sflag, size = 0x4, scoped, tag = 'scoped memory for tile.33']
  %s0 = inlined_call_operand.vmem [shape: f32[64], index: 0, kind: input, shape index: {}]
  %s1 = inlined_call_operand.vmem [shape: f32[2,64], index: 1, kind: output, shape index: {}]
  // Predicated region
  $region2: #{tile.33} parent=0 // pred_check
    _
  $region3: #{tile.33} parent=0 // pred_check_branch
    %3 = sbr.rel (0) target = $region5
  $region4: #{tile.33} parent=0 // pred_region
    _
  $region5: #{tile.33} parent=0 // pred_fallthru
    _
  %v4 = vld [vmem:[%s0] ss:$0 sm:$0xff]
  %5 = vst [vmem:[%s1] sm:$0x3] %v4

// kernel: tile.34
$region0: #{tile.34}
  %s0 = inlined_call_operand.vmem [shape: f32[2,64], index: 0, kind: input, shape index: {}]
  %s1 = inlined_call_operand.vmem [shape: f32[1,128], index: 1, kind: output, shape index: {}]
  $region1: #{tile.34} parent=0
    #allocation0 [shape = 'u8[4096]{0}', space=vmem, size = 0x1000, scoped, tag = 'scoped mem for output reshape']
    #allocation1 [shape = 'u8[4096]{0}', space=vmem, size = 0x1000, scoped, tag = 'scoped mem for input reshape']
    %s3 = ssub.s32 4, 1
    %v4 = vld [vmem:[%s0] sm:%s3]
    %5 = vst [vmem:[#allocation1] sm:%s3] %v4
    %v6 = vld [vmem:[#allocation1] sm:$0x1]
    %vm7 = vcmask 523264
    %8 = vst.msk [vmem:[#allocation0] sm:$0x1] %vm7, %v6
    %s9 = scalar_lea.vmem [#allocation1], 1
    %v10 = vld [vmem:[%s9] sm:$0x1]
    %11 = vrot.lane.b32.xlu0 %v10, 64
    %v12 = vpop.permute.xlu0 %11
    %vm13 = vcmask 1048064
    %14 = vst.msk [vmem:[#allocation0] sm:$0x1] %vm13, %v12
    %s16 = ssub.s32 2, 1
    %v17 = vld [vmem:[#allocation0] sm:%s16]
    %s19 = ssub.s32 2, 1
    %20 = vst [vmem:[%s1] sm:%s19] %v17

// kernel: forward.7
$region0: #{forward.7}
  #allocation0 [shape = 'u32[]', space=smem, size = 0x4, offset = 0x4, fixed_abs, tag = 'smem constant byte address 0x4 - core index']
  #allocation1 [shape = 'u32[72,128]{1,0:T(1,128)}', space=vmem, size = 0x9000, scoped, tag = 'internal scratch']
  %s0 = inlined_call_operand.vmem [shape: bf16[2,4,88,4], index: 0, kind: input, shape index: {}]
  %s1 = inlined_call_operand.vmem [shape: bf16[9,4,64], index: 1, kind: input, shape index: {}]
  %s2 = inlined_call_operand.vmem [shape: f32[72,1], index: 2, kind: input, shape index: {}]
  %s3 = inlined_call_operand.vmem [shape: bf16[2,72,64], index: 3, kind: output, shape index: {0}]
  %s4 = inlined_call_operand.vmem [shape: f32[2,1,64], index: 4, kind: output, shape index: {1}]
  %s5 = inlined_call_operand.vmem [shape: f32[2,1,64], index: 5, kind: output, shape index: {2}]
  %6 = xla_tuple %s3, %s4, %s5
  %s7 = sld [smem:[#allocation0]]
  $region61: #{forward.7} parent=0
    _
  %s9 = ssub.s32 1, %s7
  %s10 = scalar_select 0, %s9, %s7
  loop: start=0, step=1, limit=4
  $region2: #{forward.7} parent=0 // loop_pre_header
    _
  $region3: #{forward.7} parent=0 // loop_header
    %s12 = sphi 0, %s16
    %p13 = scmp.ge.s32.totalorder %s12, 4
    %s22 = sphi 0, %s24
    %s25 = sphi 0, %s22
    %s26 = sphi 0, %s25
    %s42 = sphi 0, %s26
    %s46 = sphi 0, %s46
    %s48 = sphi 0, %s46
    %s49 = sphi 0, %s48
    %s63 = sphi 0, %s49
    %s67 = sphi 0, %s67
    %s69 = sphi 0, %s67
    %s70 = sphi 0, %s69
    %s84 = sphi 0, %s70
    %s90 = sphi 0, %s92
    %s93 = sphi 0, %s90
    %s94 = sphi 0, %s93
    %s110 = sphi 0, %s94
    %s116 = sphi 0, %s118
    %s119 = sphi 0, %s116
    %s120 = sphi 0, %s119
    %s136 = sphi 0, %s120
    %s142 = sphi 0, %s144
    %s145 = sphi 0, %s142
    %s146 = sphi 0, %s145
    %s162 = sphi 0, %s146
  $region4: #{forward.7} parent=0 // loop_header_branch
    %15 = sbr.rel (%p13) target = $region8
  $region5: #{forward.7} parent=0 // loop_body
    %s17 = ssub.s32 %s12, 1
    %s18 = ssub.s32 %s12, 2
    %s19 = sadd.s32 %s12, 1
    %s20 = ssub.s32 %s12, %s19
    %p21 = scmp.eq.s32.totalorder %s20, 0
    %s23 = sadd.s32 %s22, 1
    %s24 = scalar_select %p21, %s22, %s23
    %p27 = pneg %p21
    %p28 = scmp.eq.s32.totalorder %s12, 1
    %p29 = por %p27, %p28
    %p30 = scmp.ne.s32.totalorder %s22, %s25
    %p31 = scmp.eq.s32.totalorder %s12, 0
    %p32 = por %p30, %p31
    %p33 = scmp.ne.s32.totalorder %s22, %s25
    %p34 = scmp.eq.s32.totalorder %s17, 1
    %p35 = por %p33, %p34
    %p36 = scmp.ne.s32.totalorder %s25, %s26
    %p37 = scmp.eq.s32.totalorder %s17, 0
    %p38 = por %p36, %p37
    %p39 = scmp.ne.s32.totalorder %s25, %s26
    %p40 = scmp.eq.s32.totalorder %s18, 1
    %p41 = por %p39, %p40
    %p43 = scmp.ne.s32.totalorder %s26, %s42
    %p44 = scmp.eq.s32.totalorder %s18, 0
    %p45 = por %p43, %p44
    %s47 = sadd.s32 %s46, 1
    %p50 = scmp.eq.s32.totalorder %s12, 1
    %p51 = scmp.ne.s32.totalorder %s46, %s48
    %p52 = scmp.eq.s32.totalorder %s12, 0
    %p53 = por %p51, %p52
    %p54 = scmp.ne.s32.totalorder %s46, %s48
    %p55 = scmp.eq.s32.totalorder %s17, 1
    %p56 = por %p54, %p55
    %p57 = scmp.ne.s32.totalorder %s48, %s49
    %p58 = scmp.eq.s32.totalorder %s17, 0
    %p59 = por %p57, %p58
    %p60 = scmp.ne.s32.totalorder %s48, %s49
    %p61 = scmp.eq.s32.totalorder %s18, 1
    %p62 = por %p60, %p61
    %p64 = scmp.ne.s32.totalorder %s49, %s63
    %p65 = scmp.eq.s32.totalorder %s18, 0
    %p66 = por %p64, %p65
    %s68 = sadd.s32 %s67, 1
    %p71 = scmp.eq.s32.totalorder %s12, 1
    %p72 = scmp.ne.s32.totalorder %s67, %s69
    %p73 = scmp.eq.s32.totalorder %s12, 0
    %p74 = por %p72, %p73
    %p75 = scmp.ne.s32.totalorder %s67, %s69
    %p76 = scmp.eq.s32.totalorder %s17, 1
    %p77 = por %p75, %p76
    %p78 = scmp.ne.s32.totalorder %s69, %s70
    %p79 = scmp.eq.s32.totalorder %s17, 0
    %p80 = por %p78, %p79
    %p81 = scmp.ne.s32.totalorder %s69, %s70
    %p82 = scmp.eq.s32.totalorder %s18, 1
    %p83 = por %p81, %p82
    %p85 = scmp.ne.s32.totalorder %s70, %s84
    %p86 = scmp.eq.s32.totalorder %s18, 0
    %p87 = por %p85, %p86
    %s88 = ssub.s32 %s12, %s19
    %p89 = scmp.eq.s32.totalorder %s88, 0
    %s91 = sadd.s32 %s90, 1
    %s92 = scalar_select %p89, %s90, %s91
    %p95 = pneg %p89
    %p96 = scmp.eq.s32.totalorder %s12, 1
    %p97 = por %p95, %p96
    %p98 = scmp.ne.s32.totalorder %s90, %s93
    %p99 = scmp.eq.s32.totalorder %s12, 0
    %p100 = por %p98, %p99
    %p101 = scmp.ne.s32.totalorder %s90, %s93
    %p102 = scmp.eq.s32.totalorder %s17, 1
    %p103 = por %p101, %p102
    %p104 = scmp.ne.s32.totalorder %s93, %s94
    %p105 = scmp.eq.s32.totalorder %s17, 0
    %p106 = por %p104, %p105
    %p107 = scmp.ne.s32.totalorder %s93, %s94
    %p108 = scmp.eq.s32.totalorder %s18, 1
    %p109 = por %p107, %p108
    %p111 = scmp.ne.s32.totalorder %s94, %s110
    %p112 = scmp.eq.s32.totalorder %s18, 0
    %p113 = por %p111, %p112
    %s114 = ssub.s32 %s12, %s19
    %p115 = scmp.eq.s32.totalorder %s114, 0
    %s117 = sadd.s32 %s116, 1
    %s118 = scalar_select %p115, %s116, %s117
    %p121 = pneg %p115
    %p122 = scmp.eq.s32.totalorder %s12, 1
    %p123 = por %p121, %p122
    %p124 = scmp.ne.s32.totalorder %s116, %s119
    %p125 = scmp.eq.s32.totalorder %s12, 0
    %p126 = por %p124, %p125
    %p127 = scmp.ne.s32.totalorder %s116, %s119
    %p128 = scmp.eq.s32.totalorder %s17, 1
    %p129 = por %p127, %p128
    %p130 = scmp.ne.s32.totalorder %s119, %s120
    %p131 = scmp.eq.s32.totalorder %s17, 0
    %p132 = por %p130, %p131
    %p133 = scmp.ne.s32.totalorder %s119, %s120
    %p134 = scmp.eq.s32.totalorder %s18, 1
    %p135 = por %p133, %p134
    %p137 = scmp.ne.s32.totalorder %s120, %s136
    %p138 = scmp.eq.s32.totalorder %s18, 0
    %p139 = por %p137, %p138
    %s140 = ssub.s32 %s12, %s19
    %p141 = scmp.eq.s32.totalorder %s140, 0
    %s143 = sadd.s32 %s142, 1
    %s144 = scalar_select %p141, %s142, %s143
    %p147 = pneg %p141
    %p148 = scmp.eq.s32.totalorder %s12, 1
    %p149 = por %p147, %p148
    %p150 = scmp.ne.s32.totalorder %s142, %s145
    %p151 = scmp.eq.s32.totalorder %s12, 0
    %p152 = por %p150, %p151
    %p153 = scmp.ne.s32.totalorder %s142, %s145
    %p154 = scmp.eq.s32.totalorder %s17, 1
    %p155 = por %p153, %p154
    %p156 = scmp.ne.s32.totalorder %s145, %s146
    %p157 = scmp.eq.s32.totalorder %s17, 0
    %p158 = por %p156, %p157
    %p159 = scmp.ne.s32.totalorder %s145, %s146
    %p160 = scmp.eq.s32.totalorder %s18, 1
    %p161 = por %p159, %p160
    %p163 = scmp.ne.s32.totalorder %s146, %s162
    %p164 = scmp.eq.s32.totalorder %s18, 0
    %p165 = por %p163, %p164
    %p166 = scmp.le.s32.totalorder 1, %s12
    %p167 = scmp.lt.s32.totalorder %s12, 3
    %p168 = pnand %p166, %p167
    %p169 = pneg %p168
    // Predicated region
    $region9: #{forward.7} parent=5 // pred_check
      _
    $region10: #{forward.7} parent=5 // pred_check_branch
      %171 = sbr.rel (%p168) target = $region12
    $region11: #{forward.7} parent=5 // pred_region
      %s172 = ssub.s32 %s12, 1
      // Predicated region
      $region13: #{forward.7} parent=11 // pred_check
        %p173 = pneg %p59
      $region14: #{forward.7} parent=11 // pred_check_branch
        %175 = sbr.rel (%p173) target = $region16
      $region15: #{forward.7} parent=11 // pred_region
        _
      $region16: #{forward.7} parent=11 // pred_fallthru
        _
      // Predicated region
      $region17: #{forward.7} parent=11 // pred_check
        %p176 = pneg %p80
      $region18: #{forward.7} parent=11 // pred_check_branch
        %178 = sbr.rel (%p176) target = $region20
      $region19: #{forward.7} parent=11 // pred_region
        _
      $region20: #{forward.7} parent=11 // pred_fallthru
        _
    $region12: #{forward.7} parent=5 // pred_fallthru
      _
    %p179 = scmp.lt.s32.totalorder %s12, 2
    // Predicated region
    $region21: #{forward.7} parent=5 // pred_check
      %p180 = pneg %p179
    $region22: #{forward.7} parent=5 // pred_check_branch
      %182 = sbr.rel (%p180) target = $region24
    $region23: #{forward.7} parent=5 // pred_region
      // Predicated region
      $region25: #{forward.7} parent=23 // pred_check
        %p183 = pneg %p32
      $region26: #{forward.7} parent=23 // pred_check_branch
        %185 = sbr.rel (%p183) target = $region28
      $region27: #{forward.7} parent=23 // pred_region
        %p186 = scmp.lt.s32.totalorder %s12, 1
        %s187 = scalar_select %p186, %s12, 1
        %s188 = smul.addr %s187, 44
        %s189 = smul.addr %s188, 4
        %s190 = scalar_lea.vmem %s0, %s189
      $region28: #{forward.7} parent=23 // pred_fallthru
        _
    $region24: #{forward.7} parent=5 // pred_fallthru
      _
    %p191 = scmp.le.s32.totalorder 1, %s12
    %p192 = scmp.lt.s32.totalorder %s12, 3
    %p193 = pnand %p191, %p192
    %p194 = pneg %p193
    // Predicated region
    $region29: #{forward.7} parent=5 // pred_check
      _
    $region30: #{forward.7} parent=5 // pred_check_branch
      %196 = sbr.rel (%p193) target = $region32
    $region31: #{forward.7} parent=5 // pred_region
      %s197 = ssub.s32 %s12, 1
      %p198 = scmp.lt.s32.totalorder %s17, 1
      %s199 = scalar_select %p198, %s17, 1
      %s200 = smul.addr %s199, 44
      %s201 = smul.addr %s200, 4
      %s202 = scalar_lea.vmem %s0, %s201
      %p203 = pneg %p38
      %p204 = pneg %p35
      %p205 = pneg %p59
      %p206 = pneg %p56
      %p207 = pneg %p80
      %p208 = pneg %p77
      %p209 = pneg %p106
      %p210 = pneg %p103
      %p211 = scmp.lt.s32.totalorder %s17, 1
      %s212 = scalar_select %p211, %s17, 1
      %s213 = smul.addr %s212, 9
      %s214 = smul.addr %s213, 4
      %s215 = scalar_lea.vmem %s3, %s214
      %p216 = pneg %p132
      %p217 = pneg %p129
      %p218 = scmp.lt.s32.totalorder %s17, 1
      %s219 = scalar_select %p218, %s17, 1
      %s220 = scalar_lea.vmem %s4, %s219
      %p221 = pneg %p158
      %p222 = pneg %p155
      %p223 = scmp.lt.s32.totalorder %s17, 1
      %s224 = scalar_select %p223, %s17, 1
      %s225 = scalar_lea.vmem %s5, %s224
      %p226 = scmp.lt.s32.totalorder %s17, 1
      %s227 = scalar_select %p226, %s17, 1
      %s228 = smul.addr %s227, 44
      %s229 = smul.addr %s228, 4
      %s230 = scalar_lea.vmem %s0, %s229
      %p231 = scmp.lt.s32.totalorder %s17, 1
      %s232 = scalar_select %p231, %s17, 1
      %s233 = smul.addr %s232, 9
      %s234 = smul.addr %s233, 4
      %s235 = scalar_lea.vmem %s3, %s234
      %p236 = scmp.lt.s32.totalorder %s17, 1
      %s237 = scalar_select %p236, %s17, 1
      %s238 = scalar_lea.vmem %s4, %s237
      %p239 = scmp.lt.s32.totalorder %s17, 1
      %s240 = scalar_select %p239, %s17, 1
      %s241 = scalar_lea.vmem %s5, %s240
      %v243 = vld [vmem:[%s230] sm:$0xf]
      %v244 = vld [vmem:[%s230 + $0x4] sm:$0xf]
      %v245 = vld [vmem:[%s230 + $0x8] sm:$0xf]
      %v246 = vld [vmem:[%s230 + $0xc] sm:$0xf]
      %v247 = vld [vmem:[%s230 + $0x10] sm:$0xf]
      %v248 = vld [vmem:[%s230 + $0x14] sm:$0xf]
      %v249 = vld [vmem:[%s230 + $0x18] sm:$0xf]
      %v250 = vld [vmem:[%s230 + $0x1c] sm:$0xf]
      %v251 = vld [vmem:[%s230 + $0x20] sm:$0xf]
      %v252 = vld [vmem:[%s1] sm:$0x3]
      %s253 = scalar_lea.vmem %s230, 44
      %v254 = vld [vmem:[%s253] sm:$0xf]
      %v255 = vld [vmem:[%s253 + $0x4] sm:$0xf]
      %v256 = vld [vmem:[%s253 + $0x8] sm:$0xf]
      %v257 = vld [vmem:[%s253 + $0xc] sm:$0xf]
      %v258 = vld [vmem:[%s253 + $0x10] sm:$0xf]
      %v259 = vld [vmem:[%s253 + $0x14] sm:$0xf]
      %v260 = vld [vmem:[%s253 + $0x18] sm:$0xf]
      %v261 = vld [vmem:[%s253 + $0x1c] sm:$0xf]
      %v262 = vld [vmem:[%s253 + $0x20] sm:$0xf]
      %s263 = scalar_lea.vmem %s1, 2
      %v264 = vld [vmem:[%s263] sm:$0x3]
      %v274 = vunpack.c.l.b16 %v254
      %v275 = vunpack.c.l.b16 %v255
      %v276 = vunpack.c.l.b16 %v256
      %v277 = vunpack.c.l.b16 %v257
      %v278 = vunpack.c.l.b16 %v258
      %v279 = vunpack.c.l.b16 %v259
      %v280 = vunpack.c.l.b16 %v260
      %v281 = vunpack.c.l.b16 %v261
      %v282 = vunpack.c.l.b16 %v262
      %v283 = vpack.c.b16 %v275, %v274
      %v284 = vpack.c.b16 %v277, %v276
      %v285 = vpack.c.b16 %v279, %v278
      %v286 = vpack.c.b16 %v281, %v280
      %v287 = vpack.c.b16 %v282, %v282
      %vm288 = vcmask 31744
      %v290 = vsel %vm288, %v283, 0
      %v293 = vsel %vm288, %v284, 0
      %v296 = vsel %vm288, %v285, 0
      %v299 = vsel %vm288, %v286, 0
      %v302 = vsel %vm288, %v287, 0
      %vm304 = vcmask 1041408
      %v306 = vsel %vm304, %v264, 0
      %308 = vmatpush.bf16.msra.mxu0 0
      %309 = vmatpush.bf16.msra.mxu0 0
      %310 = vmatpush.bf16.msra.mxu0 0
      %311 = vmatpush.bf16.msra.mxu0 0
      %312 = vmatpush.bf16.msra.mxu0 0
      %313 = vmatpush.bf16.msra.mxu0 0
      %314 = vmatpush.bf16.msra.mxu0 0
      %315 = vmatpush.bf16.msra.mxu0 %v306
      %316 = vmatmul.bf16.gmra.mxu0 %v290
      %v317 = vpop.f32.mrf.mxu0
      %v318 = vadd.f32 0.0, %v317
      %v319 = vpop.f32.mrf.mxu0
      %v320 = vadd.f32 0.0, %v319
      %321 = vmatmul.bf16.gmra.mxu0 %v293
      %v322 = vpop.f32.mrf.mxu0
      %v323 = vadd.f32 0.0, %v322
      %v324 = vpop.f32.mrf.mxu0
      %v325 = vadd.f32 0.0, %v324
      %326 = vmatmul.bf16.gmra.mxu0 %v296
      %v327 = vpop.f32.mrf.mxu0
      %v328 = vadd.f32 0.0, %v327
      %v329 = vpop.f32.mrf.mxu0
      %v330 = vadd.f32 0.0, %v329
      %331 = vmatmul.bf16.gmra.mxu0 %v299
      %v332 = vpop.f32.mrf.mxu0
      %v333 = vadd.f32 0.0, %v332
      %v334 = vpop.f32.mrf.mxu0
      %v335 = vadd.f32 0.0, %v334
      %336 = vmatmul.bf16.gmra.mxu0 %v302
      %v337 = vpop.f32.mrf.mxu0
      %v338 = vadd.f32 0.0, %v337
      %v339 = vpop.f32.mrf.mxu0
      %340 = vdwg.mxu0
      %v350 = vunpack.c.l.b16 %v243
      %v351 = vunpack.c.l.b16 %v244
      %v352 = vunpack.c.l.b16 %v245
      %v353 = vunpack.c.l.b16 %v246
      %v354 = vunpack.c.l.b16 %v247
      %v355 = vunpack.c.l.b16 %v248
      %v356 = vunpack.c.l.b16 %v249
      %v357 = vunpack.c.l.b16 %v250
      %v358 = vunpack.c.l.b16 %v251
      %v359 = vpack.c.b16 %v351, %v350
      %v360 = vpack.c.b16 %v353, %v352
      %v361 = vpack.c.b16 %v355, %v354
      %v362 = vpack.c.b16 %v357, %v356
      %v363 = vpack.c.b16 %v358, %v358
      %v365 = vsel %vm288, %v359, 0
      %v368 = vsel %vm288, %v360, 0
      %v371 = vsel %vm288, %v361, 0
      %v374 = vsel %vm288, %v362, 0
      %v377 = vsel %vm288, %v363, 0
      %v380 = vsel %vm304, %v252, 0
      %382 = vmatpush.bf16.msra.mxu0 0
      %383 = vmatpush.bf16.msra.mxu0 0
      %384 = vmatpush.bf16.msra.mxu0 0
      %385 = vmatpush.bf16.msra.mxu0 0
      %386 = vmatpush.bf16.msra.mxu0 0
      %387 = vmatpush.bf16.msra.mxu0 0
      %388 = vmatpush.bf16.msra.mxu0 0
      %389 = vmatpush.bf16.msra.mxu0 %v380
      %390 = vmatmul.bf16.gmra.mxu0 %v365
      %v391 = vpop.f32.mrf.mxu0
      %v392 = vadd.f32 %v318, %v391
      %v393 = vpop.f32.mrf.mxu0
      %v394 = vadd.f32 %v320, %v393
      %395 = vmatmul.bf16.gmra.mxu0 %v368
      %v396 = vpop.f32.mrf.mxu0
      %v397 = vadd.f32 %v323, %v396
      %v398 = vpop.f32.mrf.mxu0
      %v399 = vadd.f32 %v325, %v398
      %400 = vmatmul.bf16.gmra.mxu0 %v371
      %v401 = vpop.f32.mrf.mxu0
      %v402 = vadd.f32 %v328, %v401
      %v403 = vpop.f32.mrf.mxu0
      %v404 = vadd.f32 %v330, %v403
      %405 = vmatmul.bf16.gmra.mxu0 %v374
      %v406 = vpop.f32.mrf.mxu0
      %v407 = vadd.f32 %v333, %v406
      %v408 = vpop.f32.mrf.mxu0
      %v409 = vadd.f32 %v335, %v408
      %410 = vmatmul.bf16.gmra.mxu0 %v377
      %v411 = vpop.f32.mrf.mxu0
      %v412 = vadd.f32 %v338, %v411
      %v413 = vpop.f32.mrf.mxu0
      %414 = vdwg.mxu0
      %v415 = vld [vmem:[%s230] sm:$0xf]
      %v416 = vld [vmem:[%s230 + $0x4] sm:$0xf]
      %v417 = vld [vmem:[%s230 + $0x8] sm:$0xf]
      %v418 = vld [vmem:[%s230 + $0xc] sm:$0xf]
      %v419 = vld [vmem:[%s230 + $0x10] sm:$0xf]
      %v420 = vld [vmem:[%s230 + $0x14] sm:$0xf]
      %v421 = vld [vmem:[%s230 + $0x18] sm:$0xf]
      %v422 = vld [vmem:[%s230 + $0x1c] sm:$0xf]
      %v423 = vld [vmem:[%s230 + $0x20] sm:$0xf]
      %v424 = vld [vmem:[%s230 + $0x24] sm:$0x1]
      %s425 = scalar_lea.vmem %s1, 4
      %v426 = vld [vmem:[%s425] sm:$0x3]
      %v437 = vunpack.c.l.b16 %v415
      %v438 = vunpack.c.l.b16 %v416
      %v439 = vunpack.c.l.b16 %v417
      %v440 = vunpack.c.l.b16 %v418
      %v441 = vunpack.c.l.b16 %v419
      %v442 = vunpack.c.l.b16 %v420
      %v443 = vunpack.c.l.b16 %v421
      %v444 = vunpack.c.l.b16 %v422
      %v445 = vunpack.c.l.b16 %v423
      %v446 = vunpack.c.l.b16 %v424
      %v447 = vpack.c.b16 %v438, %v437
      %v448 = vpack.c.b16 %v440, %v439
      %v449 = vpack.c.b16 %v442, %v441
      %v450 = vpack.c.b16 %v444, %v443
      %v451 = vpack.c.b16 %v446, %v445
      %vm452 = vsmask.f32 7424
      %v454 = vshrl.u32 %v447, 16
      %v456 = vshll.u32 %v447, 16
      %v458 = vrot.slane %v456, 1
      %v459 = vor.u32 %v454, %v458
      %v461 = vshll.u32 %v448, 16
      %v463 = vrot.slane %v461, 1
      %v464 = vsel %vm452, %v459, %v463
      %v465 = vshrl.u32 %v448, 16
      %v467 = vor.u32 %v465, %v463
      %v469 = vshll.u32 %v449, 16
      %v471 = vrot.slane %v469, 1
      %v472 = vsel %vm452, %v467, %v471
      %v473 = vshrl.u32 %v449, 16
      %v475 = vor.u32 %v473, %v471
      %v477 = vshll.u32 %v450, 16
      %v479 = vrot.slane %v477, 1
      %v480 = vsel %vm452, %v475, %v479
      %v481 = vshrl.u32 %v450, 16
      %v483 = vor.u32 %v481, %v479
      %v485 = vshll.u32 %v451, 16
      %v487 = vrot.slane %v485, 1
      %v488 = vsel %vm452, %v483, %v487
      %v489 = vshrl.u32 %v451, 16
      %v491 = vor.u32 %v489, %v487
      %v493 = vsel %vm288, %v464, 0
      %v496 = vsel %vm288, %v472, 0
      %v499 = vsel %vm288, %v480, 0
      %v502 = vsel %vm288, %v488, 0
      %v505 = vsel %vm288, %v491, 0
      %v508 = vsel %vm304, %v426, 0
      %510 = vmatpush.bf16.msra.mxu0 0
      %511 = vmatpush.bf16.msra.mxu0 0
      %512 = vmatpush.bf16.msra.mxu0 0
      %513 = vmatpush.bf16.msra.mxu0 0
      %514 = vmatpush.bf16.msra.mxu0 0
      %515 = vmatpush.bf16.msra.mxu0 0
      %516 = vmatpush.bf16.msra.mxu0 0
      %517 = vmatpush.bf16.msra.mxu0 %v508
      %518 = vmatmul.bf16.gmra.mxu0 %v493
      %v519 = vpop.f32.mrf.mxu0
      %v520 = vadd.f32 0.0, %v519
      %v521 = vpop.f32.mrf.mxu0
      %v522 = vadd.f32 0.0, %v521
      %523 = vmatmul.bf16.gmra.mxu0 %v496
      %v524 = vpop.f32.mrf.mxu0
      %v525 = vadd.f32 0.0, %v524
      %v526 = vpop.f32.mrf.mxu0
      %v527 = vadd.f32 0.0, %v526
      %528 = vmatmul.bf16.gmra.mxu0 %v499
      %v529 = vpop.f32.mrf.mxu0
      %v530 = vadd.f32 0.0, %v529
      %v531 = vpop.f32.mrf.mxu0
      %v532 = vadd.f32 0.0, %v531
      %533 = vmatmul.bf16.gmra.mxu0 %v502
      %v534 = vpop.f32.mrf.mxu0
      %v535 = vadd.f32 0.0, %v534
      %v536 = vpop.f32.mrf.mxu0
      %v537 = vadd.f32 0.0, %v536
      %538 = vmatmul.bf16.gmra.mxu0 %v505
      %v539 = vpop.f32.mrf.mxu0
      %v540 = vadd.f32 0.0, %v539
      %v541 = vpop.f32.mrf.mxu0
      %542 = vdwg.mxu0
      %v543 = vadd.f32 %v392, %v520
      %v544 = vadd.f32 %v394, %v522
      %v545 = vadd.f32 %v397, %v525
      %v546 = vadd.f32 %v399, %v527
      %v547 = vadd.f32 %v402, %v530
      %v548 = vadd.f32 %v404, %v532
      %v549 = vadd.f32 %v407, %v535
      %v550 = vadd.f32 %v409, %v537
      %v551 = vadd.f32 %v412, %v540
      %s552 = scalar_lea.vmem %s230, 88
      %v553 = vld [vmem:[%s552] sm:$0xf]
      %v554 = vld [vmem:[%s552 + $0x4] sm:$0xf]
      %v555 = vld [vmem:[%s552 + $0x8] sm:$0xf]
      %v556 = vld [vmem:[%s552 + $0xc] sm:$0xf]
      %v557 = vld [vmem:[%s552 + $0x10] sm:$0xf]
      %v558 = vld [vmem:[%s552 + $0x14] sm:$0xf]
      %v559 = vld [vmem:[%s552 + $0x18] sm:$0xf]
      %v560 = vld [vmem:[%s552 + $0x1c] sm:$0xf]
      %v561 = vld [vmem:[%s552 + $0x20] sm:$0xf]
      %s562 = scalar_lea.vmem %s1, 6
      %v563 = vld [vmem:[%s562] sm:$0x3]
      %v573 = vunpack.c.l.b16 %v553
      %v574 = vunpack.c.l.b16 %v554
      %v575 = vunpack.c.l.b16 %v555
      %v576 = vunpack.c.l.b16 %v556
      %v577 = vunpack.c.l.b16 %v557
      %v578 = vunpack.c.l.b16 %v558
      %v579 = vunpack.c.l.b16 %v559
      %v580 = vunpack.c.l.b16 %v560
      %v581 = vunpack.c.l.b16 %v561
      %v582 = vpack.c.b16 %v574, %v573
      %v583 = vpack.c.b16 %v576, %v575
      %v584 = vpack.c.b16 %v578, %v577
      %v585 = vpack.c.b16 %v580, %v579
      %v586 = vpack.c.b16 %v581, %v581
      %v588 = vsel %vm288, %v582, 0
      %v591 = vsel %vm288, %v583, 0
      %v594 = vsel %vm288, %v584, 0
      %v597 = vsel %vm288, %v585, 0
      %v600 = vsel %vm288, %v586, 0
      %v603 = vsel %vm304, %v563, 0
      %605 = vmatpush.bf16.msra.mxu0 0
      %606 = vmatpush.bf16.msra.mxu0 0
      %607 = vmatpush.bf16.msra.mxu0 0
      %608 = vmatpush.bf16.msra.mxu0 0
      %609 = vmatpush.bf16.msra.mxu0 0
      %610 = vmatpush.bf16.msra.mxu0 0
      %611 = vmatpush.bf16.msra.mxu0 0
      %612 = vmatpush.bf16.msra.mxu0 %v603
      %613 = vmatmul.bf16.gmra.mxu0 %v588
      %v614 = vpop.f32.mrf.mxu0
      %v615 = vadd.f32 0.0, %v614
      %v616 = vpop.f32.mrf.mxu0
      %v617 = vadd.f32 0.0, %v616
      %618 = vmatmul.bf16.gmra.mxu0 %v591
      %v619 = vpop.f32.mrf.mxu0
      %v620 = vadd.f32 0.0, %v619
      %v621 = vpop.f32.mrf.mxu0
      %v622 = vadd.f32 0.0, %v621
      %623 = vmatmul.bf16.gmra.mxu0 %v594
      %v624 = vpop.f32.mrf.mxu0
      %v625 = vadd.f32 0.0, %v624
      %v626 = vpop.f32.mrf.mxu0
      %v627 = vadd.f32 0.0, %v626
      %628 = vmatmul.bf16.gmra.mxu0 %v597
      %v629 = vpop.f32.mrf.mxu0
      %v630 = vadd.f32 0.0, %v629
      %v631 = vpop.f32.mrf.mxu0
      %v632 = vadd.f32 0.0, %v631
      %633 = vmatmul.bf16.gmra.mxu0 %v600
      %v634 = vpop.f32.mrf.mxu0
      %v635 = vadd.f32 0.0, %v634
      %v636 = vpop.f32.mrf.mxu0
      %637 = vdwg.mxu0
      %v638 = vadd.f32 %v543, %v615
      %v639 = vadd.f32 %v544, %v617
      %v640 = vadd.f32 %v545, %v620
      %v641 = vadd.f32 %v546, %v622
      %v642 = vadd.f32 %v547, %v625
      %v643 = vadd.f32 %v548, %v627
      %v644 = vadd.f32 %v549, %v630
      %v645 = vadd.f32 %v550, %v632
      %v646 = vadd.f32 %v551, %v635
      %s647 = scalar_lea.vmem %s230, 132
      %v648 = vld [vmem:[%s647] sm:$0xf]
      %v649 = vld [vmem:[%s647 + $0x4] sm:$0xf]
      %v650 = vld [vmem:[%s647 + $0x8] sm:$0xf]
      %v651 = vld [vmem:[%s647 + $0xc] sm:$0xf]
      %v652 = vld [vmem:[%s647 + $0x10] sm:$0xf]
      %v653 = vld [vmem:[%s647 + $0x14] sm:$0xf]
      %v654 = vld [vmem:[%s647 + $0x18] sm:$0xf]
      %v655 = vld [vmem:[%s647 + $0x1c] sm:$0xf]
      %v656 = vld [vmem:[%s647 + $0x20] sm:$0xf]
      %s657 = scalar_lea.vmem %s1, 8
      %v658 = vld [vmem:[%s657] sm:$0x3]
      %v668 = vunpack.c.l.b16 %v648
      %v669 = vunpack.c.l.b16 %v649
      %v670 = vunpack.c.l.b16 %v650
      %v671 = vunpack.c.l.b16 %v651
      %v672 = vunpack.c.l.b16 %v652
      %v673 = vunpack.c.l.b16 %v653
      %v674 = vunpack.c.l.b16 %v654
      %v675 = vunpack.c.l.b16 %v655
      %v676 = vunpack.c.l.b16 %v656
      %v677 = vpack.c.b16 %v669, %v668
      %v678 = vpack.c.b16 %v671, %v670
      %v679 = vpack.c.b16 %v673, %v672
      %v680 = vpack.c.b16 %v675, %v674
      %v681 = vpack.c.b16 %v676, %v676
      %v683 = vsel %vm288, %v677, 0
      %v686 = vsel %vm288, %v678, 0
      %v689 = vsel %vm288, %v679, 0
      %v692 = vsel %vm288, %v680, 0
      %v695 = vsel %vm288, %v681, 0
      %v698 = vsel %vm304, %v658, 0
      %700 = vmatpush.bf16.msra.mxu0 0
      %701 = vmatpush.bf16.msra.mxu0 0
      %702 = vmatpush.bf16.msra.mxu0 0
      %703 = vmatpush.bf16.msra.mxu0 0
      %704 = vmatpush.bf16.msra.mxu0 0
      %705 = vmatpush.bf16.msra.mxu0 0
      %706 = vmatpush.bf16.msra.mxu0 0
      %707 = vmatpush.bf16.msra.mxu0 %v698
      %708 = vmatmul.bf16.gmra.mxu0 %v683
      %v709 = vpop.f32.mrf.mxu0
      %v710 = vadd.f32 0.0, %v709
      %v711 = vpop.f32.mrf.mxu0
      %v712 = vadd.f32 0.0, %v711
      %713 = vmatmul.bf16.gmra.mxu0 %v686
      %v714 = vpop.f32.mrf.mxu0
      %v715 = vadd.f32 0.0, %v714
      %v716 = vpop.f32.mrf.mxu0
      %v717 = vadd.f32 0.0, %v716
      %718 = vmatmul.bf16.gmra.mxu0 %v689
      %v719 = vpop.f32.mrf.mxu0
      %v720 = vadd.f32 0.0, %v719
      %v721 = vpop.f32.mrf.mxu0
      %v722 = vadd.f32 0.0, %v721
      %723 = vmatmul.bf16.gmra.mxu0 %v692
      %v724 = vpop.f32.mrf.mxu0
      %v725 = vadd.f32 0.0, %v724
      %v726 = vpop.f32.mrf.mxu0
      %v727 = vadd.f32 0.0, %v726
      %728 = vmatmul.bf16.gmra.mxu0 %v695
      %v729 = vpop.f32.mrf.mxu0
      %v730 = vadd.f32 0.0, %v729
      %v731 = vpop.f32.mrf.mxu0
      %732 = vdwg.mxu0
      %v733 = vadd.f32 %v638, %v710
      %v734 = vadd.f32 %v639, %v712
      %v735 = vadd.f32 %v640, %v715
      %v736 = vadd.f32 %v641, %v717
      %v737 = vadd.f32 %v642, %v720
      %v738 = vadd.f32 %v643, %v722
      %v739 = vadd.f32 %v644, %v725
      %v740 = vadd.f32 %v645, %v727
      %v741 = vadd.f32 %v646, %v730
      %v742 = vld [vmem:[%s552] sm:$0xf]
      %v743 = vld [vmem:[%s552 + $0x4] sm:$0xf]
      %v744 = vld [vmem:[%s552 + $0x8] sm:$0xf]
      %v745 = vld [vmem:[%s552 + $0xc] sm:$0xf]
      %v746 = vld [vmem:[%s552 + $0x10] sm:$0xf]
      %v747 = vld [vmem:[%s552 + $0x14] sm:$0xf]
      %v748 = vld [vmem:[%s552 + $0x18] sm:$0xf]
      %v749 = vld [vmem:[%s552 + $0x1c] sm:$0xf]
      %v750 = vld [vmem:[%s552 + $0x20] sm:$0xf]
      %v751 = vld [vmem:[%s552 + $0x24] sm:$0x1]
      %s752 = scalar_lea.vmem %s1, 10
      %v753 = vld [vmem:[%s752] sm:$0x3]
      %v764 = vunpack.c.l.b16 %v742
      %v765 = vunpack.c.l.b16 %v743
      %v766 = vunpack.c.l.b16 %v744
      %v767 = vunpack.c.l.b16 %v745
      %v768 = vunpack.c.l.b16 %v746
      %v769 = vunpack.c.l.b16 %v747
      %v770 = vunpack.c.l.b16 %v748
      %v771 = vunpack.c.l.b16 %v749
      %v772 = vunpack.c.l.b16 %v750
      %v773 = vunpack.c.l.b16 %v751
      %v774 = vpack.c.b16 %v765, %v764
      %v775 = vpack.c.b16 %v767, %v766
      %v776 = vpack.c.b16 %v769, %v768
      %v777 = vpack.c.b16 %v771, %v770
      %v778 = vpack.c.b16 %v773, %v772
      %v780 = vshrl.u32 %v774, 16
      %v782 = vshll.u32 %v774, 16
      %v784 = vrot.slane %v782, 1
      %v785 = vor.u32 %v780, %v784
      %v787 = vshll.u32 %v775, 16
      %v789 = vrot.slane %v787, 1
      %v790 = vsel %vm452, %v785, %v789
      %v791 = vshrl.u32 %v775, 16
      %v793 = vor.u32 %v791, %v789
      %v795 = vshll.u32 %v776, 16
      %v797 = vrot.slane %v795, 1
      %v798 = vsel %vm452, %v793, %v797
      %v799 = vshrl.u32 %v776, 16
      %v801 = vor.u32 %v799, %v797
      %v803 = vshll.u32 %v777, 16
      %v805 = vrot.slane %v803, 1
      %v806 = vsel %vm452, %v801, %v805
      %v807 = vshrl.u32 %v777, 16
      %v809 = vor.u32 %v807, %v805
      %v811 = vshll.u32 %v778, 16
      %v813 = vrot.slane %v811, 1
      %v814 = vsel %vm452, %v809, %v813
      %v815 = vshrl.u32 %v778, 16
      %v817 = vor.u32 %v815, %v813
      %v819 = vsel %vm288, %v790, 0
      %v822 = vsel %vm288, %v798, 0
      %v825 = vsel %vm288, %v806, 0
      %v828 = vsel %vm288, %v814, 0
      %v831 = vsel %vm288, %v817, 0
      %v834 = vsel %vm304, %v753, 0
      %836 = vmatpush.bf16.msra.mxu0 0
      %837 = vmatpush.bf16.msra.mxu0 0
      %838 = vmatpush.bf16.msra.mxu0 0
      %839 = vmatpush.bf16.msra.mxu0 0
      %840 = vmatpush.bf16.msra.mxu0 0
      %841 = vmatpush.bf16.msra.mxu0 0
      %842 = vmatpush.bf16.msra.mxu0 0
      %843 = vmatpush.bf16.msra.mxu0 %v834
      %844 = vmatmul.bf16.gmra.mxu0 %v819
      %v845 = vpop.f32.mrf.mxu0
      %v846 = vadd.f32 0.0, %v845
      %v847 = vpop.f32.mrf.mxu0
      %v848 = vadd.f32 0.0, %v847
      %849 = vmatmul.bf16.gmra.mxu0 %v822
      %v850 = vpop.f32.mrf.mxu0
      %v851 = vadd.f32 0.0, %v850
      %v852 = vpop.f32.mrf.mxu0
      %v853 = vadd.f32 0.0, %v852
      %854 = vmatmul.bf16.gmra.mxu0 %v825
      %v855 = vpop.f32.mrf.mxu0
      %v856 = vadd.f32 0.0, %v855
      %v857 = vpop.f32.mrf.mxu0
      %v858 = vadd.f32 0.0, %v857
      %859 = vmatmul.bf16.gmra.mxu0 %v828
      %v860 = vpop.f32.mrf.mxu0
      %v861 = vadd.f32 0.0, %v860
      %v862 = vpop.f32.mrf.mxu0
      %v863 = vadd.f32 0.0, %v862
      %864 = vmatmul.bf16.gmra.mxu0 %v831
      %v865 = vpop.f32.mrf.mxu0
      %v866 = vadd.f32 0.0, %v865
      %v867 = vpop.f32.mrf.mxu0
      %868 = vdwg.mxu0
      %v869 = vadd.f32 %v733, %v846
      %v870 = vadd.f32 %v734, %v848
      %v871 = vadd.f32 %v735, %v851
      %v872 = vadd.f32 %v736, %v853
      %v873 = vadd.f32 %v737, %v856
      %v874 = vadd.f32 %v738, %v858
      %v875 = vadd.f32 %v739, %v861
      %v876 = vadd.f32 %v740, %v863
      %v877 = vadd.f32 %v741, %v866
      %v878 = vld [vmem:[%s230 + $0x4] sm:$0xf]
      %v879 = vld [vmem:[%s230 + $0x8] sm:$0xf]
      %v880 = vld [vmem:[%s230 + $0xc] sm:$0xf]
      %v881 = vld [vmem:[%s230 + $0x10] sm:$0xf]
      %v882 = vld [vmem:[%s230 + $0x14] sm:$0xf]
      %v883 = vld [vmem:[%s230 + $0x18] sm:$0xf]
      %v884 = vld [vmem:[%s230 + $0x1c] sm:$0xf]
      %v885 = vld [vmem:[%s230 + $0x20] sm:$0xf]
      %v886 = vld [vmem:[%s230 + $0x24] sm:$0xf]
      %v887 = vld [vmem:[%s230 + $0x28] sm:$0x1]
      %s888 = scalar_lea.vmem %s1, 12
      %v889 = vld [vmem:[%s888] sm:$0x3]
      %v900 = vunpack.c.l.b16 %v878
      %v901 = vunpack.c.l.b16 %v879
      %v902 = vunpack.c.l.b16 %v880
      %v903 = vunpack.c.l.b16 %v881
      %v904 = vunpack.c.l.b16 %v882
      %v905 = vunpack.c.l.b16 %v883
      %v906 = vunpack.c.l.b16 %v884
      %v907 = vunpack.c.l.b16 %v885
      %v908 = vunpack.c.l.b16 %v886
      %v909 = vunpack.c.l.b16 %v887
      %v910 = vpack.c.b16 %v901, %v900
      %v911 = vpack.c.b16 %v903, %v902
      %v912 = vpack.c.b16 %v905, %v904
      %v913 = vpack.c.b16 %v907, %v906
      %v914 = vpack.c.b16 %v909, %v908
      %v916 = vshrl.u32 %v910, 16
      %v918 = vshll.u32 %v910, 16
      %v920 = vrot.slane %v918, 1
      %v921 = vor.u32 %v916, %v920
      %v923 = vshll.u32 %v911, 16
      %v925 = vrot.slane %v923, 1
      %v926 = vsel %vm452, %v921, %v925
      %v927 = vshrl.u32 %v911, 16
      %v929 = vor.u32 %v927, %v925
      %v931 = vshll.u32 %v912, 16
      %v933 = vrot.slane %v931, 1
      %v934 = vsel %vm452, %v929, %v933
      %v935 = vshrl.u32 %v912, 16
      %v937 = vor.u32 %v935, %v933
      %v939 = vshll.u32 %v913, 16
      %v941 = vrot.slane %v939, 1
      %v942 = vsel %vm452, %v937, %v941
      %v943 = vshrl.u32 %v913, 16
      %v945 = vor.u32 %v943, %v941
      %v947 = vshll.u32 %v914, 16
      %v949 = vrot.slane %v947, 1
      %v950 = vsel %vm452, %v945, %v949
      %v951 = vshrl.u32 %v914, 16
      %v953 = vor.u32 %v951, %v949
      %v955 = vsel %vm288, %v926, 0
      %v958 = vsel %vm288, %v934, 0
      %v961 = vsel %vm288, %v942, 0
      %v964 = vsel %vm288, %v950, 0
      %v967 = vsel %vm288, %v953, 0
      %v970 = vsel %vm304, %v889, 0
      %972 = vmatpush.bf16.msra.mxu0 0
      %973 = vmatpush.bf16.msra.mxu0 0
      %974 = vmatpush.bf16.msra.mxu0 0
      %975 = vmatpush.bf16.msra.mxu0 0
      %976 = vmatpush.bf16.msra.mxu0 0
      %977 = vmatpush.bf16.msra.mxu0 0
      %978 = vmatpush.bf16.msra.mxu0 0
      %979 = vmatpush.bf16.msra.mxu0 %v970
      %980 = vmatmul.bf16.gmra.mxu0 %v955
      %v981 = vpop.f32.mrf.mxu0
      %v982 = vadd.f32 0.0, %v981
      %v983 = vpop.f32.mrf.mxu0
      %v984 = vadd.f32 0.0, %v983
      %985 = vmatmul.bf16.gmra.mxu0 %v958
      %v986 = vpop.f32.mrf.mxu0
      %v987 = vadd.f32 0.0, %v986
      %v988 = vpop.f32.mrf.mxu0
      %v989 = vadd.f32 0.0, %v988
      %990 = vmatmul.bf16.gmra.mxu0 %v961
      %v991 = vpop.f32.mrf.mxu0
      %v992 = vadd.f32 0.0, %v991
      %v993 = vpop.f32.mrf.mxu0
      %v994 = vadd.f32 0.0, %v993
      %995 = vmatmul.bf16.gmra.mxu0 %v964
      %v996 = vpop.f32.mrf.mxu0
      %v997 = vadd.f32 0.0, %v996
      %v998 = vpop.f32.mrf.mxu0
      %v999 = vadd.f32 0.0, %v998
      %1000 = vmatmul.bf16.gmra.mxu0 %v967
      %v1001 = vpop.f32.mrf.mxu0
      %v1002 = vadd.f32 0.0, %v1001
      %v1003 = vpop.f32.mrf.mxu0
      %1004 = vdwg.mxu0
      %v1005 = vadd.f32 %v869, %v982
      %v1006 = vadd.f32 %v870, %v984
      %v1007 = vadd.f32 %v871, %v987
      %v1008 = vadd.f32 %v872, %v989
      %v1009 = vadd.f32 %v873, %v992
      %v1010 = vadd.f32 %v874, %v994
      %v1011 = vadd.f32 %v875, %v997
      %v1012 = vadd.f32 %v876, %v999
      %v1013 = vadd.f32 %v877, %v1002
      %v1014 = vld [vmem:[%s253 + $0x4] sm:$0xf]
      %v1015 = vld [vmem:[%s253 + $0x8] sm:$0xf]
      %v1016 = vld [vmem:[%s253 + $0xc] sm:$0xf]
      %v1017 = vld [vmem:[%s253 + $0x10] sm:$0xf]
      %v1018 = vld [vmem:[%s253 + $0x14] sm:$0xf]
      %v1019 = vld [vmem:[%s253 + $0x18] sm:$0xf]
      %v1020 = vld [vmem:[%s253 + $0x1c] sm:$0xf]
      %v1021 = vld [vmem:[%s253 + $0x20] sm:$0xf]
      %v1022 = vld [vmem:[%s253 + $0x24] sm:$0xf]
      %v1023 = vld [vmem:[%s253 + $0x28] sm:$0x1]
      %s1024 = scalar_lea.vmem %s1, 14
      %v1025 = vld [vmem:[%s1024] sm:$0x3]
      %v1036 = vunpack.c.l.b16 %v1014
      %v1037 = vunpack.c.l.b16 %v1015
      %v1038 = vunpack.c.l.b16 %v1016
      %v1039 = vunpack.c.l.b16 %v1017
      %v1040 = vunpack.c.l.b16 %v1018
      %v1041 = vunpack.c.l.b16 %v1019
      %v1042 = vunpack.c.l.b16 %v1020
      %v1043 = vunpack.c.l.b16 %v1021
      %v1044 = vunpack.c.l.b16 %v1022
      %v1045 = vunpack.c.l.b16 %v1023
      %v1046 = vpack.c.b16 %v1037, %v1036
      %v1047 = vpack.c.b16 %v1039, %v1038
      %v1048 = vpack.c.b16 %v1041, %v1040
      %v1049 = vpack.c.b16 %v1043, %v1042
      %v1050 = vpack.c.b16 %v1045, %v1044
      %v1052 = vshrl.u32 %v1046, 16
      %v1054 = vshll.u32 %v1046, 16
      %v1056 = vrot.slane %v1054, 1
      %v1057 = vor.u32 %v1052, %v1056
      %v1059 = vshll.u32 %v1047, 16
      %v1061 = vrot.slane %v1059, 1
      %v1062 = vsel %vm452, %v1057, %v1061
      %v1063 = vshrl.u32 %v1047, 16
      %v1065 = vor.u32 %v1063, %v1061
      %v1067 = vshll.u32 %v1048, 16
      %v1069 = vrot.slane %v1067, 1
      %v1070 = vsel %vm452, %v1065, %v1069
      %v1071 = vshrl.u32 %v1048, 16
      %v1073 = vor.u32 %v1071, %v1069
      %v1075 = vshll.u32 %v1049, 16
      %v1077 = vrot.slane %v1075, 1
      %v1078 = vsel %vm452, %v1073, %v1077
      %v1079 = vshrl.u32 %v1049, 16
      %v1081 = vor.u32 %v1079, %v1077
      %v1083 = vshll.u32 %v1050, 16
      %v1085 = vrot.slane %v1083, 1
      %v1086 = vsel %vm452, %v1081, %v1085
      %v1087 = vshrl.u32 %v1050, 16
      %v1089 = vor.u32 %v1087, %v1085
      %v1091 = vsel %vm288, %v1062, 0
      %v1094 = vsel %vm288, %v1070, 0
      %v1097 = vsel %vm288, %v1078, 0
      %v1100 = vsel %vm288, %v1086, 0
      %v1103 = vsel %vm288, %v1089, 0
      %v1106 = vsel %vm304, %v1025, 0
      %1108 = vmatpush.bf16.msra.mxu0 0
      %1109 = vmatpush.bf16.msra.mxu0 0
      %1110 = vmatpush.bf16.msra.mxu0 0
      %1111 = vmatpush.bf16.msra.mxu0 0
      %1112 = vmatpush.bf16.msra.mxu0 0
      %1113 = vmatpush.bf16.msra.mxu0 0
      %1114 = vmatpush.bf16.msra.mxu0 0
      %1115 = vmatpush.bf16.msra.mxu0 %v1106
      %1116 = vmatmul.bf16.gmra.mxu0 %v1091
      %v1117 = vpop.f32.mrf.mxu0
      %v1118 = vadd.f32 0.0, %v1117
      %v1119 = vpop.f32.mrf.mxu0
      %v1120 = vadd.f32 0.0, %v1119
      %1121 = vmatmul.bf16.gmra.mxu0 %v1094
      %v1122 = vpop.f32.mrf.mxu0
      %v1123 = vadd.f32 0.0, %v1122
      %v1124 = vpop.f32.mrf.mxu0
      %v1125 = vadd.f32 0.0, %v1124
      %1126 = vmatmul.bf16.gmra.mxu0 %v1097
      %v1127 = vpop.f32.mrf.mxu0
      %v1128 = vadd.f32 0.0, %v1127
      %v1129 = vpop.f32.mrf.mxu0
      %v1130 = vadd.f32 0.0, %v1129
      %1131 = vmatmul.bf16.gmra.mxu0 %v1100
      %v1132 = vpop.f32.mrf.mxu0
      %v1133 = vadd.f32 0.0, %v1132
      %v1134 = vpop.f32.mrf.mxu0
      %v1135 = vadd.f32 0.0, %v1134
      %1136 = vmatmul.bf16.gmra.mxu0 %v1103
      %v1137 = vpop.f32.mrf.mxu0
      %v1138 = vadd.f32 0.0, %v1137
      %v1139 = vpop.f32.mrf.mxu0
      %1140 = vdwg.mxu0
      %v1141 = vadd.f32 %v1005, %v1118
      %v1142 = vadd.f32 %v1006, %v1120
      %v1143 = vadd.f32 %v1007, %v1123
      %v1144 = vadd.f32 %v1008, %v1125
      %v1145 = vadd.f32 %v1009, %v1128
      %v1146 = vadd.f32 %v1010, %v1130
      %v1147 = vadd.f32 %v1011, %v1133
      %v1148 = vadd.f32 %v1012, %v1135
      %v1149 = vadd.f32 %v1013, %v1138
      %v1150 = vld [vmem:[%s230 + $0x4] sm:$0xe]
      %s1151 = scalar_lea.vmem %s1, 16
      %v1152 = vld [vmem:[%s1151] sm:$0x3]
      %v1154 = vunpack.c.l.b16 %v1150
      %v1155 = vpack.c.b16 %v901, %v1154
      %vm1156 = vcmask 1046528
      %v1157 = vrot.slane %v1155, 1
      %v1158 = vrot.slane %v911, 1
      %v1159 = vsel %vm1156, %v1157, %v1158
      %v1160 = vrot.slane %v912, 1
      %v1161 = vsel %vm1156, %v1158, %v1160
      %v1162 = vrot.slane %v913, 1
      %v1163 = vsel %vm1156, %v1160, %v1162
      %v1164 = vrot.slane %v914, 1
      %v1165 = vsel %vm1156, %v1162, %v1164
      %v1167 = vsel %vm288, %v1159, 0
      %v1170 = vsel %vm288, %v1161, 0
      %v1173 = vsel %vm288, %v1163, 0
      %v1176 = vsel %vm288, %v1165, 0
      %v1179 = vsel %vm288, %v1164, 0
      %v1182 = vsel %vm304, %v1152, 0
      %1184 = vmatpush.bf16.msra.mxu0 0
      %1185 = vmatpush.bf16.msra.mxu0 0
      %1186 = vmatpush.bf16.msra.mxu0 0
      %1187 = vmatpush.bf16.msra.mxu0 0
      %1188 = vmatpush.bf16.msra.mxu0 0
      %1189 = vmatpush.bf16.msra.mxu0 0
      %1190 = vmatpush.bf16.msra.mxu0 0
      %1191 = vmatpush.bf16.msra.mxu0 %v1182
      %1192 = vmatmul.bf16.gmra.mxu0 %v1167
      %v1193 = vpop.f32.mrf.mxu0
      %v1194 = vadd.f32 0.0, %v1193
      %v1195 = vpop.f32.mrf.mxu0
      %v1196 = vadd.f32 0.0, %v1195
      %1197 = vmatmul.bf16.gmra.mxu0 %v1170
      %v1198 = vpop.f32.mrf.mxu0
      %v1199 = vadd.f32 0.0, %v1198
      %v1200 = vpop.f32.mrf.mxu0
      %v1201 = vadd.f32 0.0, %v1200
      %1202 = vmatmul.bf16.gmra.mxu0 %v1173
      %v1203 = vpop.f32.mrf.mxu0
      %v1204 = vadd.f32 0.0, %v1203
      %v1205 = vpop.f32.mrf.mxu0
      %v1206 = vadd.f32 0.0, %v1205
      %1207 = vmatmul.bf16.gmra.mxu0 %v1176
      %v1208 = vpop.f32.mrf.mxu0
      %v1209 = vadd.f32 0.0, %v1208
      %v1210 = vpop.f32.mrf.mxu0
      %v1211 = vadd.f32 0.0, %v1210
      %1212 = vmatmul.bf16.gmra.mxu0 %v1179
      %v1213 = vpop.f32.mrf.mxu0
      %v1214 = vadd.f32 0.0, %v1213
      %v1215 = vpop.f32.mrf.mxu0
      %1216 = vdwg.mxu0
      %v1217 = vadd.f32 %v1141, %v1194
      %v1218 = vadd.f32 %v1142, %v1196
      %v1219 = vadd.f32 %v1143, %v1199
      %v1220 = vadd.f32 %v1144, %v1201
      %v1221 = vadd.f32 %v1145, %v1204
      %v1222 = vadd.f32 %v1146, %v1206
      %v1223 = vadd.f32 %v1147, %v1209
      %v1224 = vadd.f32 %v1148, %v1211
      %v1225 = vadd.f32 %v1149, %v1214
      %v1226 = vpack.c.bf16 %v1217, %v1217
      %v1227 = vpack.c.bf16 %v1218, %v1218
      %v1228 = vpack.c.bf16 %v1219, %v1219
      %v1229 = vpack.c.bf16 %v1220, %v1220
      %v1230 = vpack.c.bf16 %v1221, %v1221
      %v1231 = vpack.c.bf16 %v1222, %v1222
      %v1232 = vpack.c.bf16 %v1223, %v1223
      %v1233 = vpack.c.bf16 %v1224, %v1224
      %v1234 = vpack.c.bf16 %v1225, %v1225
      %vm1235 = vcmask 519168
      %1236 = vst.msk [vmem:[%s235] sm:$0xf] %vm1235, %v1226
      %1237 = vst.msk [vmem:[%s235 + $0x4] sm:$0xf] %vm1235, %v1227
      %1238 = vst.msk [vmem:[%s235 + $0x8] sm:$0xf] %vm1235, %v1228
      %1239 = vst.msk [vmem:[%s235 + $0xc] sm:$0xf] %vm1235, %v1229
      %1240 = vst.msk [vmem:[%s235 + $0x10] sm:$0xf] %vm1235, %v1230
      %1241 = vst.msk [vmem:[%s235 + $0x14] sm:$0xf] %vm1235, %v1231
      %1242 = vst.msk [vmem:[%s235 + $0x18] sm:$0xf] %vm1235, %v1232
      %1243 = vst.msk [vmem:[%s235 + $0x1c] sm:$0xf] %vm1235, %v1233
      %1244 = vst.msk [vmem:[%s235 + $0x20] sm:$0xf] %vm1235, %v1234
      %v1245 = vld [vmem:[%s2] sm:$0xff]
      %v1246 = vld [vmem:[%s2 + $0x8] sm:$0xff]
      %v1247 = vld [vmem:[%s2 + $0x10] sm:$0xff]
      %v1248 = vld [vmem:[%s2 + $0x18] sm:$0xff]
      %v1249 = vld [vmem:[%s2 + $0x20] sm:$0xff]
      %v1250 = vld [vmem:[%s2 + $0x28] sm:$0xff]
      %v1251 = vld [vmem:[%s2 + $0x30] sm:$0xff]
      %v1252 = vld [vmem:[%s2 + $0x38] sm:$0xff]
      %v1253 = vld [vmem:[%s2 + $0x40] sm:$0xff]
      %1255 = vset.pattern.permute.xlu0 0
      %1256 = vperm.xlu0 %1255, %v1245
      %v1257 = vpop.permute.xlu0 %1256
      %1260 = vset.pattern.permute.xlu0 0
      %1261 = vperm.xlu0 %1260, %v1246
      %v1262 = vpop.permute.xlu0 %1261
      %1265 = vset.pattern.permute.xlu0 0
      %1266 = vperm.xlu0 %1265, %v1247
      %v1267 = vpop.permute.xlu0 %1266
      %1270 = vset.pattern.permute.xlu0 0
      %1271 = vperm.xlu0 %1270, %v1248
      %v1272 = vpop.permute.xlu0 %1271
      %1275 = vset.pattern.permute.xlu0 0
      %1276 = vperm.xlu0 %1275, %v1249
      %v1277 = vpop.permute.xlu0 %1276
      %1280 = vset.pattern.permute.xlu0 0
      %1281 = vperm.xlu0 %1280, %v1250
      %v1282 = vpop.permute.xlu0 %1281
      %1285 = vset.pattern.permute.xlu0 0
      %1286 = vperm.xlu0 %1285, %v1251
      %v1287 = vpop.permute.xlu0 %1286
      %1290 = vset.pattern.permute.xlu0 0
      %1291 = vperm.xlu0 %1290, %v1252
      %v1292 = vpop.permute.xlu0 %1291
      %1295 = vset.pattern.permute.xlu0 0
      %1296 = vperm.xlu0 %1295, %v1253
      %v1297 = vpop.permute.xlu0 %1296
      %v1299 = vmul.f32 %v1217, %v1257
      %v1300 = vmul.f32 %v1218, %v1262
      %v1301 = vmul.f32 %v1219, %v1267
      %v1302 = vmul.f32 %v1220, %v1272
      %v1303 = vmul.f32 %v1221, %v1277
      %v1304 = vmul.f32 %v1222, %v1282
      %v1305 = vmul.f32 %v1223, %v1287
      %v1306 = vmul.f32 %v1224, %v1292
      %v1307 = vmul.f32 %v1225, %v1297
      %vm1308 = vcmask 523264
      %v1309 = vsel %vm1308, %v1299, 0.0
      %v1310 = vsel %vm1308, %v1300, 0.0
      %v1311 = vadd.f32 %v1309, %v1310
      %v1312 = vsel %vm1308, %v1301, 0.0
      %v1313 = vadd.f32 %v1311, %v1312
      %v1314 = vsel %vm1308, %v1302, 0.0
      %v1315 = vadd.f32 %v1313, %v1314
      %v1316 = vsel %vm1308, %v1303, 0.0
      %v1317 = vadd.f32 %v1315, %v1316
      %v1318 = vsel %vm1308, %v1304, 0.0
      %v1319 = vadd.f32 %v1317, %v1318
      %v1320 = vsel %vm1308, %v1305, 0.0
      %v1321 = vadd.f32 %v1319, %v1320
      %v1322 = vsel %vm1308, %v1306, 0.0
      %v1323 = vadd.f32 %v1321, %v1322
      %v1324 = vsel %vm1308, %v1307, 0.0
      %v1325 = vadd.f32 %v1323, %v1324
      %v1326 = vrot.slane %v1325, 4
      %v1327 = vadd.f32 %v1325, %v1326
      %v1328 = vrot.slane %v1327, 2
      %v1329 = vadd.f32 %v1327, %v1328
      %v1330 = vrot.slane %v1329, 1
      %v1331 = vadd.f32 %v1329, %v1330
      %vm1332 = vcmask 516096
      %1333 = vst.msk [vmem:[%s238] sm:$0x1] %vm1332, %v1331
      %v1334 = vmul.f32 %v1299, %v1217
      %v1335 = vmul.f32 %v1300, %v1218
      %v1336 = vmul.f32 %v1301, %v1219
      %v1337 = vmul.f32 %v1302, %v1220
      %v1338 = vmul.f32 %v1303, %v1221
      %v1339 = vmul.f32 %v1304, %v1222
      %v1340 = vmul.f32 %v1305, %v1223
      %v1341 = vmul.f32 %v1306, %v1224
      %v1342 = vmul.f32 %v1307, %v1225
      %v1343 = vsel %vm1308, %v1334, 0.0
      %v1344 = vsel %vm1308, %v1335, 0.0
      %v1345 = vadd.f32 %v1343, %v1344
      %v1346 = vsel %vm1308, %v1336, 0.0
      %v1347 = vadd.f32 %v1345, %v1346
      %v1348 = vsel %vm1308, %v1337, 0.0
      %v1349 = vadd.f32 %v1347, %v1348
      %v1350 = vsel %vm1308, %v1338, 0.0
      %v1351 = vadd.f32 %v1349, %v1350
      %v1352 = vsel %vm1308, %v1339, 0.0
      %v1353 = vadd.f32 %v1351, %v1352
      %v1354 = vsel %vm1308, %v1340, 0.0
      %v1355 = vadd.f32 %v1353, %v1354
      %v1356 = vsel %vm1308, %v1341, 0.0
      %v1357 = vadd.f32 %v1355, %v1356
      %v1358 = vsel %vm1308, %v1342, 0.0
      %v1359 = vadd.f32 %v1357, %v1358
      %v1360 = vrot.slane %v1359, 4
      %v1361 = vadd.f32 %v1359, %v1360
      %v1362 = vrot.slane %v1361, 2
      %v1363 = vadd.f32 %v1361, %v1362
      %v1364 = vrot.slane %v1363, 1
      %v1365 = vadd.f32 %v1363, %v1364
      %1366 = vst.msk [vmem:[%s241] sm:$0x1] %vm1332, %v1365
      %p1367 = scmp.lt.s32.totalorder %s17, 1
      %s1368 = scalar_select %p1367, %s17, 1
      %s1369 = smul.addr %s1368, 9
      %s1370 = smul.addr %s1369, 4
      %s1371 = scalar_lea.vmem %s3, %s1370
      %p1372 = scmp.lt.s32.totalorder %s17, 1
      %s1373 = scalar_select %p1372, %s17, 1
      %s1374 = scalar_lea.vmem %s4, %s1373
      %p1375 = scmp.lt.s32.totalorder %s17, 1
      %s1376 = scalar_select %p1375, %s17, 1
      %s1377 = scalar_lea.vmem %s5, %s1376
      // Predicated region
      $region33: #{forward.7} parent=31 // pred_check
        %p1378 = pneg %p103
      $region34: #{forward.7} parent=31 // pred_check_branch
        %1380 = sbr.rel (%p1378) target = $region36
      $region35: #{forward.7} parent=31 // pred_region
        _
      $region36: #{forward.7} parent=31 // pred_fallthru
        _
      // Predicated region
      $region37: #{forward.7} parent=31 // pred_check
        %p1381 = pneg %p129
      $region38: #{forward.7} parent=31 // pred_check_branch
        %1383 = sbr.rel (%p1381) target = $region40
      $region39: #{forward.7} parent=31 // pred_region
        _
      $region40: #{forward.7} parent=31 // pred_fallthru
        _
      // Predicated region
      $region41: #{forward.7} parent=31 // pred_check
        %p1384 = pneg %p155
      $region42: #{forward.7} parent=31 // pred_check_branch
        %1386 = sbr.rel (%p1384) target = $region44
      $region43: #{forward.7} parent=31 // pred_region
        _
      $region44: #{forward.7} parent=31 // pred_fallthru
        _
    $region32: #{forward.7} parent=5 // pred_fallthru
      _
    %p1387 = scmp.le.s32.totalorder 2, %s12
    // Predicated region
    $region45: #{forward.7} parent=5 // pred_check
      %p1388 = pneg %p1387
    $region46: #{forward.7} parent=5 // pred_check_branch
      %1390 = sbr.rel (%p1388) target = $region48
    $region47: #{forward.7} parent=5 // pred_region
      %s1391 = ssub.s32 %s12, 2
      // Predicated region
      $region49: #{forward.7} parent=47 // pred_check
        %p1392 = pneg %p109
      $region50: #{forward.7} parent=47 // pred_check_branch
        %1394 = sbr.rel (%p1392) target = $region52
      $region51: #{forward.7} parent=47 // pred_region
        %p1395 = scmp.lt.s32.totalorder %s18, 1
        %s1396 = scalar_select %p1395, %s18, 1
        %s1397 = smul.addr %s1396, 9
        %s1398 = smul.addr %s1397, 4
        %s1399 = scalar_lea.vmem %s3, %s1398
      $region52: #{forward.7} parent=47 // pred_fallthru
        _
      // Predicated region
      $region53: #{forward.7} parent=47 // pred_check
        %p1400 = pneg %p135
      $region54: #{forward.7} parent=47 // pred_check_branch
        %1402 = sbr.rel (%p1400) target = $region56
      $region55: #{forward.7} parent=47 // pred_region
        %p1403 = scmp.lt.s32.totalorder %s18, 1
        %s1404 = scalar_select %p1403, %s18, 1
        %s1405 = scalar_lea.vmem %s4, %s1404
      $region56: #{forward.7} parent=47 // pred_fallthru
        _
      // Predicated region
      $region57: #{forward.7} parent=47 // pred_check
        %p1406 = pneg %p161
      $region58: #{forward.7} parent=47 // pred_check_branch
        %1408 = sbr.rel (%p1406) target = $region60
      $region59: #{forward.7} parent=47 // pred_region
        %p1409 = scmp.lt.s32.totalorder %s18, 1
        %s1410 = scalar_select %p1409, %s18, 1
        %s1411 = scalar_lea.vmem %s5, %s1410
      $region60: #{forward.7} parent=47 // pred_fallthru
        _
    $region48: #{forward.7} parent=5 // pred_fallthru
      _
  $region6: #{forward.7} parent=0 // loop_footer
    %s16 = sadd.s32 1, %s12
  $region7: #{forward.7} parent=0 // loop_footer_branch
    %11 = sbr.rel target = $region3
  $region8: #{forward.7} parent=0 // loop_exit
    _

// kernel: forward.9
$region0: #{forward.9}
  #allocation0 [shape = 'u32[]', space=smem, size = 0x4, offset = 0x4, fixed_abs, tag = 'smem constant byte address 0x4 - core index']
  #allocation1 [shape = 'u32[72,128]{1,0:T(1,128)}', space=vmem, size = 0x9000, scoped, tag = 'internal scratch']
  %s0 = inlined_call_operand.vmem [shape: bf16[128,4], index: 0, kind: input, shape index: {}]
  %s1 = inlined_call_operand.vmem [shape: bf16[4,64], index: 1, kind: input, shape index: {}]
  %s2 = inlined_call_operand.vmem [shape: bf16[128,64], index: 2, kind: output, shape index: {0}]
  %s3 = inlined_call_operand.vmem [shape: f32[2,1,64], index: 3, kind: output, shape index: {1}]
  %s4 = inlined_call_operand.vmem [shape: f32[2,1,64], index: 4, kind: output, shape index: {2}]
  %5 = xla_tuple %s2, %s3, %s4
  %s6 = sld [smem:[#allocation0]]
  $region57: #{forward.9} parent=0
    _
  %s8 = ssub.s32 1, %s6
  %s9 = scalar_select 0, %s8, %s6
  loop: start=0, step=1, limit=4
  $region2: #{forward.9} parent=0 // loop_pre_header
    _
  $region3: #{forward.9} parent=0 // loop_header
    %s11 = sphi 0, %s15
    %p12 = scmp.ge.s32.totalorder %s11, 4
    %s21 = sphi 0, %s23
    %s24 = sphi 0, %s21
    %s25 = sphi 0, %s24
    %s41 = sphi 0, %s25
    %s45 = sphi 0, %s45
    %s47 = sphi 0, %s45
    %s48 = sphi 0, %s47
    %s62 = sphi 0, %s48
    %s68 = sphi 0, %s70
    %s71 = sphi 0, %s68
    %s72 = sphi 0, %s71
    %s88 = sphi 0, %s72
    %s94 = sphi 0, %s96
    %s97 = sphi 0, %s94
    %s98 = sphi 0, %s97
    %s114 = sphi 0, %s98
    %s120 = sphi 0, %s122
    %s123 = sphi 0, %s120
    %s124 = sphi 0, %s123
    %s140 = sphi 0, %s124
  $region4: #{forward.9} parent=0 // loop_header_branch
    %14 = sbr.rel (%p12) target = $region8
  $region5: #{forward.9} parent=0 // loop_body
    %s16 = ssub.s32 %s11, 1
    %s17 = ssub.s32 %s11, 2
    %s18 = sadd.s32 %s11, 1
    %s19 = ssub.s32 %s11, %s18
    %p20 = scmp.eq.s32.totalorder %s19, 0
    %s22 = sadd.s32 %s21, 1
    %s23 = scalar_select %p20, %s21, %s22
    %p26 = pneg %p20
    %p27 = scmp.eq.s32.totalorder %s11, 1
    %p28 = por %p26, %p27
    %p29 = scmp.ne.s32.totalorder %s21, %s24
    %p30 = scmp.eq.s32.totalorder %s11, 0
    %p31 = por %p29, %p30
    %p32 = scmp.ne.s32.totalorder %s21, %s24
    %p33 = scmp.eq.s32.totalorder %s16, 1
    %p34 = por %p32, %p33
    %p35 = scmp.ne.s32.totalorder %s24, %s25
    %p36 = scmp.eq.s32.totalorder %s16, 0
    %p37 = por %p35, %p36
    %p38 = scmp.ne.s32.totalorder %s24, %s25
    %p39 = scmp.eq.s32.totalorder %s17, 1
    %p40 = por %p38, %p39
    %p42 = scmp.ne.s32.totalorder %s25, %s41
    %p43 = scmp.eq.s32.totalorder %s17, 0
    %p44 = por %p42, %p43
    %s46 = sadd.s32 %s45, 1
    %p49 = scmp.eq.s32.totalorder %s11, 1
    %p50 = scmp.ne.s32.totalorder %s45, %s47
    %p51 = scmp.eq.s32.totalorder %s11, 0
    %p52 = por %p50, %p51
    %p53 = scmp.ne.s32.totalorder %s45, %s47
    %p54 = scmp.eq.s32.totalorder %s16, 1
    %p55 = por %p53, %p54
    %p56 = scmp.ne.s32.totalorder %s47, %s48
    %p57 = scmp.eq.s32.totalorder %s16, 0
    %p58 = por %p56, %p57
    %p59 = scmp.ne.s32.totalorder %s47, %s48
    %p60 = scmp.eq.s32.totalorder %s17, 1
    %p61 = por %p59, %p60
    %p63 = scmp.ne.s32.totalorder %s48, %s62
    %p64 = scmp.eq.s32.totalorder %s17, 0
    %p65 = por %p63, %p64
    %s66 = ssub.s32 %s11, %s18
    %p67 = scmp.eq.s32.totalorder %s66, 0
    %s69 = sadd.s32 %s68, 1
    %s70 = scalar_select %p67, %s68, %s69
    %p73 = pneg %p67
    %p74 = scmp.eq.s32.totalorder %s11, 1
    %p75 = por %p73, %p74
    %p76 = scmp.ne.s32.totalorder %s68, %s71
    %p77 = scmp.eq.s32.totalorder %s11, 0
    %p78 = por %p76, %p77
    %p79 = scmp.ne.s32.totalorder %s68, %s71
    %p80 = scmp.eq.s32.totalorder %s16, 1
    %p81 = por %p79, %p80
    %p82 = scmp.ne.s32.totalorder %s71, %s72
    %p83 = scmp.eq.s32.totalorder %s16, 0
    %p84 = por %p82, %p83
    %p85 = scmp.ne.s32.totalorder %s71, %s72
    %p86 = scmp.eq.s32.totalorder %s17, 1
    %p87 = por %p85, %p86
    %p89 = scmp.ne.s32.totalorder %s72, %s88
    %p90 = scmp.eq.s32.totalorder %s17, 0
    %p91 = por %p89, %p90
    %s92 = ssub.s32 %s11, %s18
    %p93 = scmp.eq.s32.totalorder %s92, 0
    %s95 = sadd.s32 %s94, 1
    %s96 = scalar_select %p93, %s94, %s95
    %p99 = pneg %p93
    %p100 = scmp.eq.s32.totalorder %s11, 1
    %p101 = por %p99, %p100
    %p102 = scmp.ne.s32.totalorder %s94, %s97
    %p103 = scmp.eq.s32.totalorder %s11, 0
    %p104 = por %p102, %p103
    %p105 = scmp.ne.s32.totalorder %s94, %s97
    %p106 = scmp.eq.s32.totalorder %s16, 1
    %p107 = por %p105, %p106
    %p108 = scmp.ne.s32.totalorder %s97, %s98
    %p109 = scmp.eq.s32.totalorder %s16, 0
    %p110 = por %p108, %p109
    %p111 = scmp.ne.s32.totalorder %s97, %s98
    %p112 = scmp.eq.s32.totalorder %s17, 1
    %p113 = por %p111, %p112
    %p115 = scmp.ne.s32.totalorder %s98, %s114
    %p116 = scmp.eq.s32.totalorder %s17, 0
    %p117 = por %p115, %p116
    %s118 = ssub.s32 %s11, %s18
    %p119 = scmp.eq.s32.totalorder %s118, 0
    %s121 = sadd.s32 %s120, 1
    %s122 = scalar_select %p119, %s120, %s121
    %p125 = pneg %p119
    %p126 = scmp.eq.s32.totalorder %s11, 1
    %p127 = por %p125, %p126
    %p128 = scmp.ne.s32.totalorder %s120, %s123
    %p129 = scmp.eq.s32.totalorder %s11, 0
    %p130 = por %p128, %p129
    %p131 = scmp.ne.s32.totalorder %s120, %s123
    %p132 = scmp.eq.s32.totalorder %s16, 1
    %p133 = por %p131, %p132
    %p134 = scmp.ne.s32.totalorder %s123, %s124
    %p135 = scmp.eq.s32.totalorder %s16, 0
    %p136 = por %p134, %p135
    %p137 = scmp.ne.s32.totalorder %s123, %s124
    %p138 = scmp.eq.s32.totalorder %s17, 1
    %p139 = por %p137, %p138
    %p141 = scmp.ne.s32.totalorder %s124, %s140
    %p142 = scmp.eq.s32.totalorder %s17, 0
    %p143 = por %p141, %p142
    %p144 = scmp.le.s32.totalorder 1, %s11
    %p145 = scmp.lt.s32.totalorder %s11, 3
    %p146 = pnand %p144, %p145
    %p147 = pneg %p146
    // Predicated region
    $region9: #{forward.9} parent=5 // pred_check
      _
    $region10: #{forward.9} parent=5 // pred_check_branch
      %149 = sbr.rel (%p146) target = $region12
    $region11: #{forward.9} parent=5 // pred_region
      %s150 = ssub.s32 %s11, 1
      // Predicated region
      $region13: #{forward.9} parent=11 // pred_check
        %p151 = pneg %p58
      $region14: #{forward.9} parent=11 // pred_check_branch
        %153 = sbr.rel (%p151) target = $region16
      $region15: #{forward.9} parent=11 // pred_region
        _
      $region16: #{forward.9} parent=11 // pred_fallthru
        _
    $region12: #{forward.9} parent=5 // pred_fallthru
      _
    %p154 = scmp.lt.s32.totalorder %s11, 2
    // Predicated region
    $region17: #{forward.9} parent=5 // pred_check
      %p155 = pneg %p154
    $region18: #{forward.9} parent=5 // pred_check_branch
      %157 = sbr.rel (%p155) target = $region20
    $region19: #{forward.9} parent=5 // pred_region
      // Predicated region
      $region21: #{forward.9} parent=19 // pred_check
        %p158 = pneg %p31
      $region22: #{forward.9} parent=19 // pred_check_branch
        %160 = sbr.rel (%p158) target = $region24
      $region23: #{forward.9} parent=19 // pred_region
        %s161 = smul.u32 8, %s11
        %p162 = scmp.lt.s32.totalorder %s161, 15
        %s163 = scalar_select %p162, %s161, 15
        %s164 = smul.addr %s163, 4
        %s165 = scalar_lea.vmem %s0, %s164
        %s166 = smul.u32 8, %s11
      $region24: #{forward.9} parent=19 // pred_fallthru
        _
    $region20: #{forward.9} parent=5 // pred_fallthru
      _
    %p167 = scmp.le.s32.totalorder 1, %s11
    %p168 = scmp.lt.s32.totalorder %s11, 3
    %p169 = pnand %p167, %p168
    %p170 = pneg %p169
    // Predicated region
    $region25: #{forward.9} parent=5 // pred_check
      _
    $region26: #{forward.9} parent=5 // pred_check_branch
      %172 = sbr.rel (%p169) target = $region28
    $region27: #{forward.9} parent=5 // pred_region
      %s173 = ssub.s32 %s11, 1
      %s174 = smul.u32 8, %s16
      %p175 = scmp.lt.s32.totalorder %s174, 15
      %s176 = scalar_select %p175, %s174, 15
      %s177 = smul.addr %s176, 4
      %s178 = scalar_lea.vmem %s0, %s177
      %p179 = pneg %p37
      %p180 = pneg %p34
      %p181 = pneg %p58
      %p182 = pneg %p55
      %p183 = pneg %p84
      %p184 = pneg %p81
      %s185 = smul.u32 8, %s16
      %p186 = scmp.lt.s32.totalorder %s185, 15
      %s187 = scalar_select %p186, %s185, 15
      %s188 = smul.addr %s187, 4
      %s189 = scalar_lea.vmem %s2, %s188
      %p190 = pneg %p110
      %p191 = pneg %p107
      %p192 = scmp.lt.s32.totalorder %s16, 1
      %s193 = scalar_select %p192, %s16, 1
      %s194 = scalar_lea.vmem %s3, %s193
      %p195 = pneg %p136
      %p196 = pneg %p133
      %p197 = scmp.lt.s32.totalorder %s16, 1
      %s198 = scalar_select %p197, %s16, 1
      %s199 = scalar_lea.vmem %s4, %s198
      %s200 = smul.u32 8, %s16
      %p201 = scmp.lt.s32.totalorder %s200, 15
      %s202 = scalar_select %p201, %s200, 15
      %s203 = smul.addr %s202, 4
      %s204 = scalar_lea.vmem %s0, %s203
      %s205 = smul.u32 8, %s16
      %s206 = smul.u32 8, %s16
      %p207 = scmp.lt.s32.totalorder %s206, 15
      %s208 = scalar_select %p207, %s206, 15
      %s209 = smul.addr %s208, 4
      %s210 = scalar_lea.vmem %s2, %s209
      %s211 = smul.u32 8, %s16
      %p212 = scmp.lt.s32.totalorder %s16, 1
      %s213 = scalar_select %p212, %s16, 1
      %s214 = scalar_lea.vmem %s3, %s213
      %p215 = scmp.lt.s32.totalorder %s16, 1
      %s216 = scalar_select %p215, %s16, 1
      %s217 = scalar_lea.vmem %s4, %s216
      %v219 = vld [vmem:[%s204] sm:$0xf]
      %v220 = vld [vmem:[%s204 + $0x4] sm:$0xf]
      %v221 = vld [vmem:[%s204 + $0x8] sm:$0xf]
      %v222 = vld [vmem:[%s204 + $0xc] sm:$0xf]
      %v223 = vld [vmem:[%s204 + $0x10] sm:$0xf]
      %v224 = vld [vmem:[%s204 + $0x14] sm:$0xf]
      %v225 = vld [vmem:[%s204 + $0x18] sm:$0xf]
      %v226 = vld [vmem:[%s204 + $0x1c] sm:$0xf]
      %v227 = vld [vmem:[%s1] sm:$0x3]
      %v236 = vunpack.c.l.b16 %v219
      %v237 = vunpack.c.l.b16 %v220
      %v238 = vunpack.c.l.b16 %v221
      %v239 = vunpack.c.l.b16 %v222
      %v240 = vunpack.c.l.b16 %v223
      %v241 = vunpack.c.l.b16 %v224
      %v242 = vunpack.c.l.b16 %v225
      %v243 = vunpack.c.l.b16 %v226
      %v244 = vpack.c.b16 %v237, %v236
      %v245 = vpack.c.b16 %v239, %v238
      %v246 = vpack.c.b16 %v241, %v240
      %v247 = vpack.c.b16 %v243, %v242
      %vm248 = vcmask 31744
      %v250 = vsel %vm248, %v244, 0
      %v253 = vsel %vm248, %v245, 0
      %v256 = vsel %vm248, %v246, 0
      %v259 = vsel %vm248, %v247, 0
      %vm261 = vcmask 1041408
      %v263 = vsel %vm261, %v227, 0
      %265 = vmatpush.bf16.msra.mxu0 0
      %266 = vmatpush.bf16.msra.mxu0 0
      %267 = vmatpush.bf16.msra.mxu0 0
      %268 = vmatpush.bf16.msra.mxu0 0
      %269 = vmatpush.bf16.msra.mxu0 0
      %270 = vmatpush.bf16.msra.mxu0 0
      %271 = vmatpush.bf16.msra.mxu0 0
      %272 = vmatpush.bf16.msra.mxu0 %v263
      %273 = vmatmul.bf16.gmra.mxu0 %v250
      %v274 = vpop.f32.mrf.mxu0
      %v275 = vadd.f32 0.0, %v274
      %v276 = vpop.f32.mrf.mxu0
      %v277 = vadd.f32 0.0, %v276
      %278 = vmatmul.bf16.gmra.mxu0 %v253
      %v279 = vpop.f32.mrf.mxu0
      %v280 = vadd.f32 0.0, %v279
      %v281 = vpop.f32.mrf.mxu0
      %v282 = vadd.f32 0.0, %v281
      %283 = vmatmul.bf16.gmra.mxu0 %v256
      %v284 = vpop.f32.mrf.mxu0
      %v285 = vadd.f32 0.0, %v284
      %v286 = vpop.f32.mrf.mxu0
      %v287 = vadd.f32 0.0, %v286
      %288 = vmatmul.bf16.gmra.mxu0 %v259
      %v289 = vpop.f32.mrf.mxu0
      %v290 = vadd.f32 0.0, %v289
      %v291 = vpop.f32.mrf.mxu0
      %v292 = vadd.f32 0.0, %v291
      %293 = vdwg.mxu0
      %v294 = vpack.c.bf16 %v275, %v275
      %v295 = vpack.c.bf16 %v277, %v277
      %v296 = vpack.c.bf16 %v280, %v280
      %v297 = vpack.c.bf16 %v282, %v282
      %v298 = vpack.c.bf16 %v285, %v285
      %v299 = vpack.c.bf16 %v287, %v287
      %v300 = vpack.c.bf16 %v290, %v290
      %v301 = vpack.c.bf16 %v292, %v292
      %vm302 = vcmask 519168
      %303 = vst.msk [vmem:[%s210] sm:$0xf] %vm302, %v294
      %304 = vst.msk [vmem:[%s210 + $0x4] sm:$0xf] %vm302, %v295
      %305 = vst.msk [vmem:[%s210 + $0x8] sm:$0xf] %vm302, %v296
      %306 = vst.msk [vmem:[%s210 + $0xc] sm:$0xf] %vm302, %v297
      %307 = vst.msk [vmem:[%s210 + $0x10] sm:$0xf] %vm302, %v298
      %308 = vst.msk [vmem:[%s210 + $0x14] sm:$0xf] %vm302, %v299
      %309 = vst.msk [vmem:[%s210 + $0x18] sm:$0xf] %vm302, %v300
      %310 = vst.msk [vmem:[%s210 + $0x1c] sm:$0xf] %vm302, %v301
      %vm311 = vcmask 523264
      %v312 = vsel %vm311, %v275, 0.0
      %v313 = vsel %vm311, %v277, 0.0
      %v314 = vadd.f32 %v312, %v313
      %v315 = vsel %vm311, %v280, 0.0
      %v316 = vadd.f32 %v314, %v315
      %v317 = vsel %vm311, %v282, 0.0
      %v318 = vadd.f32 %v316, %v317
      %v319 = vsel %vm311, %v285, 0.0
      %v320 = vadd.f32 %v318, %v319
      %v321 = vsel %vm311, %v287, 0.0
      %v322 = vadd.f32 %v320, %v321
      %v323 = vsel %vm311, %v290, 0.0
      %v324 = vadd.f32 %v322, %v323
      %v325 = vsel %vm311, %v292, 0.0
      %v326 = vadd.f32 %v324, %v325
      %v327 = vrot.slane %v326, 4
      %v328 = vadd.f32 %v326, %v327
      %v329 = vrot.slane %v328, 2
      %v330 = vadd.f32 %v328, %v329
      %v331 = vrot.slane %v330, 1
      %v332 = vadd.f32 %v330, %v331
      %vm333 = vcmask 516096
      %334 = vst.msk [vmem:[%s214] sm:$0x1] %vm333, %v332
      %v335 = vmul.f32 %v275, %v275
      %v336 = vmul.f32 %v277, %v277
      %v337 = vmul.f32 %v280, %v280
      %v338 = vmul.f32 %v282, %v282
      %v339 = vmul.f32 %v285, %v285
      %v340 = vmul.f32 %v287, %v287
      %v341 = vmul.f32 %v290, %v290
      %v342 = vmul.f32 %v292, %v292
      %v343 = vsel %vm311, %v335, 0.0
      %v344 = vsel %vm311, %v336, 0.0
      %v345 = vadd.f32 %v343, %v344
      %v346 = vsel %vm311, %v337, 0.0
      %v347 = vadd.f32 %v345, %v346
      %v348 = vsel %vm311, %v338, 0.0
      %v349 = vadd.f32 %v347, %v348
      %v350 = vsel %vm311, %v339, 0.0
      %v351 = vadd.f32 %v349, %v350
      %v352 = vsel %vm311, %v340, 0.0
      %v353 = vadd.f32 %v351, %v352
      %v354 = vsel %vm311, %v341, 0.0
      %v355 = vadd.f32 %v353, %v354
      %v356 = vsel %vm311, %v342, 0.0
      %v357 = vadd.f32 %v355, %v356
      %v358 = vrot.slane %v357, 4
      %v359 = vadd.f32 %v357, %v358
      %v360 = vrot.slane %v359, 2
      %v361 = vadd.f32 %v359, %v360
      %v362 = vrot.slane %v361, 1
      %v363 = vadd.f32 %v361, %v362
      %364 = vst.msk [vmem:[%s217] sm:$0x1] %vm333, %v363
      %s365 = smul.u32 8, %s16
      %p366 = scmp.lt.s32.totalorder %s365, 15
      %s367 = scalar_select %p366, %s365, 15
      %s368 = smul.addr %s367, 4
      %s369 = scalar_lea.vmem %s2, %s368
      %p370 = scmp.lt.s32.totalorder %s16, 1
      %s371 = scalar_select %p370, %s16, 1
      %s372 = scalar_lea.vmem %s3, %s371
      %p373 = scmp.lt.s32.totalorder %s16, 1
      %s374 = scalar_select %p373, %s16, 1
      %s375 = scalar_lea.vmem %s4, %s374
      // Predicated region
      $region29: #{forward.9} parent=27 // pred_check
        %p376 = pneg %p81
      $region30: #{forward.9} parent=27 // pred_check_branch
        %378 = sbr.rel (%p376) target = $region32
      $region31: #{forward.9} parent=27 // pred_region
        %s379 = smul.u32 8, %s16
      $region32: #{forward.9} parent=27 // pred_fallthru
        _
      // Predicated region
      $region33: #{forward.9} parent=27 // pred_check
        %p380 = pneg %p107
      $region34: #{forward.9} parent=27 // pred_check_branch
        %382 = sbr.rel (%p380) target = $region36
      $region35: #{forward.9} parent=27 // pred_region
        _
      $region36: #{forward.9} parent=27 // pred_fallthru
        _
      // Predicated region
      $region37: #{forward.9} parent=27 // pred_check
        %p383 = pneg %p133
      $region38: #{forward.9} parent=27 // pred_check_branch
        %385 = sbr.rel (%p383) target = $region40
      $region39: #{forward.9} parent=27 // pred_region
        _
      $region40: #{forward.9} parent=27 // pred_fallthru
        _
    $region28: #{forward.9} parent=5 // pred_fallthru
      _
    %p386 = scmp.le.s32.totalorder 2, %s11
    // Predicated region
    $region41: #{forward.9} parent=5 // pred_check
      %p387 = pneg %p386
    $region42: #{forward.9} parent=5 // pred_check_branch
      %389 = sbr.rel (%p387) target = $region44
    $region43: #{forward.9} parent=5 // pred_region
      %s390 = ssub.s32 %s11, 2
      // Predicated region
      $region45: #{forward.9} parent=43 // pred_check
        %p391 = pneg %p87
      $region46: #{forward.9} parent=43 // pred_check_branch
        %393 = sbr.rel (%p391) target = $region48
      $region47: #{forward.9} parent=43 // pred_region
        %s394 = smul.u32 8, %s17
        %p395 = scmp.lt.s32.totalorder %s394, 15
        %s396 = scalar_select %p395, %s394, 15
        %s397 = smul.addr %s396, 4
        %s398 = scalar_lea.vmem %s2, %s397
      $region48: #{forward.9} parent=43 // pred_fallthru
        _
      // Predicated region
      $region49: #{forward.9} parent=43 // pred_check
        %p399 = pneg %p113
      $region50: #{forward.9} parent=43 // pred_check_branch
        %401 = sbr.rel (%p399) target = $region52
      $region51: #{forward.9} parent=43 // pred_region
        %p402 = scmp.lt.s32.totalorder %s17, 1
        %s403 = scalar_select %p402, %s17, 1
        %s404 = scalar_lea.vmem %s3, %s403
      $region52: #{forward.9} parent=43 // pred_fallthru
        _
      // Predicated region
      $region53: #{forward.9} parent=43 // pred_check
        %p405 = pneg %p139
      $region54: #{forward.9} parent=43 // pred_check_branch
        %407 = sbr.rel (%p405) target = $region56
      $region55: #{forward.9} parent=43 // pred_region
        %p408 = scmp.lt.s32.totalorder %s17, 1
        %s409 = scalar_select %p408, %s17, 1
        %s410 = scalar_lea.vmem %s4, %s409
      $region56: #{forward.9} parent=43 // pred_fallthru
        _
    $region44: #{forward.9} parent=5 // pred_fallthru
      _
  $region6: #{forward.9} parent=0 // loop_footer
    %s15 = sadd.s32 1, %s11
  $region7: #{forward.9} parent=0 // loop_footer_branch
    %10 = sbr.rel target = $region3
  $region8: #{forward.9} parent=0 // loop_exit
    _

// kernel: forward.8
$region0: #{forward.8}
  #allocation0 [shape = 'u32[]', space=smem, size = 0x4, offset = 0x4, fixed_abs, tag = 'smem constant byte address 0x4 - core index']
  #allocation1 [shape = 'u32[72,128]{1,0:T(1,128)}', space=vmem, size = 0x9000, scoped, tag = 'internal scratch']
  %s0 = inlined_call_operand.vmem [shape: bf16[2,1,104,64], index: 0, kind: input, shape index: {}]
  %s1 = inlined_call_operand.vmem [shape: bf16[9,64,64], index: 1, kind: input, shape index: {}]
  %s2 = inlined_call_operand.vmem [shape: f32[80,1], index: 2, kind: input, shape index: {}]
  %s3 = inlined_call_operand.vmem [shape: f32[1,64], index: 3, kind: input, shape index: {}]
  %s4 = inlined_call_operand.vmem [shape: f32[1,64], index: 4, kind: input, shape index: {}]
  %s5 = inlined_call_operand.vmem [shape: f32[104,1], index: 5, kind: input, shape index: {}]
  %s6 = inlined_call_operand.vmem [shape: bf16[2,80,64], index: 6, kind: output, shape index: {0}]
  %s7 = inlined_call_operand.vmem [shape: f32[2,1,64], index: 7, kind: output, shape index: {1}]
  %s8 = inlined_call_operand.vmem [shape: f32[2,1,64], index: 8, kind: output, shape index: {2}]
  %9 = xla_tuple %s6, %s7, %s8
  %s10 = sld [smem:[#allocation0]]
  $region73: #{forward.8} parent=0
    _
  %s12 = ssub.s32 1, %s10
  %s13 = scalar_select 0, %s12, %s10
  loop: start=0, step=1, limit=4
  $region2: #{forward.8} parent=0 // loop_pre_header
    _
  $region3: #{forward.8} parent=0 // loop_header
    %s15 = sphi 0, %s19
    %p16 = scmp.ge.s32.totalorder %s15, 4
    %s25 = sphi 0, %s27
    %s28 = sphi 0, %s25
    %s29 = sphi 0, %s28
    %s45 = sphi 0, %s29
    %s49 = sphi 0, %s49
    %s51 = sphi 0, %s49
    %s52 = sphi 0, %s51
    %s66 = sphi 0, %s52
    %s70 = sphi 0, %s70
    %s72 = sphi 0, %s70
    %s73 = sphi 0, %s72
    %s87 = sphi 0, %s73
    %s91 = sphi 0, %s91
    %s93 = sphi 0, %s91
    %s94 = sphi 0, %s93
    %s108 = sphi 0, %s94
    %s112 = sphi 0, %s112
    %s114 = sphi 0, %s112
    %s115 = sphi 0, %s114
    %s129 = sphi 0, %s115
    %s133 = sphi 0, %s133
    %s135 = sphi 0, %s133
    %s136 = sphi 0, %s135
    %s150 = sphi 0, %s136
    %s156 = sphi 0, %s158
    %s159 = sphi 0, %s156
    %s160 = sphi 0, %s159
    %s176 = sphi 0, %s160
    %s182 = sphi 0, %s184
    %s185 = sphi 0, %s182
    %s186 = sphi 0, %s185
    %s202 = sphi 0, %s186
    %s208 = sphi 0, %s210
    %s211 = sphi 0, %s208
    %s212 = sphi 0, %s211
    %s228 = sphi 0, %s212
  $region4: #{forward.8} parent=0 // loop_header_branch
    %18 = sbr.rel (%p16) target = $region8
  $region5: #{forward.8} parent=0 // loop_body
    %s20 = ssub.s32 %s15, 1
    %s21 = ssub.s32 %s15, 2
    %s22 = sadd.s32 %s15, 1
    %s23 = ssub.s32 %s15, %s22
    %p24 = scmp.eq.s32.totalorder %s23, 0
    %s26 = sadd.s32 %s25, 1
    %s27 = scalar_select %p24, %s25, %s26
    %p30 = pneg %p24
    %p31 = scmp.eq.s32.totalorder %s15, 1
    %p32 = por %p30, %p31
    %p33 = scmp.ne.s32.totalorder %s25, %s28
    %p34 = scmp.eq.s32.totalorder %s15, 0
    %p35 = por %p33, %p34
    %p36 = scmp.ne.s32.totalorder %s25, %s28
    %p37 = scmp.eq.s32.totalorder %s20, 1
    %p38 = por %p36, %p37
    %p39 = scmp.ne.s32.totalorder %s28, %s29
    %p40 = scmp.eq.s32.totalorder %s20, 0
    %p41 = por %p39, %p40
    %p42 = scmp.ne.s32.totalorder %s28, %s29
    %p43 = scmp.eq.s32.totalorder %s21, 1
    %p44 = por %p42, %p43
    %p46 = scmp.ne.s32.totalorder %s29, %s45
    %p47 = scmp.eq.s32.totalorder %s21, 0
    %p48 = por %p46, %p47
    %s50 = sadd.s32 %s49, 1
    %p53 = scmp.eq.s32.totalorder %s15, 1
    %p54 = scmp.ne.s32.totalorder %s49, %s51
    %p55 = scmp.eq.s32.totalorder %s15, 0
    %p56 = por %p54, %p55
    %p57 = scmp.ne.s32.totalorder %s49, %s51
    %p58 = scmp.eq.s32.totalorder %s20, 1
    %p59 = por %p57, %p58
    %p60 = scmp.ne.s32.totalorder %s51, %s52
    %p61 = scmp.eq.s32.totalorder %s20, 0
    %p62 = por %p60, %p61
    %p63 = scmp.ne.s32.totalorder %s51, %s52
    %p64 = scmp.eq.s32.totalorder %s21, 1
    %p65 = por %p63, %p64
    %p67 = scmp.ne.s32.totalorder %s52, %s66
    %p68 = scmp.eq.s32.totalorder %s21, 0
    %p69 = por %p67, %p68
    %s71 = sadd.s32 %s70, 1
    %p74 = scmp.eq.s32.totalorder %s15, 1
    %p75 = scmp.ne.s32.totalorder %s70, %s72
    %p76 = scmp.eq.s32.totalorder %s15, 0
    %p77 = por %p75, %p76
    %p78 = scmp.ne.s32.totalorder %s70, %s72
    %p79 = scmp.eq.s32.totalorder %s20, 1
    %p80 = por %p78, %p79
    %p81 = scmp.ne.s32.totalorder %s72, %s73
    %p82 = scmp.eq.s32.totalorder %s20, 0
    %p83 = por %p81, %p82
    %p84 = scmp.ne.s32.totalorder %s72, %s73
    %p85 = scmp.eq.s32.totalorder %s21, 1
    %p86 = por %p84, %p85
    %p88 = scmp.ne.s32.totalorder %s73, %s87
    %p89 = scmp.eq.s32.totalorder %s21, 0
    %p90 = por %p88, %p89
    %s92 = sadd.s32 %s91, 1
    %p95 = scmp.eq.s32.totalorder %s15, 1
    %p96 = scmp.ne.s32.totalorder %s91, %s93
    %p97 = scmp.eq.s32.totalorder %s15, 0
    %p98 = por %p96, %p97
    %p99 = scmp.ne.s32.totalorder %s91, %s93
    %p100 = scmp.eq.s32.totalorder %s20, 1
    %p101 = por %p99, %p100
    %p102 = scmp.ne.s32.totalorder %s93, %s94
    %p103 = scmp.eq.s32.totalorder %s20, 0
    %p104 = por %p102, %p103
    %p105 = scmp.ne.s32.totalorder %s93, %s94
    %p106 = scmp.eq.s32.totalorder %s21, 1
    %p107 = por %p105, %p106
    %p109 = scmp.ne.s32.totalorder %s94, %s108
    %p110 = scmp.eq.s32.totalorder %s21, 0
    %p111 = por %p109, %p110
    %s113 = sadd.s32 %s112, 1
    %p116 = scmp.eq.s32.totalorder %s15, 1
    %p117 = scmp.ne.s32.totalorder %s112, %s114
    %p118 = scmp.eq.s32.totalorder %s15, 0
    %p119 = por %p117, %p118
    %p120 = scmp.ne.s32.totalorder %s112, %s114
    %p121 = scmp.eq.s32.totalorder %s20, 1
    %p122 = por %p120, %p121
    %p123 = scmp.ne.s32.totalorder %s114, %s115
    %p124 = scmp.eq.s32.totalorder %s20, 0
    %p125 = por %p123, %p124
    %p126 = scmp.ne.s32.totalorder %s114, %s115
    %p127 = scmp.eq.s32.totalorder %s21, 1
    %p128 = por %p126, %p127
    %p130 = scmp.ne.s32.totalorder %s115, %s129
    %p131 = scmp.eq.s32.totalorder %s21, 0
    %p132 = por %p130, %p131
    %s134 = sadd.s32 %s133, 1
    %p137 = scmp.eq.s32.totalorder %s15, 1
    %p138 = scmp.ne.s32.totalorder %s133, %s135
    %p139 = scmp.eq.s32.totalorder %s15, 0
    %p140 = por %p138, %p139
    %p141 = scmp.ne.s32.totalorder %s133, %s135
    %p142 = scmp.eq.s32.totalorder %s20, 1
    %p143 = por %p141, %p142
    %p144 = scmp.ne.s32.totalorder %s135, %s136
    %p145 = scmp.eq.s32.totalorder %s20, 0
    %p146 = por %p144, %p145
    %p147 = scmp.ne.s32.totalorder %s135, %s136
    %p148 = scmp.eq.s32.totalorder %s21, 1
    %p149 = por %p147, %p148
    %p151 = scmp.ne.s32.totalorder %s136, %s150
    %p152 = scmp.eq.s32.totalorder %s21, 0
    %p153 = por %p151, %p152
    %s154 = ssub.s32 %s15, %s22
    %p155 = scmp.eq.s32.totalorder %s154, 0
    %s157 = sadd.s32 %s156, 1
    %s158 = scalar_select %p155, %s156, %s157
    %p161 = pneg %p155
    %p162 = scmp.eq.s32.totalorder %s15, 1
    %p163 = por %p161, %p162
    %p164 = scmp.ne.s32.totalorder %s156, %s159
    %p165 = scmp.eq.s32.totalorder %s15, 0
    %p166 = por %p164, %p165
    %p167 = scmp.ne.s32.totalorder %s156, %s159
    %p168 = scmp.eq.s32.totalorder %s20, 1
    %p169 = por %p167, %p168
    %p170 = scmp.ne.s32.totalorder %s159, %s160
    %p171 = scmp.eq.s32.totalorder %s20, 0
    %p172 = por %p170, %p171
    %p173 = scmp.ne.s32.totalorder %s159, %s160
    %p174 = scmp.eq.s32.totalorder %s21, 1
    %p175 = por %p173, %p174
    %p177 = scmp.ne.s32.totalorder %s160, %s176
    %p178 = scmp.eq.s32.totalorder %s21, 0
    %p179 = por %p177, %p178
    %s180 = ssub.s32 %s15, %s22
    %p181 = scmp.eq.s32.totalorder %s180, 0
    %s183 = sadd.s32 %s182, 1
    %s184 = scalar_select %p181, %s182, %s183
    %p187 = pneg %p181
    %p188 = scmp.eq.s32.totalorder %s15, 1
    %p189 = por %p187, %p188
    %p190 = scmp.ne.s32.totalorder %s182, %s185
    %p191 = scmp.eq.s32.totalorder %s15, 0
    %p192 = por %p190, %p191
    %p193 = scmp.ne.s32.totalorder %s182, %s185
    %p194 = scmp.eq.s32.totalorder %s20, 1
    %p195 = por %p193, %p194
    %p196 = scmp.ne.s32.totalorder %s185, %s186
    %p197 = scmp.eq.s32.totalorder %s20, 0
    %p198 = por %p196, %p197
    %p199 = scmp.ne.s32.totalorder %s185, %s186
    %p200 = scmp.eq.s32.totalorder %s21, 1
    %p201 = por %p199, %p200
    %p203 = scmp.ne.s32.totalorder %s186, %s202
    %p204 = scmp.eq.s32.totalorder %s21, 0
    %p205 = por %p203, %p204
    %s206 = ssub.s32 %s15, %s22
    %p207 = scmp.eq.s32.totalorder %s206, 0
    %s209 = sadd.s32 %s208, 1
    %s210 = scalar_select %p207, %s208, %s209
    %p213 = pneg %p207
    %p214 = scmp.eq.s32.totalorder %s15, 1
    %p215 = por %p213, %p214
    %p216 = scmp.ne.s32.totalorder %s208, %s211
    %p217 = scmp.eq.s32.totalorder %s15, 0
    %p218 = por %p216, %p217
    %p219 = scmp.ne.s32.totalorder %s208, %s211
    %p220 = scmp.eq.s32.totalorder %s20, 1
    %p221 = por %p219, %p220
    %p222 = scmp.ne.s32.totalorder %s211, %s212
    %p223 = scmp.eq.s32.totalorder %s20, 0
    %p224 = por %p222, %p223
    %p225 = scmp.ne.s32.totalorder %s211, %s212
    %p226 = scmp.eq.s32.totalorder %s21, 1
    %p227 = por %p225, %p226
    %p229 = scmp.ne.s32.totalorder %s212, %s228
    %p230 = scmp.eq.s32.totalorder %s21, 0
    %p231 = por %p229, %p230
    %p232 = scmp.le.s32.totalorder 1, %s15
    %p233 = scmp.lt.s32.totalorder %s15, 3
    %p234 = pnand %p232, %p233
    %p235 = pneg %p234
    // Predicated region
    $region9: #{forward.8} parent=5 // pred_check
      _
    $region10: #{forward.8} parent=5 // pred_check_branch
      %237 = sbr.rel (%p234) target = $region12
    $region11: #{forward.8} parent=5 // pred_region
      %s238 = ssub.s32 %s15, 1
      // Predicated region
      $region13: #{forward.8} parent=11 // pred_check
        %p239 = pneg %p62
      $region14: #{forward.8} parent=11 // pred_check_branch
        %241 = sbr.rel (%p239) target = $region16
      $region15: #{forward.8} parent=11 // pred_region
        _
      $region16: #{forward.8} parent=11 // pred_fallthru
        _
      // Predicated region
      $region17: #{forward.8} parent=11 // pred_check
        %p242 = pneg %p83
      $region18: #{forward.8} parent=11 // pred_check_branch
        %244 = sbr.rel (%p242) target = $region20
      $region19: #{forward.8} parent=11 // pred_region
        _
      $region20: #{forward.8} parent=11 // pred_fallthru
        _
      // Predicated region
      $region21: #{forward.8} parent=11 // pred_check
        %p245 = pneg %p104
      $region22: #{forward.8} parent=11 // pred_check_branch
        %247 = sbr.rel (%p245) target = $region24
      $region23: #{forward.8} parent=11 // pred_region
        _
      $region24: #{forward.8} parent=11 // pred_fallthru
        _
      // Predicated region
      $region25: #{forward.8} parent=11 // pred_check
        %p248 = pneg %p125
      $region26: #{forward.8} parent=11 // pred_check_branch
        %250 = sbr.rel (%p248) target = $region28
      $region27: #{forward.8} parent=11 // pred_region
        _
      $region28: #{forward.8} parent=11 // pred_fallthru
        _
      // Predicated region
      $region29: #{forward.8} parent=11 // pred_check
        %p251 = pneg %p146
      $region30: #{forward.8} parent=11 // pred_check_branch
        %253 = sbr.rel (%p251) target = $region32
      $region31: #{forward.8} parent=11 // pred_region
        _
      $region32: #{forward.8} parent=11 // pred_fallthru
        _
    $region12: #{forward.8} parent=5 // pred_fallthru
      _
    %p254 = scmp.lt.s32.totalorder %s15, 2
    // Predicated region
    $region33: #{forward.8} parent=5 // pred_check
      %p255 = pneg %p254
    $region34: #{forward.8} parent=5 // pred_check_branch
      %257 = sbr.rel (%p255) target = $region36
    $region35: #{forward.8} parent=5 // pred_region
      // Predicated region
      $region37: #{forward.8} parent=35 // pred_check
        %p258 = pneg %p35
      $region38: #{forward.8} parent=35 // pred_check_branch
        %260 = sbr.rel (%p258) target = $region40
      $region39: #{forward.8} parent=35 // pred_region
        %p261 = scmp.lt.s32.totalorder %s15, 1
        %s262 = scalar_select %p261, %s15, 1
        %s263 = smul.addr %s262, 13
        %s264 = smul.addr %s263, 4
        %s265 = scalar_lea.vmem %s0, %s264
      $region40: #{forward.8} parent=35 // pred_fallthru
        _
    $region36: #{forward.8} parent=5 // pred_fallthru
      _
    %p266 = scmp.le.s32.totalorder 1, %s15
    %p267 = scmp.lt.s32.totalorder %s15, 3
    %p268 = pnand %p266, %p267
    %p269 = pneg %p268
    // Predicated region
    $region41: #{forward.8} parent=5 // pred_check
      _
    $region42: #{forward.8} parent=5 // pred_check_branch
      %271 = sbr.rel (%p268) target = $region44
    $region43: #{forward.8} parent=5 // pred_region
      %s272 = ssub.s32 %s15, 1
      %p273 = scmp.lt.s32.totalorder %s20, 1
      %s274 = scalar_select %p273, %s20, 1
      %s275 = smul.addr %s274, 13
      %s276 = smul.addr %s275, 4
      %s277 = scalar_lea.vmem %s0, %s276
      %p278 = pneg %p41
      %p279 = pneg %p38
      %p280 = pneg %p62
      %p281 = pneg %p59
      %p282 = pneg %p83
      %p283 = pneg %p80
      %p284 = pneg %p104
      %p285 = pneg %p101
      %p286 = pneg %p125
      %p287 = pneg %p122
      %p288 = pneg %p146
      %p289 = pneg %p143
      %p290 = pneg %p172
      %p291 = pneg %p169
      %p292 = scmp.lt.s32.totalorder %s20, 1
      %s293 = scalar_select %p292, %s20, 1
      %s294 = smul.addr %s293, 10
      %s295 = smul.addr %s294, 4
      %s296 = scalar_lea.vmem %s6, %s295
      %p297 = pneg %p198
      %p298 = pneg %p195
      %p299 = scmp.lt.s32.totalorder %s20, 1
      %s300 = scalar_select %p299, %s20, 1
      %s301 = scalar_lea.vmem %s7, %s300
      %p302 = pneg %p224
      %p303 = pneg %p221
      %p304 = scmp.lt.s32.totalorder %s20, 1
      %s305 = scalar_select %p304, %s20, 1
      %s306 = scalar_lea.vmem %s8, %s305
      %p307 = scmp.lt.s32.totalorder %s20, 1
      %s308 = scalar_select %p307, %s20, 1
      %s309 = smul.addr %s308, 13
      %s310 = smul.addr %s309, 4
      %s311 = scalar_lea.vmem %s0, %s310
      %p312 = scmp.lt.s32.totalorder %s20, 1
      %s313 = scalar_select %p312, %s20, 1
      %s314 = smul.addr %s313, 10
      %s315 = smul.addr %s314, 4
      %s316 = scalar_lea.vmem %s6, %s315
      %p317 = scmp.lt.s32.totalorder %s20, 1
      %s318 = scalar_select %p317, %s20, 1
      %s319 = scalar_lea.vmem %s7, %s318
      %p320 = scmp.lt.s32.totalorder %s20, 1
      %s321 = scalar_select %p320, %s20, 1
      %s322 = scalar_lea.vmem %s8, %s321
      %v324 = vld [vmem:[%s311] sm:$0xf]
      %v325 = vld [vmem:[%s311 + $0x4] sm:$0xf]
      %v326 = vld [vmem:[%s311 + $0x8] sm:$0xf]
      %v327 = vld [vmem:[%s311 + $0xc] sm:$0xf]
      %v328 = vld [vmem:[%s311 + $0x10] sm:$0xf]
      %v329 = vld [vmem:[%s311 + $0x14] sm:$0xf]
      %v330 = vld [vmem:[%s311 + $0x18] sm:$0xf]
      %v331 = vld [vmem:[%s311 + $0x1c] sm:$0xf]
      %v332 = vld [vmem:[%s311 + $0x20] sm:$0xf]
      %v333 = vld [vmem:[%s311 + $0x24] sm:$0xf]
      %v334 = vld [vmem:[%s311 + $0x28] sm:$0xf]
      %v335 = vld [vmem:[%s311 + $0x2c] sm:$0xf]
      %v336 = vld [vmem:[%s311 + $0x30] sm:$0xf]
      %v337 = vunpack.c.l.bf16 %v324
      %v338 = vunpack.c.l.bf16 %v325
      %v339 = vunpack.c.l.bf16 %v326
      %v340 = vunpack.c.l.bf16 %v327
      %v341 = vunpack.c.l.bf16 %v328
      %v342 = vunpack.c.l.bf16 %v329
      %v343 = vunpack.c.l.bf16 %v330
      %v344 = vunpack.c.l.bf16 %v331
      %v345 = vunpack.c.l.bf16 %v332
      %v346 = vunpack.c.l.bf16 %v333
      %v347 = vunpack.c.l.bf16 %v334
      %v348 = vunpack.c.l.bf16 %v335
      %v349 = vunpack.c.l.bf16 %v336
      %v350 = vld [vmem:[%s3] sm:$0x1]
      %v352 = vperm.slane %v350, 0
      %v354 = vmul.f32 %v337, %v352
      %v355 = vmul.f32 %v338, %v352
      %v356 = vmul.f32 %v339, %v352
      %v357 = vmul.f32 %v340, %v352
      %v358 = vmul.f32 %v341, %v352
      %v359 = vmul.f32 %v342, %v352
      %v360 = vmul.f32 %v343, %v352
      %v361 = vmul.f32 %v344, %v352
      %v362 = vmul.f32 %v345, %v352
      %v363 = vmul.f32 %v346, %v352
      %v364 = vmul.f32 %v347, %v352
      %v365 = vmul.f32 %v348, %v352
      %v366 = vmul.f32 %v349, %v352
      %v367 = vld [vmem:[%s4] sm:$0x1]
      %v369 = vperm.slane %v367, 0
      %v371 = vadd.f32 %v354, %v369
      %v372 = vadd.f32 %v355, %v369
      %v373 = vadd.f32 %v356, %v369
      %v374 = vadd.f32 %v357, %v369
      %v375 = vadd.f32 %v358, %v369
      %v376 = vadd.f32 %v359, %v369
      %v377 = vadd.f32 %v360, %v369
      %v378 = vadd.f32 %v361, %v369
      %v379 = vadd.f32 %v362, %v369
      %v380 = vadd.f32 %v363, %v369
      %v381 = vadd.f32 %v364, %v369
      %v382 = vadd.f32 %v365, %v369
      %v383 = vadd.f32 %v366, %v369
      %v384 = vmax.f32 %v371, 0.0
      %v385 = vmax.f32 %v372, 0.0
      %v386 = vmax.f32 %v373, 0.0
      %v387 = vmax.f32 %v374, 0.0
      %v388 = vmax.f32 %v375, 0.0
      %v389 = vmax.f32 %v376, 0.0
      %v390 = vmax.f32 %v377, 0.0
      %v391 = vmax.f32 %v378, 0.0
      %v392 = vmax.f32 %v379, 0.0
      %v393 = vmax.f32 %v380, 0.0
      %v394 = vmax.f32 %v381, 0.0
      %v395 = vmax.f32 %v382, 0.0
      %v396 = vmax.f32 %v383, 0.0
      %v397 = vld [vmem:[%s5] sm:$0xff]
      %v398 = vld [vmem:[%s5 + $0x8] sm:$0xff]
      %v399 = vld [vmem:[%s5 + $0x10] sm:$0xff]
      %v400 = vld [vmem:[%s5 + $0x18] sm:$0xff]
      %v401 = vld [vmem:[%s5 + $0x20] sm:$0xff]
      %v402 = vld [vmem:[%s5 + $0x28] sm:$0xff]
      %v403 = vld [vmem:[%s5 + $0x30] sm:$0xff]
      %v404 = vld [vmem:[%s5 + $0x38] sm:$0xff]
      %v405 = vld [vmem:[%s5 + $0x40] sm:$0xff]
      %v406 = vld [vmem:[%s5 + $0x48] sm:$0xff]
      %v407 = vld [vmem:[%s5 + $0x50] sm:$0xff]
      %v408 = vld [vmem:[%s5 + $0x58] sm:$0xff]
      %v409 = vld [vmem:[%s5 + $0x60] sm:$0xff]
      %411 = vset.pattern.permute.xlu0 0
      %412 = vperm.xlu0 %411, %v397
      %v413 = vpop.permute.xlu0 %412
      %416 = vset.pattern.permute.xlu0 0
      %417 = vperm.xlu0 %416, %v398
      %v418 = vpop.permute.xlu0 %417
      %421 = vset.pattern.permute.xlu0 0
      %422 = vperm.xlu0 %421, %v399
      %v423 = vpop.permute.xlu0 %422
      %426 = vset.pattern.permute.xlu0 0
      %427 = vperm.xlu0 %426, %v400
      %v428 = vpop.permute.xlu0 %427
      %431 = vset.pattern.permute.xlu0 0
      %432 = vperm.xlu0 %431, %v401
      %v433 = vpop.permute.xlu0 %432
      %436 = vset.pattern.permute.xlu0 0
      %437 = vperm.xlu0 %436, %v402
      %v438 = vpop.permute.xlu0 %437
      %441 = vset.pattern.permute.xlu0 0
      %442 = vperm.xlu0 %441, %v403
      %v443 = vpop.permute.xlu0 %442
      %446 = vset.pattern.permute.xlu0 0
      %447 = vperm.xlu0 %446, %v404
      %v448 = vpop.permute.xlu0 %447
      %451 = vset.pattern.permute.xlu0 0
      %452 = vperm.xlu0 %451, %v405
      %v453 = vpop.permute.xlu0 %452
      %456 = vset.pattern.permute.xlu0 0
      %457 = vperm.xlu0 %456, %v406
      %v458 = vpop.permute.xlu0 %457
      %461 = vset.pattern.permute.xlu0 0
      %462 = vperm.xlu0 %461, %v407
      %v463 = vpop.permute.xlu0 %462
      %466 = vset.pattern.permute.xlu0 0
      %467 = vperm.xlu0 %466, %v408
      %v468 = vpop.permute.xlu0 %467
      %471 = vset.pattern.permute.xlu0 0
      %472 = vperm.xlu0 %471, %v409
      %v473 = vpop.permute.xlu0 %472
      %v475 = vmul.f32 %v384, %v413
      %v476 = vmul.f32 %v385, %v418
      %v477 = vmul.f32 %v386, %v423
      %v478 = vmul.f32 %v387, %v428
      %v479 = vmul.f32 %v388, %v433
      %v480 = vmul.f32 %v389, %v438
      %v481 = vmul.f32 %v390, %v443
      %v482 = vmul.f32 %v391, %v448
      %v483 = vmul.f32 %v392, %v453
      %v484 = vmul.f32 %v393, %v458
      %v485 = vmul.f32 %v394, %v463
      %v486 = vmul.f32 %v395, %v468
      %v487 = vmul.f32 %v396, %v473
      %v488 = vpack.c.bf16 %v475, %v475
      %v489 = vpack.c.bf16 %v476, %v476
      %v490 = vpack.c.bf16 %v477, %v477
      %v491 = vpack.c.bf16 %v478, %v478
      %v492 = vpack.c.bf16 %v479, %v479
      %v493 = vpack.c.bf16 %v480, %v480
      %v494 = vpack.c.bf16 %v481, %v481
      %v495 = vpack.c.bf16 %v482, %v482
      %v496 = vpack.c.bf16 %v483, %v483
      %v497 = vpack.c.bf16 %v484, %v484
      %v498 = vpack.c.bf16 %v485, %v485
      %v499 = vpack.c.bf16 %v486, %v486
      %v500 = vpack.c.bf16 %v487, %v487
      %v501 = vld [vmem:[%s1] sm:$0xf]
      %v502 = vld [vmem:[%s1 + $0x4] sm:$0xf]
      %v503 = vld [vmem:[%s1 + $0x8] sm:$0xf]
      %v504 = vld [vmem:[%s1 + $0xc] sm:$0xf]
      %v505 = vld [vmem:[%s1 + $0x10] sm:$0xf]
      %v506 = vld [vmem:[%s1 + $0x14] sm:$0xf]
      %v507 = vld [vmem:[%s1 + $0x18] sm:$0xf]
      %v508 = vld [vmem:[%s1 + $0x1c] sm:$0xf]
      %s509 = scalar_lea.vmem %s1, 32
      %v510 = vld [vmem:[%s509] sm:$0xf]
      %v511 = vld [vmem:[%s509 + $0x4] sm:$0xf]
      %v512 = vld [vmem:[%s509 + $0x8] sm:$0xf]
      %v513 = vld [vmem:[%s509 + $0xc] sm:$0xf]
      %v514 = vld [vmem:[%s509 + $0x10] sm:$0xf]
      %v515 = vld [vmem:[%s509 + $0x14] sm:$0xf]
      %v516 = vld [vmem:[%s509 + $0x18] sm:$0xf]
      %v517 = vld [vmem:[%s509 + $0x1c] sm:$0xf]
      %v529 = vunpack.c.l.b16 %v488
      %v530 = vunpack.c.l.b16 %v489
      %v531 = vunpack.c.l.b16 %v490
      %v532 = vunpack.c.l.b16 %v491
      %v533 = vunpack.c.l.b16 %v492
      %v534 = vunpack.c.l.b16 %v493
      %v535 = vunpack.c.l.b16 %v494
      %v536 = vunpack.c.l.b16 %v495
      %v537 = vunpack.c.l.b16 %v496
      %v538 = vunpack.c.l.b16 %v497
      %v539 = vunpack.c.l.b16 %v498
      %v540 = vpack.c.b16 %v530, %v529
      %v541 = vpack.c.b16 %v532, %v531
      %v542 = vpack.c.b16 %v534, %v533
      %v543 = vpack.c.b16 %v536, %v535
      %v544 = vpack.c.b16 %v538, %v537
      %v545 = vpack.c.b16 %v539, %v539
      %vm546 = vsmask.f32 7424
      %v548 = vshrl.u32 %v540, 16
      %v550 = vshll.u32 %v540, 16
      %v552 = vrot.slane %v550, 1
      %v553 = vor.u32 %v548, %v552
      %v555 = vshll.u32 %v541, 16
      %v557 = vrot.slane %v555, 1
      %v558 = vsel %vm546, %v553, %v557
      %v559 = vshrl.u32 %v541, 16
      %v561 = vor.u32 %v559, %v557
      %v563 = vshll.u32 %v542, 16
      %v565 = vrot.slane %v563, 1
      %v566 = vsel %vm546, %v561, %v565
      %v567 = vshrl.u32 %v542, 16
      %v569 = vor.u32 %v567, %v565
      %v571 = vshll.u32 %v543, 16
      %v573 = vrot.slane %v571, 1
      %v574 = vsel %vm546, %v569, %v573
      %v575 = vshrl.u32 %v543, 16
      %v577 = vor.u32 %v575, %v573
      %v579 = vshll.u32 %v544, 16
      %v581 = vrot.slane %v579, 1
      %v582 = vsel %vm546, %v577, %v581
      %v583 = vshrl.u32 %v544, 16
      %v585 = vor.u32 %v583, %v581
      %v587 = vshll.u32 %v545, 16
      %v589 = vrot.slane %v587, 1
      %v590 = vsel %vm546, %v585, %v589
      %v599 = vunpack.c.l.b16 %v510
      %v600 = vunpack.c.l.b16 %v511
      %v601 = vunpack.c.l.b16 %v512
      %v602 = vunpack.c.l.b16 %v513
      %v603 = vunpack.c.l.b16 %v514
      %v604 = vunpack.c.l.b16 %v515
      %v605 = vunpack.c.l.b16 %v516
      %v606 = vunpack.c.l.b16 %v517
      %v607 = vpack.c.b16 %v600, %v599
      %v608 = vpack.c.b16 %v602, %v601
      %v609 = vpack.c.b16 %v604, %v603
      %v610 = vpack.c.b16 %v606, %v605
      %vm615 = vcmask 523264
      %v617 = vsel %vm615, %v558, 0
      %v620 = vsel %vm615, %v566, 0
      %v623 = vsel %vm615, %v574, 0
      %v626 = vsel %vm615, %v582, 0
      %v629 = vsel %vm615, %v590, 0
      %631 = vmatpush.bf16.msra.mxu0 0
      %632 = vmatpush.bf16.msra.mxu0 0
      %633 = vmatpush.bf16.msra.mxu0 0
      %634 = vmatpush.bf16.msra.mxu0 0
      %635 = vmatpush.bf16.msra.mxu0 %v610
      %636 = vmatpush.bf16.msra.mxu0 %v609
      %637 = vmatpush.bf16.msra.mxu0 %v608
      %638 = vmatpush.bf16.msra.mxu0 %v607
      %639 = vmatmul.bf16.gmra.mxu0 %v617
      %v640 = vpop.f32.mrf.mxu0
      %v641 = vadd.f32 0.0, %v640
      %v642 = vpop.f32.mrf.mxu0
      %v643 = vadd.f32 0.0, %v642
      %644 = vmatmul.bf16.gmra.mxu0 %v620
      %v645 = vpop.f32.mrf.mxu0
      %v646 = vadd.f32 0.0, %v645
      %v647 = vpop.f32.mrf.mxu0
      %v648 = vadd.f32 0.0, %v647
      %649 = vmatmul.bf16.gmra.mxu0 %v623
      %v650 = vpop.f32.mrf.mxu0
      %v651 = vadd.f32 0.0, %v650
      %v652 = vpop.f32.mrf.mxu0
      %v653 = vadd.f32 0.0, %v652
      %654 = vmatmul.bf16.gmra.mxu0 %v626
      %v655 = vpop.f32.mrf.mxu0
      %v656 = vadd.f32 0.0, %v655
      %v657 = vpop.f32.mrf.mxu0
      %v658 = vadd.f32 0.0, %v657
      %659 = vmatmul.bf16.gmra.mxu0 %v629
      %v660 = vpop.f32.mrf.mxu0
      %v661 = vadd.f32 0.0, %v660
      %v662 = vpop.f32.mrf.mxu0
      %v663 = vadd.f32 0.0, %v662
      %664 = vdwg.mxu0
      %v673 = vunpack.c.l.b16 %v501
      %v674 = vunpack.c.l.b16 %v502
      %v675 = vunpack.c.l.b16 %v503
      %v676 = vunpack.c.l.b16 %v504
      %v677 = vunpack.c.l.b16 %v505
      %v678 = vunpack.c.l.b16 %v506
      %v679 = vunpack.c.l.b16 %v507
      %v680 = vunpack.c.l.b16 %v508
      %v681 = vpack.c.b16 %v674, %v673
      %v682 = vpack.c.b16 %v676, %v675
      %v683 = vpack.c.b16 %v678, %v677
      %v684 = vpack.c.b16 %v680, %v679
      %v689 = vsel %vm615, %v540, 0
      %v691 = vsel %vm615, %v541, 0
      %v693 = vsel %vm615, %v542, 0
      %v695 = vsel %vm615, %v543, 0
      %v697 = vsel %vm615, %v544, 0
      %699 = vmatpush.bf16.msra.mxu0 0
      %700 = vmatpush.bf16.msra.mxu0 0
      %701 = vmatpush.bf16.msra.mxu0 0
      %702 = vmatpush.bf16.msra.mxu0 0
      %703 = vmatpush.bf16.msra.mxu0 %v684
      %704 = vmatpush.bf16.msra.mxu0 %v683
      %705 = vmatpush.bf16.msra.mxu0 %v682
      %706 = vmatpush.bf16.msra.mxu0 %v681
      %707 = vmatmul.bf16.gmra.mxu0 %v689
      %v708 = vpop.f32.mrf.mxu0
      %v709 = vadd.f32 %v641, %v708
      %v710 = vpop.f32.mrf.mxu0
      %v711 = vadd.f32 %v643, %v710
      %712 = vmatmul.bf16.gmra.mxu0 %v691
      %v713 = vpop.f32.mrf.mxu0
      %v714 = vadd.f32 %v646, %v713
      %v715 = vpop.f32.mrf.mxu0
      %v716 = vadd.f32 %v648, %v715
      %717 = vmatmul.bf16.gmra.mxu0 %v693
      %v718 = vpop.f32.mrf.mxu0
      %v719 = vadd.f32 %v651, %v718
      %v720 = vpop.f32.mrf.mxu0
      %v721 = vadd.f32 %v653, %v720
      %722 = vmatmul.bf16.gmra.mxu0 %v695
      %v723 = vpop.f32.mrf.mxu0
      %v724 = vadd.f32 %v656, %v723
      %v725 = vpop.f32.mrf.mxu0
      %v726 = vadd.f32 %v658, %v725
      %727 = vmatmul.bf16.gmra.mxu0 %v697
      %v728 = vpop.f32.mrf.mxu0
      %v729 = vadd.f32 %v661, %v728
      %v730 = vpop.f32.mrf.mxu0
      %v731 = vadd.f32 %v663, %v730
      %732 = vdwg.mxu0
      %s733 = scalar_lea.vmem %s1, 64
      %v734 = vld [vmem:[%s733] sm:$0xf]
      %v735 = vld [vmem:[%s733 + $0x4] sm:$0xf]
      %v736 = vld [vmem:[%s733 + $0x8] sm:$0xf]
      %v737 = vld [vmem:[%s733 + $0xc] sm:$0xf]
      %v738 = vld [vmem:[%s733 + $0x10] sm:$0xf]
      %v739 = vld [vmem:[%s733 + $0x14] sm:$0xf]
      %v740 = vld [vmem:[%s733 + $0x18] sm:$0xf]
      %v741 = vld [vmem:[%s733 + $0x1c] sm:$0xf]
      %vm742 = vcmask 1046528
      %v743 = vrot.slane %v540, 1
      %v744 = vrot.slane %v541, 1
      %v745 = vsel %vm742, %v743, %v744
      %v746 = vrot.slane %v542, 1
      %v747 = vsel %vm742, %v744, %v746
      %v748 = vrot.slane %v543, 1
      %v749 = vsel %vm742, %v746, %v748
      %v750 = vrot.slane %v544, 1
      %v751 = vsel %vm742, %v748, %v750
      %v752 = vrot.slane %v545, 1
      %v753 = vsel %vm742, %v750, %v752
      %v762 = vunpack.c.l.b16 %v734
      %v763 = vunpack.c.l.b16 %v735
      %v764 = vunpack.c.l.b16 %v736
      %v765 = vunpack.c.l.b16 %v737
      %v766 = vunpack.c.l.b16 %v738
      %v767 = vunpack.c.l.b16 %v739
      %v768 = vunpack.c.l.b16 %v740
      %v769 = vunpack.c.l.b16 %v741
      %v770 = vpack.c.b16 %v763, %v762
      %v771 = vpack.c.b16 %v765, %v764
      %v772 = vpack.c.b16 %v767, %v766
      %v773 = vpack.c.b16 %v769, %v768
      %v779 = vsel %vm615, %v745, 0
      %v782 = vsel %vm615, %v747, 0
      %v785 = vsel %vm615, %v749, 0
      %v788 = vsel %vm615, %v751, 0
      %v791 = vsel %vm615, %v753, 0
      %793 = vmatpush.bf16.msra.mxu0 0
      %794 = vmatpush.bf16.msra.mxu0 0
      %795 = vmatpush.bf16.msra.mxu0 0
      %796 = vmatpush.bf16.msra.mxu0 0
      %797 = vmatpush.bf16.msra.mxu0 %v773
      %798 = vmatpush.bf16.msra.mxu0 %v772
      %799 = vmatpush.bf16.msra.mxu0 %v771
      %800 = vmatpush.bf16.msra.mxu0 %v770
      %801 = vmatmul.bf16.gmra.mxu0 %v779
      %v802 = vpop.f32.mrf.mxu0
      %v803 = vadd.f32 0.0, %v802
      %v804 = vpop.f32.mrf.mxu0
      %v805 = vadd.f32 0.0, %v804
      %806 = vmatmul.bf16.gmra.mxu0 %v782
      %v807 = vpop.f32.mrf.mxu0
      %v808 = vadd.f32 0.0, %v807
      %v809 = vpop.f32.mrf.mxu0
      %v810 = vadd.f32 0.0, %v809
      %811 = vmatmul.bf16.gmra.mxu0 %v785
      %v812 = vpop.f32.mrf.mxu0
      %v813 = vadd.f32 0.0, %v812
      %v814 = vpop.f32.mrf.mxu0
      %v815 = vadd.f32 0.0, %v814
      %816 = vmatmul.bf16.gmra.mxu0 %v788
      %v817 = vpop.f32.mrf.mxu0
      %v818 = vadd.f32 0.0, %v817
      %v819 = vpop.f32.mrf.mxu0
      %v820 = vadd.f32 0.0, %v819
      %821 = vmatmul.bf16.gmra.mxu0 %v791
      %v822 = vpop.f32.mrf.mxu0
      %v823 = vadd.f32 0.0, %v822
      %v824 = vpop.f32.mrf.mxu0
      %v825 = vadd.f32 0.0, %v824
      %826 = vdwg.mxu0
      %v827 = vadd.f32 %v709, %v803
      %v828 = vadd.f32 %v711, %v805
      %v829 = vadd.f32 %v714, %v808
      %v830 = vadd.f32 %v716, %v810
      %v831 = vadd.f32 %v719, %v813
      %v832 = vadd.f32 %v721, %v815
      %v833 = vadd.f32 %v724, %v818
      %v834 = vadd.f32 %v726, %v820
      %v835 = vadd.f32 %v729, %v823
      %v836 = vadd.f32 %v731, %v825
      %s837 = scalar_lea.vmem %s1, 96
      %v838 = vld [vmem:[%s837] sm:$0xf]
      %v839 = vld [vmem:[%s837 + $0x4] sm:$0xf]
      %v840 = vld [vmem:[%s837 + $0x8] sm:$0xf]
      %v841 = vld [vmem:[%s837 + $0xc] sm:$0xf]
      %v842 = vld [vmem:[%s837 + $0x10] sm:$0xf]
      %v843 = vld [vmem:[%s837 + $0x14] sm:$0xf]
      %v844 = vld [vmem:[%s837 + $0x18] sm:$0xf]
      %v845 = vld [vmem:[%s837 + $0x1c] sm:$0xf]
      %v847 = vunpack.c.l.b16 %v499
      %v848 = vpack.c.b16 %v531, %v530
      %v849 = vpack.c.b16 %v533, %v532
      %v850 = vpack.c.b16 %v535, %v534
      %v851 = vpack.c.b16 %v537, %v536
      %v852 = vpack.c.b16 %v539, %v538
      %v853 = vpack.c.b16 %v847, %v847
      %v854 = vrot.slane %v848, 1
      %v855 = vrot.slane %v849, 1
      %v856 = vsel %vm742, %v854, %v855
      %v857 = vrot.slane %v850, 1
      %v858 = vsel %vm742, %v855, %v857
      %v859 = vrot.slane %v851, 1
      %v860 = vsel %vm742, %v857, %v859
      %v861 = vrot.slane %v852, 1
      %v862 = vsel %vm742, %v859, %v861
      %v863 = vrot.slane %v853, 1
      %v864 = vsel %vm742, %v861, %v863
      %v873 = vunpack.c.l.b16 %v838
      %v874 = vunpack.c.l.b16 %v839
      %v875 = vunpack.c.l.b16 %v840
      %v876 = vunpack.c.l.b16 %v841
      %v877 = vunpack.c.l.b16 %v842
      %v878 = vunpack.c.l.b16 %v843
      %v879 = vunpack.c.l.b16 %v844
      %v880 = vunpack.c.l.b16 %v845
      %v881 = vpack.c.b16 %v874, %v873
      %v882 = vpack.c.b16 %v876, %v875
      %v883 = vpack.c.b16 %v878, %v877
      %v884 = vpack.c.b16 %v880, %v879
      %v890 = vsel %vm615, %v856, 0
      %v893 = vsel %vm615, %v858, 0
      %v896 = vsel %vm615, %v860, 0
      %v899 = vsel %vm615, %v862, 0
      %v902 = vsel %vm615, %v864, 0
      %904 = vmatpush.bf16.msra.mxu0 0
      %905 = vmatpush.bf16.msra.mxu0 0
      %906 = vmatpush.bf16.msra.mxu0 0
      %907 = vmatpush.bf16.msra.mxu0 0
      %908 = vmatpush.bf16.msra.mxu0 %v884
      %909 = vmatpush.bf16.msra.mxu0 %v883
      %910 = vmatpush.bf16.msra.mxu0 %v882
      %911 = vmatpush.bf16.msra.mxu0 %v881
      %912 = vmatmul.bf16.gmra.mxu0 %v890
      %v913 = vpop.f32.mrf.mxu0
      %v914 = vadd.f32 0.0, %v913
      %v915 = vpop.f32.mrf.mxu0
      %v916 = vadd.f32 0.0, %v915
      %917 = vmatmul.bf16.gmra.mxu0 %v893
      %v918 = vpop.f32.mrf.mxu0
      %v919 = vadd.f32 0.0, %v918
      %v920 = vpop.f32.mrf.mxu0
      %v921 = vadd.f32 0.0, %v920
      %922 = vmatmul.bf16.gmra.mxu0 %v896
      %v923 = vpop.f32.mrf.mxu0
      %v924 = vadd.f32 0.0, %v923
      %v925 = vpop.f32.mrf.mxu0
      %v926 = vadd.f32 0.0, %v925
      %927 = vmatmul.bf16.gmra.mxu0 %v899
      %v928 = vpop.f32.mrf.mxu0
      %v929 = vadd.f32 0.0, %v928
      %v930 = vpop.f32.mrf.mxu0
      %v931 = vadd.f32 0.0, %v930
      %932 = vmatmul.bf16.gmra.mxu0 %v902
      %v933 = vpop.f32.mrf.mxu0
      %v934 = vadd.f32 0.0, %v933
      %v935 = vpop.f32.mrf.mxu0
      %v936 = vadd.f32 0.0, %v935
      %937 = vdwg.mxu0
      %v938 = vadd.f32 %v827, %v914
      %v939 = vadd.f32 %v828, %v916
      %v940 = vadd.f32 %v829, %v919
      %v941 = vadd.f32 %v830, %v921
      %v942 = vadd.f32 %v831, %v924
      %v943 = vadd.f32 %v832, %v926
      %v944 = vadd.f32 %v833, %v929
      %v945 = vadd.f32 %v834, %v931
      %v946 = vadd.f32 %v835, %v934
      %v947 = vadd.f32 %v836, %v936
      %s948 = scalar_lea.vmem %s1, 128
      %v949 = vld [vmem:[%s948] sm:$0xf]
      %v950 = vld [vmem:[%s948 + $0x4] sm:$0xf]
      %v951 = vld [vmem:[%s948 + $0x8] sm:$0xf]
      %v952 = vld [vmem:[%s948 + $0xc] sm:$0xf]
      %v953 = vld [vmem:[%s948 + $0x10] sm:$0xf]
      %v954 = vld [vmem:[%s948 + $0x14] sm:$0xf]
      %v955 = vld [vmem:[%s948 + $0x18] sm:$0xf]
      %v956 = vld [vmem:[%s948 + $0x1c] sm:$0xf]
      %vm957 = vsmask.f32 6400
      %v959 = vshrl.u32 %v848, 16
      %v961 = vrot.slane %v959, 1
      %v962 = vshll.u32 %v848, 16
      %v964 = vrot.slane %v962, 2
      %v965 = vor.u32 %v961, %v964
      %v967 = vshrl.u32 %v849, 16
      %v969 = vrot.slane %v967, 1
      %v970 = vshll.u32 %v849, 16
      %v972 = vrot.slane %v970, 2
      %v973 = vor.u32 %v969, %v972
      %v974 = vsel %vm957, %v965, %v973
      %v976 = vshrl.u32 %v850, 16
      %v978 = vrot.slane %v976, 1
      %v979 = vshll.u32 %v850, 16
      %v981 = vrot.slane %v979, 2
      %v982 = vor.u32 %v978, %v981
      %v983 = vsel %vm957, %v973, %v982
      %v985 = vshrl.u32 %v851, 16
      %v987 = vrot.slane %v985, 1
      %v988 = vshll.u32 %v851, 16
      %v990 = vrot.slane %v988, 2
      %v991 = vor.u32 %v987, %v990
      %v992 = vsel %vm957, %v982, %v991
      %v994 = vshrl.u32 %v852, 16
      %v996 = vrot.slane %v994, 1
      %v997 = vshll.u32 %v852, 16
      %v999 = vrot.slane %v997, 2
      %v1000 = vor.u32 %v996, %v999
      %v1001 = vsel %vm957, %v991, %v1000
      %v1003 = vshrl.u32 %v853, 16
      %v1005 = vrot.slane %v1003, 1
      %v1006 = vshll.u32 %v853, 16
      %v1008 = vrot.slane %v1006, 2
      %v1009 = vor.u32 %v1005, %v1008
      %v1010 = vsel %vm957, %v1000, %v1009
      %v1019 = vunpack.c.l.b16 %v949
      %v1020 = vunpack.c.l.b16 %v950
      %v1021 = vunpack.c.l.b16 %v951
      %v1022 = vunpack.c.l.b16 %v952
      %v1023 = vunpack.c.l.b16 %v953
      %v1024 = vunpack.c.l.b16 %v954
      %v1025 = vunpack.c.l.b16 %v955
      %v1026 = vunpack.c.l.b16 %v956
      %v1027 = vpack.c.b16 %v1020, %v1019
      %v1028 = vpack.c.b16 %v1022, %v1021
      %v1029 = vpack.c.b16 %v1024, %v1023
      %v1030 = vpack.c.b16 %v1026, %v1025
      %v1036 = vsel %vm615, %v974, 0
      %v1039 = vsel %vm615, %v983, 0
      %v1042 = vsel %vm615, %v992, 0
      %v1045 = vsel %vm615, %v1001, 0
      %v1048 = vsel %vm615, %v1010, 0
      %1050 = vmatpush.bf16.msra.mxu0 0
      %1051 = vmatpush.bf16.msra.mxu0 0
      %1052 = vmatpush.bf16.msra.mxu0 0
      %1053 = vmatpush.bf16.msra.mxu0 0
      %1054 = vmatpush.bf16.msra.mxu0 %v1030
      %1055 = vmatpush.bf16.msra.mxu0 %v1029
      %1056 = vmatpush.bf16.msra.mxu0 %v1028
      %1057 = vmatpush.bf16.msra.mxu0 %v1027
      %1058 = vmatmul.bf16.gmra.mxu0 %v1036
      %v1059 = vpop.f32.mrf.mxu0
      %v1060 = vadd.f32 0.0, %v1059
      %v1061 = vpop.f32.mrf.mxu0
      %v1062 = vadd.f32 0.0, %v1061
      %1063 = vmatmul.bf16.gmra.mxu0 %v1039
      %v1064 = vpop.f32.mrf.mxu0
      %v1065 = vadd.f32 0.0, %v1064
      %v1066 = vpop.f32.mrf.mxu0
      %v1067 = vadd.f32 0.0, %v1066
      %1068 = vmatmul.bf16.gmra.mxu0 %v1042
      %v1069 = vpop.f32.mrf.mxu0
      %v1070 = vadd.f32 0.0, %v1069
      %v1071 = vpop.f32.mrf.mxu0
      %v1072 = vadd.f32 0.0, %v1071
      %1073 = vmatmul.bf16.gmra.mxu0 %v1045
      %v1074 = vpop.f32.mrf.mxu0
      %v1075 = vadd.f32 0.0, %v1074
      %v1076 = vpop.f32.mrf.mxu0
      %v1077 = vadd.f32 0.0, %v1076
      %1078 = vmatmul.bf16.gmra.mxu0 %v1048
      %v1079 = vpop.f32.mrf.mxu0
      %v1080 = vadd.f32 0.0, %v1079
      %v1081 = vpop.f32.mrf.mxu0
      %v1082 = vadd.f32 0.0, %v1081
      %1083 = vdwg.mxu0
      %v1084 = vadd.f32 %v938, %v1060
      %v1085 = vadd.f32 %v939, %v1062
      %v1086 = vadd.f32 %v940, %v1065
      %v1087 = vadd.f32 %v941, %v1067
      %v1088 = vadd.f32 %v942, %v1070
      %v1089 = vadd.f32 %v943, %v1072
      %v1090 = vadd.f32 %v944, %v1075
      %v1091 = vadd.f32 %v945, %v1077
      %v1092 = vadd.f32 %v946, %v1080
      %v1093 = vadd.f32 %v947, %v1082
      %s1094 = scalar_lea.vmem %s1, 160
      %v1095 = vld [vmem:[%s1094] sm:$0xf]
      %v1096 = vld [vmem:[%s1094 + $0x4] sm:$0xf]
      %v1097 = vld [vmem:[%s1094 + $0x8] sm:$0xf]
      %v1098 = vld [vmem:[%s1094 + $0xc] sm:$0xf]
      %v1099 = vld [vmem:[%s1094 + $0x10] sm:$0xf]
      %v1100 = vld [vmem:[%s1094 + $0x14] sm:$0xf]
      %v1101 = vld [vmem:[%s1094 + $0x18] sm:$0xf]
      %v1102 = vld [vmem:[%s1094 + $0x1c] sm:$0xf]
      %vm1103 = vcmask 1045504
      %v1104 = vrot.slane %v848, 2
      %v1105 = vrot.slane %v849, 2
      %v1106 = vsel %vm1103, %v1104, %v1105
      %v1107 = vrot.slane %v850, 2
      %v1108 = vsel %vm1103, %v1105, %v1107
      %v1109 = vrot.slane %v851, 2
      %v1110 = vsel %vm1103, %v1107, %v1109
      %v1111 = vrot.slane %v852, 2
      %v1112 = vsel %vm1103, %v1109, %v1111
      %v1113 = vrot.slane %v853, 2
      %v1114 = vsel %vm1103, %v1111, %v1113
      %v1123 = vunpack.c.l.b16 %v1095
      %v1124 = vunpack.c.l.b16 %v1096
      %v1125 = vunpack.c.l.b16 %v1097
      %v1126 = vunpack.c.l.b16 %v1098
      %v1127 = vunpack.c.l.b16 %v1099
      %v1128 = vunpack.c.l.b16 %v1100
      %v1129 = vunpack.c.l.b16 %v1101
      %v1130 = vunpack.c.l.b16 %v1102
      %v1131 = vpack.c.b16 %v1124, %v1123
      %v1132 = vpack.c.b16 %v1126, %v1125
      %v1133 = vpack.c.b16 %v1128, %v1127
      %v1134 = vpack.c.b16 %v1130, %v1129
      %v1140 = vsel %vm615, %v1106, 0
      %v1143 = vsel %vm615, %v1108, 0
      %v1146 = vsel %vm615, %v1110, 0
      %v1149 = vsel %vm615, %v1112, 0
      %v1152 = vsel %vm615, %v1114, 0
      %1154 = vmatpush.bf16.msra.mxu0 0
      %1155 = vmatpush.bf16.msra.mxu0 0
      %1156 = vmatpush.bf16.msra.mxu0 0
      %1157 = vmatpush.bf16.msra.mxu0 0
      %1158 = vmatpush.bf16.msra.mxu0 %v1134
      %1159 = vmatpush.bf16.msra.mxu0 %v1133
      %1160 = vmatpush.bf16.msra.mxu0 %v1132
      %1161 = vmatpush.bf16.msra.mxu0 %v1131
      %1162 = vmatmul.bf16.gmra.mxu0 %v1140
      %v1163 = vpop.f32.mrf.mxu0
      %v1164 = vadd.f32 0.0, %v1163
      %v1165 = vpop.f32.mrf.mxu0
      %v1166 = vadd.f32 0.0, %v1165
      %1167 = vmatmul.bf16.gmra.mxu0 %v1143
      %v1168 = vpop.f32.mrf.mxu0
      %v1169 = vadd.f32 0.0, %v1168
      %v1170 = vpop.f32.mrf.mxu0
      %v1171 = vadd.f32 0.0, %v1170
      %1172 = vmatmul.bf16.gmra.mxu0 %v1146
      %v1173 = vpop.f32.mrf.mxu0
      %v1174 = vadd.f32 0.0, %v1173
      %v1175 = vpop.f32.mrf.mxu0
      %v1176 = vadd.f32 0.0, %v1175
      %1177 = vmatmul.bf16.gmra.mxu0 %v1149
      %v1178 = vpop.f32.mrf.mxu0
      %v1179 = vadd.f32 0.0, %v1178
      %v1180 = vpop.f32.mrf.mxu0
      %v1181 = vadd.f32 0.0, %v1180
      %1182 = vmatmul.bf16.gmra.mxu0 %v1152
      %v1183 = vpop.f32.mrf.mxu0
      %v1184 = vadd.f32 0.0, %v1183
      %v1185 = vpop.f32.mrf.mxu0
      %v1186 = vadd.f32 0.0, %v1185
      %1187 = vdwg.mxu0
      %v1188 = vadd.f32 %v1084, %v1164
      %v1189 = vadd.f32 %v1085, %v1166
      %v1190 = vadd.f32 %v1086, %v1169
      %v1191 = vadd.f32 %v1087, %v1171
      %v1192 = vadd.f32 %v1088, %v1174
      %v1193 = vadd.f32 %v1089, %v1176
      %v1194 = vadd.f32 %v1090, %v1179
      %v1195 = vadd.f32 %v1091, %v1181
      %v1196 = vadd.f32 %v1092, %v1184
      %v1197 = vadd.f32 %v1093, %v1186
      %s1198 = scalar_lea.vmem %s1, 192
      %v1199 = vld [vmem:[%s1198] sm:$0xf]
      %v1200 = vld [vmem:[%s1198 + $0x4] sm:$0xf]
      %v1201 = vld [vmem:[%s1198 + $0x8] sm:$0xf]
      %v1202 = vld [vmem:[%s1198 + $0xc] sm:$0xf]
      %v1203 = vld [vmem:[%s1198 + $0x10] sm:$0xf]
      %v1204 = vld [vmem:[%s1198 + $0x14] sm:$0xf]
      %v1205 = vld [vmem:[%s1198 + $0x18] sm:$0xf]
      %v1206 = vld [vmem:[%s1198 + $0x1c] sm:$0xf]
      %v1208 = vunpack.c.l.b16 %v500
      %v1209 = vpack.c.b16 %v847, %v539
      %v1210 = vpack.c.b16 %v1208, %v1208
      %v1211 = vrot.slane %v541, 2
      %v1212 = vrot.slane %v542, 2
      %v1213 = vsel %vm1103, %v1211, %v1212
      %v1214 = vrot.slane %v543, 2
      %v1215 = vsel %vm1103, %v1212, %v1214
      %v1216 = vrot.slane %v544, 2
      %v1217 = vsel %vm1103, %v1214, %v1216
      %v1218 = vrot.slane %v1209, 2
      %v1219 = vsel %vm1103, %v1216, %v1218
      %v1220 = vrot.slane %v1210, 2
      %v1221 = vsel %vm1103, %v1218, %v1220
      %v1230 = vunpack.c.l.b16 %v1199
      %v1231 = vunpack.c.l.b16 %v1200
      %v1232 = vunpack.c.l.b16 %v1201
      %v1233 = vunpack.c.l.b16 %v1202
      %v1234 = vunpack.c.l.b16 %v1203
      %v1235 = vunpack.c.l.b16 %v1204
      %v1236 = vunpack.c.l.b16 %v1205
      %v1237 = vunpack.c.l.b16 %v1206
      %v1238 = vpack.c.b16 %v1231, %v1230
      %v1239 = vpack.c.b16 %v1233, %v1232
      %v1240 = vpack.c.b16 %v1235, %v1234
      %v1241 = vpack.c.b16 %v1237, %v1236
      %v1247 = vsel %vm615, %v1213, 0
      %v1250 = vsel %vm615, %v1215, 0
      %v1253 = vsel %vm615, %v1217, 0
      %v1256 = vsel %vm615, %v1219, 0
      %v1259 = vsel %vm615, %v1221, 0
      %1261 = vmatpush.bf16.msra.mxu0 0
      %1262 = vmatpush.bf16.msra.mxu0 0
      %1263 = vmatpush.bf16.msra.mxu0 0
      %1264 = vmatpush.bf16.msra.mxu0 0
      %1265 = vmatpush.bf16.msra.mxu0 %v1241
      %1266 = vmatpush.bf16.msra.mxu0 %v1240
      %1267 = vmatpush.bf16.msra.mxu0 %v1239
      %1268 = vmatpush.bf16.msra.mxu0 %v1238
      %1269 = vmatmul.bf16.gmra.mxu0 %v1247
      %v1270 = vpop.f32.mrf.mxu0
      %v1271 = vadd.f32 0.0, %v1270
      %v1272 = vpop.f32.mrf.mxu0
      %v1273 = vadd.f32 0.0, %v1272
      %1274 = vmatmul.bf16.gmra.mxu0 %v1250
      %v1275 = vpop.f32.mrf.mxu0
      %v1276 = vadd.f32 0.0, %v1275
      %v1277 = vpop.f32.mrf.mxu0
      %v1278 = vadd.f32 0.0, %v1277
      %1279 = vmatmul.bf16.gmra.mxu0 %v1253
      %v1280 = vpop.f32.mrf.mxu0
      %v1281 = vadd.f32 0.0, %v1280
      %v1282 = vpop.f32.mrf.mxu0
      %v1283 = vadd.f32 0.0, %v1282
      %1284 = vmatmul.bf16.gmra.mxu0 %v1256
      %v1285 = vpop.f32.mrf.mxu0
      %v1286 = vadd.f32 0.0, %v1285
      %v1287 = vpop.f32.mrf.mxu0
      %v1288 = vadd.f32 0.0, %v1287
      %1289 = vmatmul.bf16.gmra.mxu0 %v1259
      %v1290 = vpop.f32.mrf.mxu0
      %v1291 = vadd.f32 0.0, %v1290
      %v1292 = vpop.f32.mrf.mxu0
      %v1293 = vadd.f32 0.0, %v1292
      %1294 = vdwg.mxu0
      %v1295 = vadd.f32 %v1188, %v1271
      %v1296 = vadd.f32 %v1189, %v1273
      %v1297 = vadd.f32 %v1190, %v1276
      %v1298 = vadd.f32 %v1191, %v1278
      %v1299 = vadd.f32 %v1192, %v1281
      %v1300 = vadd.f32 %v1193, %v1283
      %v1301 = vadd.f32 %v1194, %v1286
      %v1302 = vadd.f32 %v1195, %v1288
      %v1303 = vadd.f32 %v1196, %v1291
      %v1304 = vadd.f32 %v1197, %v1293
      %s1305 = scalar_lea.vmem %s1, 224
      %v1306 = vld [vmem:[%s1305] sm:$0xf]
      %v1307 = vld [vmem:[%s1305 + $0x4] sm:$0xf]
      %v1308 = vld [vmem:[%s1305 + $0x8] sm:$0xf]
      %v1309 = vld [vmem:[%s1305 + $0xc] sm:$0xf]
      %v1310 = vld [vmem:[%s1305 + $0x10] sm:$0xf]
      %v1311 = vld [vmem:[%s1305 + $0x14] sm:$0xf]
      %v1312 = vld [vmem:[%s1305 + $0x18] sm:$0xf]
      %v1313 = vld [vmem:[%s1305 + $0x1c] sm:$0xf]
      %vm1314 = vsmask.f32 5376
      %v1315 = vrot.slane %v559, 2
      %v1316 = vrot.slane %v555, 3
      %v1317 = vor.u32 %v1315, %v1316
      %v1318 = vrot.slane %v567, 2
      %v1319 = vrot.slane %v563, 3
      %v1320 = vor.u32 %v1318, %v1319
      %v1321 = vsel %vm1314, %v1317, %v1320
      %v1322 = vrot.slane %v575, 2
      %v1323 = vrot.slane %v571, 3
      %v1324 = vor.u32 %v1322, %v1323
      %v1325 = vsel %vm1314, %v1320, %v1324
      %v1326 = vrot.slane %v583, 2
      %v1327 = vrot.slane %v579, 3
      %v1328 = vor.u32 %v1326, %v1327
      %v1329 = vsel %vm1314, %v1324, %v1328
      %v1331 = vshrl.u32 %v1209, 16
      %v1333 = vrot.slane %v1331, 2
      %v1334 = vshll.u32 %v1209, 16
      %v1336 = vrot.slane %v1334, 3
      %v1337 = vor.u32 %v1333, %v1336
      %v1338 = vsel %vm1314, %v1328, %v1337
      %v1340 = vshrl.u32 %v1210, 16
      %v1342 = vrot.slane %v1340, 2
      %v1343 = vshll.u32 %v1210, 16
      %v1345 = vrot.slane %v1343, 3
      %v1346 = vor.u32 %v1342, %v1345
      %v1347 = vsel %vm1314, %v1337, %v1346
      %v1356 = vunpack.c.l.b16 %v1306
      %v1357 = vunpack.c.l.b16 %v1307
      %v1358 = vunpack.c.l.b16 %v1308
      %v1359 = vunpack.c.l.b16 %v1309
      %v1360 = vunpack.c.l.b16 %v1310
      %v1361 = vunpack.c.l.b16 %v1311
      %v1362 = vunpack.c.l.b16 %v1312
      %v1363 = vunpack.c.l.b16 %v1313
      %v1364 = vpack.c.b16 %v1357, %v1356
      %v1365 = vpack.c.b16 %v1359, %v1358
      %v1366 = vpack.c.b16 %v1361, %v1360
      %v1367 = vpack.c.b16 %v1363, %v1362
      %v1373 = vsel %vm615, %v1321, 0
      %v1376 = vsel %vm615, %v1325, 0
      %v1379 = vsel %vm615, %v1329, 0
      %v1382 = vsel %vm615, %v1338, 0
      %v1385 = vsel %vm615, %v1347, 0
      %1387 = vmatpush.bf16.msra.mxu0 0
      %1388 = vmatpush.bf16.msra.mxu0 0
      %1389 = vmatpush.bf16.msra.mxu0 0
      %1390 = vmatpush.bf16.msra.mxu0 0
      %1391 = vmatpush.bf16.msra.mxu0 %v1367
      %1392 = vmatpush.bf16.msra.mxu0 %v1366
      %1393 = vmatpush.bf16.msra.mxu0 %v1365
      %1394 = vmatpush.bf16.msra.mxu0 %v1364
      %1395 = vmatmul.bf16.gmra.mxu0 %v1373
      %v1396 = vpop.f32.mrf.mxu0
      %v1397 = vadd.f32 0.0, %v1396
      %v1398 = vpop.f32.mrf.mxu0
      %v1399 = vadd.f32 0.0, %v1398
      %1400 = vmatmul.bf16.gmra.mxu0 %v1376
      %v1401 = vpop.f32.mrf.mxu0
      %v1402 = vadd.f32 0.0, %v1401
      %v1403 = vpop.f32.mrf.mxu0
      %v1404 = vadd.f32 0.0, %v1403
      %1405 = vmatmul.bf16.gmra.mxu0 %v1379
      %v1406 = vpop.f32.mrf.mxu0
      %v1407 = vadd.f32 0.0, %v1406
      %v1408 = vpop.f32.mrf.mxu0
      %v1409 = vadd.f32 0.0, %v1408
      %1410 = vmatmul.bf16.gmra.mxu0 %v1382
      %v1411 = vpop.f32.mrf.mxu0
      %v1412 = vadd.f32 0.0, %v1411
      %v1413 = vpop.f32.mrf.mxu0
      %v1414 = vadd.f32 0.0, %v1413
      %1415 = vmatmul.bf16.gmra.mxu0 %v1385
      %v1416 = vpop.f32.mrf.mxu0
      %v1417 = vadd.f32 0.0, %v1416
      %v1418 = vpop.f32.mrf.mxu0
      %v1419 = vadd.f32 0.0, %v1418
      %1420 = vdwg.mxu0
      %v1421 = vadd.f32 %v1295, %v1397
      %v1422 = vadd.f32 %v1296, %v1399
      %v1423 = vadd.f32 %v1297, %v1402
      %v1424 = vadd.f32 %v1298, %v1404
      %v1425 = vadd.f32 %v1299, %v1407
      %v1426 = vadd.f32 %v1300, %v1409
      %v1427 = vadd.f32 %v1301, %v1412
      %v1428 = vadd.f32 %v1302, %v1414
      %v1429 = vadd.f32 %v1303, %v1417
      %v1430 = vadd.f32 %v1304, %v1419
      %s1431 = scalar_lea.vmem %s1, 256
      %v1432 = vld [vmem:[%s1431] sm:$0xf]
      %v1433 = vld [vmem:[%s1431 + $0x4] sm:$0xf]
      %v1434 = vld [vmem:[%s1431 + $0x8] sm:$0xf]
      %v1435 = vld [vmem:[%s1431 + $0xc] sm:$0xf]
      %v1436 = vld [vmem:[%s1431 + $0x10] sm:$0xf]
      %v1437 = vld [vmem:[%s1431 + $0x14] sm:$0xf]
      %v1438 = vld [vmem:[%s1431 + $0x18] sm:$0xf]
      %v1439 = vld [vmem:[%s1431 + $0x1c] sm:$0xf]
      %vm1440 = vcmask 1044480
      %v1441 = vrot.slane %v541, 3
      %v1442 = vrot.slane %v542, 3
      %v1443 = vsel %vm1440, %v1441, %v1442
      %v1444 = vrot.slane %v543, 3
      %v1445 = vsel %vm1440, %v1442, %v1444
      %v1446 = vrot.slane %v544, 3
      %v1447 = vsel %vm1440, %v1444, %v1446
      %v1448 = vrot.slane %v1209, 3
      %v1449 = vsel %vm1440, %v1446, %v1448
      %v1450 = vrot.slane %v1210, 3
      %v1451 = vsel %vm1440, %v1448, %v1450
      %v1460 = vunpack.c.l.b16 %v1432
      %v1461 = vunpack.c.l.b16 %v1433
      %v1462 = vunpack.c.l.b16 %v1434
      %v1463 = vunpack.c.l.b16 %v1435
      %v1464 = vunpack.c.l.b16 %v1436
      %v1465 = vunpack.c.l.b16 %v1437
      %v1466 = vunpack.c.l.b16 %v1438
      %v1467 = vunpack.c.l.b16 %v1439
      %v1468 = vpack.c.b16 %v1461, %v1460
      %v1469 = vpack.c.b16 %v1463, %v1462
      %v1470 = vpack.c.b16 %v1465, %v1464
      %v1471 = vpack.c.b16 %v1467, %v1466
      %v1477 = vsel %vm615, %v1443, 0
      %v1480 = vsel %vm615, %v1445, 0
      %v1483 = vsel %vm615, %v1447, 0
      %v1486 = vsel %vm615, %v1449, 0
      %v1489 = vsel %vm615, %v1451, 0
      %1491 = vmatpush.bf16.msra.mxu0 0
      %1492 = vmatpush.bf16.msra.mxu0 0
      %1493 = vmatpush.bf16.msra.mxu0 0
      %1494 = vmatpush.bf16.msra.mxu0 0
      %1495 = vmatpush.bf16.msra.mxu0 %v1471
      %1496 = vmatpush.bf16.msra.mxu0 %v1470
      %1497 = vmatpush.bf16.msra.mxu0 %v1469
      %1498 = vmatpush.bf16.msra.mxu0 %v1468
      %1499 = vmatmul.bf16.gmra.mxu0 %v1477
      %v1500 = vpop.f32.mrf.mxu0
      %v1501 = vadd.f32 0.0, %v1500
      %v1502 = vpop.f32.mrf.mxu0
      %v1503 = vadd.f32 0.0, %v1502
      %1504 = vmatmul.bf16.gmra.mxu0 %v1480
      %v1505 = vpop.f32.mrf.mxu0
      %v1506 = vadd.f32 0.0, %v1505
      %v1507 = vpop.f32.mrf.mxu0
      %v1508 = vadd.f32 0.0, %v1507
      %1509 = vmatmul.bf16.gmra.mxu0 %v1483
      %v1510 = vpop.f32.mrf.mxu0
      %v1511 = vadd.f32 0.0, %v1510
      %v1512 = vpop.f32.mrf.mxu0
      %v1513 = vadd.f32 0.0, %v1512
      %1514 = vmatmul.bf16.gmra.mxu0 %v1486
      %v1515 = vpop.f32.mrf.mxu0
      %v1516 = vadd.f32 0.0, %v1515
      %v1517 = vpop.f32.mrf.mxu0
      %v1518 = vadd.f32 0.0, %v1517
      %1519 = vmatmul.bf16.gmra.mxu0 %v1489
      %v1520 = vpop.f32.mrf.mxu0
      %v1521 = vadd.f32 0.0, %v1520
      %v1522 = vpop.f32.mrf.mxu0
      %v1523 = vadd.f32 0.0, %v1522
      %1524 = vdwg.mxu0
      %v1525 = vadd.f32 %v1421, %v1501
      %v1526 = vadd.f32 %v1422, %v1503
      %v1527 = vadd.f32 %v1423, %v1506
      %v1528 = vadd.f32 %v1424, %v1508
      %v1529 = vadd.f32 %v1425, %v1511
      %v1530 = vadd.f32 %v1426, %v1513
      %v1531 = vadd.f32 %v1427, %v1516
      %v1532 = vadd.f32 %v1428, %v1518
      %v1533 = vadd.f32 %v1429, %v1521
      %v1534 = vadd.f32 %v1430, %v1523
      %v1535 = vpack.c.bf16 %v1525, %v1525
      %v1536 = vpack.c.bf16 %v1526, %v1526
      %v1537 = vpack.c.bf16 %v1527, %v1527
      %v1538 = vpack.c.bf16 %v1528, %v1528
      %v1539 = vpack.c.bf16 %v1529, %v1529
      %v1540 = vpack.c.bf16 %v1530, %v1530
      %v1541 = vpack.c.bf16 %v1531, %v1531
      %v1542 = vpack.c.bf16 %v1532, %v1532
      %v1543 = vpack.c.bf16 %v1533, %v1533
      %v1544 = vpack.c.bf16 %v1534, %v1534
      %vm1545 = vcmask 519168
      %1546 = vst.msk [vmem:[%s316] sm:$0xf] %vm1545, %v1535
      %1547 = vst.msk [vmem:[%s316 + $0x4] sm:$0xf] %vm1545, %v1536
      %1548 = vst.msk [vmem:[%s316 + $0x8] sm:$0xf] %vm1545, %v1537
      %1549 = vst.msk [vmem:[%s316 + $0xc] sm:$0xf] %vm1545, %v1538
      %1550 = vst.msk [vmem:[%s316 + $0x10] sm:$0xf] %vm1545, %v1539
      %1551 = vst.msk [vmem:[%s316 + $0x14] sm:$0xf] %vm1545, %v1540
      %1552 = vst.msk [vmem:[%s316 + $0x18] sm:$0xf] %vm1545, %v1541
      %1553 = vst.msk [vmem:[%s316 + $0x1c] sm:$0xf] %vm1545, %v1542
      %1554 = vst.msk [vmem:[%s316 + $0x20] sm:$0xf] %vm1545, %v1543
      %1555 = vst.msk [vmem:[%s316 + $0x24] sm:$0xf] %vm1545, %v1544
      %v1556 = vld [vmem:[%s2] sm:$0xff]
      %v1557 = vld [vmem:[%s2 + $0x8] sm:$0xff]
      %v1558 = vld [vmem:[%s2 + $0x10] sm:$0xff]
      %v1559 = vld [vmem:[%s2 + $0x18] sm:$0xff]
      %v1560 = vld [vmem:[%s2 + $0x20] sm:$0xff]
      %v1561 = vld [vmem:[%s2 + $0x28] sm:$0xff]
      %v1562 = vld [vmem:[%s2 + $0x30] sm:$0xff]
      %v1563 = vld [vmem:[%s2 + $0x38] sm:$0xff]
      %v1564 = vld [vmem:[%s2 + $0x40] sm:$0xff]
      %v1565 = vld [vmem:[%s2 + $0x48] sm:$0xff]
      %1567 = vset.pattern.permute.xlu0 0
      %1568 = vperm.xlu0 %1567, %v1556
      %v1569 = vpop.permute.xlu0 %1568
      %1572 = vset.pattern.permute.xlu0 0
      %1573 = vperm.xlu0 %1572, %v1557
      %v1574 = vpop.permute.xlu0 %1573
      %1577 = vset.pattern.permute.xlu0 0
      %1578 = vperm.xlu0 %1577, %v1558
      %v1579 = vpop.permute.xlu0 %1578
      %1582 = vset.pattern.permute.xlu0 0
      %1583 = vperm.xlu0 %1582, %v1559
      %v1584 = vpop.permute.xlu0 %1583
      %1587 = vset.pattern.permute.xlu0 0
      %1588 = vperm.xlu0 %1587, %v1560
      %v1589 = vpop.permute.xlu0 %1588
      %1592 = vset.pattern.permute.xlu0 0
      %1593 = vperm.xlu0 %1592, %v1561
      %v1594 = vpop.permute.xlu0 %1593
      %1597 = vset.pattern.permute.xlu0 0
      %1598 = vperm.xlu0 %1597, %v1562
      %v1599 = vpop.permute.xlu0 %1598
      %1602 = vset.pattern.permute.xlu0 0
      %1603 = vperm.xlu0 %1602, %v1563
      %v1604 = vpop.permute.xlu0 %1603
      %1607 = vset.pattern.permute.xlu0 0
      %1608 = vperm.xlu0 %1607, %v1564
      %v1609 = vpop.permute.xlu0 %1608
      %1612 = vset.pattern.permute.xlu0 0
      %1613 = vperm.xlu0 %1612, %v1565
      %v1614 = vpop.permute.xlu0 %1613
      %v1616 = vmul.f32 %v1525, %v1569
      %v1617 = vmul.f32 %v1526, %v1574
      %v1618 = vmul.f32 %v1527, %v1579
      %v1619 = vmul.f32 %v1528, %v1584
      %v1620 = vmul.f32 %v1529, %v1589
      %v1621 = vmul.f32 %v1530, %v1594
      %v1622 = vmul.f32 %v1531, %v1599
      %v1623 = vmul.f32 %v1532, %v1604
      %v1624 = vmul.f32 %v1533, %v1609
      %v1625 = vmul.f32 %v1534, %v1614
      %v1626 = vsel %vm615, %v1616, 0.0
      %v1627 = vsel %vm615, %v1617, 0.0
      %v1628 = vadd.f32 %v1626, %v1627
      %v1629 = vsel %vm615, %v1618, 0.0
      %v1630 = vadd.f32 %v1628, %v1629
      %v1631 = vsel %vm615, %v1619, 0.0
      %v1632 = vadd.f32 %v1630, %v1631
      %v1633 = vsel %vm615, %v1620, 0.0
      %v1634 = vadd.f32 %v1632, %v1633
      %v1635 = vsel %vm615, %v1621, 0.0
      %v1636 = vadd.f32 %v1634, %v1635
      %v1637 = vsel %vm615, %v1622, 0.0
      %v1638 = vadd.f32 %v1636, %v1637
      %v1639 = vsel %vm615, %v1623, 0.0
      %v1640 = vadd.f32 %v1638, %v1639
      %v1641 = vsel %vm615, %v1624, 0.0
      %v1642 = vadd.f32 %v1640, %v1641
      %v1643 = vsel %vm615, %v1625, 0.0
      %v1644 = vadd.f32 %v1642, %v1643
      %v1645 = vrot.slane %v1644, 4
      %v1646 = vadd.f32 %v1644, %v1645
      %v1647 = vrot.slane %v1646, 2
      %v1648 = vadd.f32 %v1646, %v1647
      %v1649 = vrot.slane %v1648, 1
      %v1650 = vadd.f32 %v1648, %v1649
      %vm1651 = vcmask 516096
      %1652 = vst.msk [vmem:[%s319] sm:$0x1] %vm1651, %v1650
      %v1653 = vmul.f32 %v1616, %v1525
      %v1654 = vmul.f32 %v1617, %v1526
      %v1655 = vmul.f32 %v1618, %v1527
      %v1656 = vmul.f32 %v1619, %v1528
      %v1657 = vmul.f32 %v1620, %v1529
      %v1658 = vmul.f32 %v1621, %v1530
      %v1659 = vmul.f32 %v1622, %v1531
      %v1660 = vmul.f32 %v1623, %v1532
      %v1661 = vmul.f32 %v1624, %v1533
      %v1662 = vmul.f32 %v1625, %v1534
      %v1663 = vsel %vm615, %v1653, 0.0
      %v1664 = vsel %vm615, %v1654, 0.0
      %v1665 = vadd.f32 %v1663, %v1664
      %v1666 = vsel %vm615, %v1655, 0.0
      %v1667 = vadd.f32 %v1665, %v1666
      %v1668 = vsel %vm615, %v1656, 0.0
      %v1669 = vadd.f32 %v1667, %v1668
      %v1670 = vsel %vm615, %v1657, 0.0
      %v1671 = vadd.f32 %v1669, %v1670
      %v1672 = vsel %vm615, %v1658, 0.0
      %v1673 = vadd.f32 %v1671, %v1672
      %v1674 = vsel %vm615, %v1659, 0.0
      %v1675 = vadd.f32 %v1673, %v1674
      %v1676 = vsel %vm615, %v1660, 0.0
      %v1677 = vadd.f32 %v1675, %v1676
      %v1678 = vsel %vm615, %v1661, 0.0
      %v1679 = vadd.f32 %v1677, %v1678
      %v1680 = vsel %vm615, %v1662, 0.0
      %v1681 = vadd.f32 %v1679, %v1680
      %v1682 = vrot.slane %v1681, 4
      %v1683 = vadd.f32 %v1681, %v1682
      %v1684 = vrot.slane %v1683, 2
      %v1685 = vadd.f32 %v1683, %v1684
      %v1686 = vrot.slane %v1685, 1
      %v1687 = vadd.f32 %v1685, %v1686
      %1688 = vst.msk [vmem:[%s322] sm:$0x1] %vm1651, %v1687
      %p1689 = scmp.lt.s32.totalorder %s20, 1
      %s1690 = scalar_select %p1689, %s20, 1
      %s1691 = smul.addr %s1690, 10
      %s1692 = smul.addr %s1691, 4
      %s1693 = scalar_lea.vmem %s6, %s1692
      %p1694 = scmp.lt.s32.totalorder %s20, 1
      %s1695 = scalar_select %p1694, %s20, 1
      %s1696 = scalar_lea.vmem %s7, %s1695
      %p1697 = scmp.lt.s32.totalorder %s20, 1
      %s1698 = scalar_select %p1697, %s20, 1
      %s1699 = scalar_lea.vmem %s8, %s1698
      // Predicated region
      $region45: #{forward.8} parent=43 // pred_check
        %p1700 = pneg %p169
      $region46: #{forward.8} parent=43 // pred_check_branch
        %1702 = sbr.rel (%p1700) target = $region48
      $region47: #{forward.8} parent=43 // pred_region
        _
      $region48: #{forward.8} parent=43 // pred_fallthru
        _
      // Predicated region
      $region49: #{forward.8} parent=43 // pred_check
        %p1703 = pneg %p195
      $region50: #{forward.8} parent=43 // pred_check_branch
        %1705 = sbr.rel (%p1703) target = $region52
      $region51: #{forward.8} parent=43 // pred_region
        _
      $region52: #{forward.8} parent=43 // pred_fallthru
        _
      // Predicated region
      $region53: #{forward.8} parent=43 // pred_check
        %p1706 = pneg %p221
      $region54: #{forward.8} parent=43 // pred_check_branch
        %1708 = sbr.rel (%p1706) target = $region56
      $region55: #{forward.8} parent=43 // pred_region
        _
      $region56: #{forward.8} parent=43 // pred_fallthru
        _
    $region44: #{forward.8} parent=5 // pred_fallthru
      _
    %p1709 = scmp.le.s32.totalorder 2, %s15
    // Predicated region
    $region57: #{forward.8} parent=5 // pred_check
      %p1710 = pneg %p1709
    $region58: #{forward.8} parent=5 // pred_check_branch
      %1712 = sbr.rel (%p1710) target = $region60
    $region59: #{forward.8} parent=5 // pred_region
      %s1713 = ssub.s32 %s15, 2
      // Predicated region
      $region61: #{forward.8} parent=59 // pred_check
        %p1714 = pneg %p175
      $region62: #{forward.8} parent=59 // pred_check_branch
        %1716 = sbr.rel (%p1714) target = $region64
      $region63: #{forward.8} parent=59 // pred_region
        %p1717 = scmp.lt.s32.totalorder %s21, 1
        %s1718 = scalar_select %p1717, %s21, 1
        %s1719 = smul.addr %s1718, 10
        %s1720 = smul.addr %s1719, 4
        %s1721 = scalar_lea.vmem %s6, %s1720
      $region64: #{forward.8} parent=59 // pred_fallthru
        _
      // Predicated region
      $region65: #{forward.8} parent=59 // pred_check
        %p1722 = pneg %p201
      $region66: #{forward.8} parent=59 // pred_check_branch
        %1724 = sbr.rel (%p1722) target = $region68
      $region67: #{forward.8} parent=59 // pred_region
        %p1725 = scmp.lt.s32.totalorder %s21, 1
        %s1726 = scalar_select %p1725, %s21, 1
        %s1727 = scalar_lea.vmem %s7, %s1726
      $region68: #{forward.8} parent=59 // pred_fallthru
        _
      // Predicated region
      $region69: #{forward.8} parent=59 // pred_check
        %p1728 = pneg %p227
      $region70: #{forward.8} parent=59 // pred_check_branch
        %1730 = sbr.rel (%p1728) target = $region72
      $region71: #{forward.8} parent=59 // pred_region
        %p1731 = scmp.lt.s32.totalorder %s21, 1
        %s1732 = scalar_select %p1731, %s21, 1
        %s1733 = scalar_lea.vmem %s8, %s1732
      $region72: #{forward.8} parent=59 // pred_fallthru
        _
    $region60: #{forward.8} parent=5 // pred_fallthru
      _
  $region6: #{forward.8} parent=0 // loop_footer
    %s19 = sadd.s32 1, %s15
  $region7: #{forward.8} parent=0 // loop_footer_branch
    %14 = sbr.rel target = $region3
  $region8: #{forward.8} parent=0 // loop_exit
    _

// kernel: forward.10
$region0: #{forward.10}
  #allocation0 [shape = 'u32[]', space=smem, size = 0x4, offset = 0x4, fixed_abs, tag = 'smem constant byte address 0x4 - core index']
  #allocation1 [shape = 'u32[72,128]{1,0:T(1,128)}', space=vmem, size = 0x9000, scoped, tag = 'internal scratch']
  %s0 = inlined_call_operand.vmem [shape: bf16[64,128], index: 0, kind: input, shape index: {}]
  %s1 = inlined_call_operand.vmem [shape: f32[1,128], index: 1, kind: input, shape index: {}]
  %s2 = inlined_call_operand.vmem [shape: f32[1,128], index: 2, kind: input, shape index: {}]
  %s3 = inlined_call_operand.vmem [shape: bf16[64,128], index: 3, kind: input, shape index: {}]
  %s4 = inlined_call_operand.vmem [shape: f32[1,128], index: 4, kind: input, shape index: {}]
  %s5 = inlined_call_operand.vmem [shape: f32[1,128], index: 5, kind: input, shape index: {}]
  %s6 = inlined_call_operand.vmem [shape: bf16[64,128], index: 6, kind: output, shape index: {}]
  %s7 = sld [smem:[#allocation0]]
  $region57: #{forward.10} parent=0
    _
  %s9 = ssub.s32 1, %s7
  %s10 = scalar_select 0, %s9, %s7
  loop: start=0, step=1, limit=4
  $region2: #{forward.10} parent=0 // loop_pre_header
    _
  $region3: #{forward.10} parent=0 // loop_header
    %s12 = sphi 0, %s16
    %p13 = scmp.ge.s32.totalorder %s12, 4
    %s22 = sphi 0, %s24
    %s25 = sphi 0, %s22
    %s26 = sphi 0, %s25
    %s42 = sphi 0, %s26
    %s46 = sphi 0, %s46
    %s48 = sphi 0, %s46
    %s49 = sphi 0, %s48
    %s63 = sphi 0, %s49
    %s67 = sphi 0, %s67
    %s69 = sphi 0, %s67
    %s70 = sphi 0, %s69
    %s84 = sphi 0, %s70
    %s90 = sphi 0, %s92
    %s93 = sphi 0, %s90
    %s94 = sphi 0, %s93
    %s110 = sphi 0, %s94
    %s114 = sphi 0, %s114
    %s116 = sphi 0, %s114
    %s117 = sphi 0, %s116
    %s131 = sphi 0, %s117
    %s135 = sphi 0, %s135
    %s137 = sphi 0, %s135
    %s138 = sphi 0, %s137
    %s152 = sphi 0, %s138
    %s158 = sphi 0, %s160
    %s161 = sphi 0, %s158
    %s162 = sphi 0, %s161
    %s178 = sphi 0, %s162
  $region4: #{forward.10} parent=0 // loop_header_branch
    %15 = sbr.rel (%p13) target = $region8
  $region5: #{forward.10} parent=0 // loop_body
    %s17 = ssub.s32 %s12, 1
    %s18 = ssub.s32 %s12, 2
    %s19 = sadd.s32 %s12, 1
    %s20 = ssub.s32 %s12, %s19
    %p21 = scmp.eq.s32.totalorder %s20, 0
    %s23 = sadd.s32 %s22, 1
    %s24 = scalar_select %p21, %s22, %s23
    %p27 = pneg %p21
    %p28 = scmp.eq.s32.totalorder %s12, 1
    %p29 = por %p27, %p28
    %p30 = scmp.ne.s32.totalorder %s22, %s25
    %p31 = scmp.eq.s32.totalorder %s12, 0
    %p32 = por %p30, %p31
    %p33 = scmp.ne.s32.totalorder %s22, %s25
    %p34 = scmp.eq.s32.totalorder %s17, 1
    %p35 = por %p33, %p34
    %p36 = scmp.ne.s32.totalorder %s25, %s26
    %p37 = scmp.eq.s32.totalorder %s17, 0
    %p38 = por %p36, %p37
    %p39 = scmp.ne.s32.totalorder %s25, %s26
    %p40 = scmp.eq.s32.totalorder %s18, 1
    %p41 = por %p39, %p40
    %p43 = scmp.ne.s32.totalorder %s26, %s42
    %p44 = scmp.eq.s32.totalorder %s18, 0
    %p45 = por %p43, %p44
    %s47 = sadd.s32 %s46, 1
    %p50 = scmp.eq.s32.totalorder %s12, 1
    %p51 = scmp.ne.s32.totalorder %s46, %s48
    %p52 = scmp.eq.s32.totalorder %s12, 0
    %p53 = por %p51, %p52
    %p54 = scmp.ne.s32.totalorder %s46, %s48
    %p55 = scmp.eq.s32.totalorder %s17, 1
    %p56 = por %p54, %p55
    %p57 = scmp.ne.s32.totalorder %s48, %s49
    %p58 = scmp.eq.s32.totalorder %s17, 0
    %p59 = por %p57, %p58
    %p60 = scmp.ne.s32.totalorder %s48, %s49
    %p61 = scmp.eq.s32.totalorder %s18, 1
    %p62 = por %p60, %p61
    %p64 = scmp.ne.s32.totalorder %s49, %s63
    %p65 = scmp.eq.s32.totalorder %s18, 0
    %p66 = por %p64, %p65
    %s68 = sadd.s32 %s67, 1
    %p71 = scmp.eq.s32.totalorder %s12, 1
    %p72 = scmp.ne.s32.totalorder %s67, %s69
    %p73 = scmp.eq.s32.totalorder %s12, 0
    %p74 = por %p72, %p73
    %p75 = scmp.ne.s32.totalorder %s67, %s69
    %p76 = scmp.eq.s32.totalorder %s17, 1
    %p77 = por %p75, %p76
    %p78 = scmp.ne.s32.totalorder %s69, %s70
    %p79 = scmp.eq.s32.totalorder %s17, 0
    %p80 = por %p78, %p79
    %p81 = scmp.ne.s32.totalorder %s69, %s70
    %p82 = scmp.eq.s32.totalorder %s18, 1
    %p83 = por %p81, %p82
    %p85 = scmp.ne.s32.totalorder %s70, %s84
    %p86 = scmp.eq.s32.totalorder %s18, 0
    %p87 = por %p85, %p86
    %s88 = ssub.s32 %s12, %s19
    %p89 = scmp.eq.s32.totalorder %s88, 0
    %s91 = sadd.s32 %s90, 1
    %s92 = scalar_select %p89, %s90, %s91
    %p95 = pneg %p89
    %p96 = scmp.eq.s32.totalorder %s12, 1
    %p97 = por %p95, %p96
    %p98 = scmp.ne.s32.totalorder %s90, %s93
    %p99 = scmp.eq.s32.totalorder %s12, 0
    %p100 = por %p98, %p99
    %p101 = scmp.ne.s32.totalorder %s90, %s93
    %p102 = scmp.eq.s32.totalorder %s17, 1
    %p103 = por %p101, %p102
    %p104 = scmp.ne.s32.totalorder %s93, %s94
    %p105 = scmp.eq.s32.totalorder %s17, 0
    %p106 = por %p104, %p105
    %p107 = scmp.ne.s32.totalorder %s93, %s94
    %p108 = scmp.eq.s32.totalorder %s18, 1
    %p109 = por %p107, %p108
    %p111 = scmp.ne.s32.totalorder %s94, %s110
    %p112 = scmp.eq.s32.totalorder %s18, 0
    %p113 = por %p111, %p112
    %s115 = sadd.s32 %s114, 1
    %p118 = scmp.eq.s32.totalorder %s12, 1
    %p119 = scmp.ne.s32.totalorder %s114, %s116
    %p120 = scmp.eq.s32.totalorder %s12, 0
    %p121 = por %p119, %p120
    %p122 = scmp.ne.s32.totalorder %s114, %s116
    %p123 = scmp.eq.s32.totalorder %s17, 1
    %p124 = por %p122, %p123
    %p125 = scmp.ne.s32.totalorder %s116, %s117
    %p126 = scmp.eq.s32.totalorder %s17, 0
    %p127 = por %p125, %p126
    %p128 = scmp.ne.s32.totalorder %s116, %s117
    %p129 = scmp.eq.s32.totalorder %s18, 1
    %p130 = por %p128, %p129
    %p132 = scmp.ne.s32.totalorder %s117, %s131
    %p133 = scmp.eq.s32.totalorder %s18, 0
    %p134 = por %p132, %p133
    %s136 = sadd.s32 %s135, 1
    %p139 = scmp.eq.s32.totalorder %s12, 1
    %p140 = scmp.ne.s32.totalorder %s135, %s137
    %p141 = scmp.eq.s32.totalorder %s12, 0
    %p142 = por %p140, %p141
    %p143 = scmp.ne.s32.totalorder %s135, %s137
    %p144 = scmp.eq.s32.totalorder %s17, 1
    %p145 = por %p143, %p144
    %p146 = scmp.ne.s32.totalorder %s137, %s138
    %p147 = scmp.eq.s32.totalorder %s17, 0
    %p148 = por %p146, %p147
    %p149 = scmp.ne.s32.totalorder %s137, %s138
    %p150 = scmp.eq.s32.totalorder %s18, 1
    %p151 = por %p149, %p150
    %p153 = scmp.ne.s32.totalorder %s138, %s152
    %p154 = scmp.eq.s32.totalorder %s18, 0
    %p155 = por %p153, %p154
    %s156 = ssub.s32 %s12, %s19
    %p157 = scmp.eq.s32.totalorder %s156, 0
    %s159 = sadd.s32 %s158, 1
    %s160 = scalar_select %p157, %s158, %s159
    %p163 = pneg %p157
    %p164 = scmp.eq.s32.totalorder %s12, 1
    %p165 = por %p163, %p164
    %p166 = scmp.ne.s32.totalorder %s158, %s161
    %p167 = scmp.eq.s32.totalorder %s12, 0
    %p168 = por %p166, %p167
    %p169 = scmp.ne.s32.totalorder %s158, %s161
    %p170 = scmp.eq.s32.totalorder %s17, 1
    %p171 = por %p169, %p170
    %p172 = scmp.ne.s32.totalorder %s161, %s162
    %p173 = scmp.eq.s32.totalorder %s17, 0
    %p174 = por %p172, %p173
    %p175 = scmp.ne.s32.totalorder %s161, %s162
    %p176 = scmp.eq.s32.totalorder %s18, 1
    %p177 = por %p175, %p176
    %p179 = scmp.ne.s32.totalorder %s162, %s178
    %p180 = scmp.eq.s32.totalorder %s18, 0
    %p181 = por %p179, %p180
    %p182 = scmp.le.s32.totalorder 1, %s12
    %p183 = scmp.lt.s32.totalorder %s12, 3
    %p184 = pnand %p182, %p183
    %p185 = pneg %p184
    // Predicated region
    $region9: #{forward.10} parent=5 // pred_check
      _
    $region10: #{forward.10} parent=5 // pred_check_branch
      %187 = sbr.rel (%p184) target = $region12
    $region11: #{forward.10} parent=5 // pred_region
      %s188 = ssub.s32 %s12, 1
      // Predicated region
      $region13: #{forward.10} parent=11 // pred_check
        %p189 = pneg %p59
      $region14: #{forward.10} parent=11 // pred_check_branch
        %191 = sbr.rel (%p189) target = $region16
      $region15: #{forward.10} parent=11 // pred_region
        _
      $region16: #{forward.10} parent=11 // pred_fallthru
        _
      // Predicated region
      $region17: #{forward.10} parent=11 // pred_check
        %p192 = pneg %p80
      $region18: #{forward.10} parent=11 // pred_check_branch
        %194 = sbr.rel (%p192) target = $region20
      $region19: #{forward.10} parent=11 // pred_region
        _
      $region20: #{forward.10} parent=11 // pred_fallthru
        _
      // Predicated region
      $region21: #{forward.10} parent=11 // pred_check
        %p195 = pneg %p127
      $region22: #{forward.10} parent=11 // pred_check_branch
        %197 = sbr.rel (%p195) target = $region24
      $region23: #{forward.10} parent=11 // pred_region
        _
      $region24: #{forward.10} parent=11 // pred_fallthru
        _
      // Predicated region
      $region25: #{forward.10} parent=11 // pred_check
        %p198 = pneg %p148
      $region26: #{forward.10} parent=11 // pred_check_branch
        %200 = sbr.rel (%p198) target = $region28
      $region27: #{forward.10} parent=11 // pred_region
        _
      $region28: #{forward.10} parent=11 // pred_fallthru
        _
    $region12: #{forward.10} parent=5 // pred_fallthru
      _
    %p201 = scmp.lt.s32.totalorder %s12, 2
    // Predicated region
    $region29: #{forward.10} parent=5 // pred_check
      %p202 = pneg %p201
    $region30: #{forward.10} parent=5 // pred_check_branch
      %204 = sbr.rel (%p202) target = $region32
    $region31: #{forward.10} parent=5 // pred_region
      // Predicated region
      $region33: #{forward.10} parent=31 // pred_check
        %p205 = pneg %p32
      $region34: #{forward.10} parent=31 // pred_check_branch
        %207 = sbr.rel (%p205) target = $region36
      $region35: #{forward.10} parent=31 // pred_region
        %s208 = smul.u32 4, %s12
        %p209 = scmp.lt.s32.totalorder %s208, 7
        %s210 = scalar_select %p209, %s208, 7
        %s211 = smul.addr %s210, 4
        %s212 = scalar_lea.vmem %s0, %s211
        %s213 = smul.u32 4, %s12
      $region36: #{forward.10} parent=31 // pred_fallthru
        _
      // Predicated region
      $region37: #{forward.10} parent=31 // pred_check
        %p214 = pneg %p100
      $region38: #{forward.10} parent=31 // pred_check_branch
        %216 = sbr.rel (%p214) target = $region40
      $region39: #{forward.10} parent=31 // pred_region
        %s217 = smul.u32 4, %s12
        %p218 = scmp.lt.s32.totalorder %s217, 7
        %s219 = scalar_select %p218, %s217, 7
        %s220 = smul.addr %s219, 4
        %s221 = scalar_lea.vmem %s3, %s220
        %s222 = smul.u32 4, %s12
      $region40: #{forward.10} parent=31 // pred_fallthru
        _
    $region32: #{forward.10} parent=5 // pred_fallthru
      _
    %p223 = scmp.le.s32.totalorder 1, %s12
    %p224 = scmp.lt.s32.totalorder %s12, 3
    %p225 = pnand %p223, %p224
    %p226 = pneg %p225
    // Predicated region
    $region41: #{forward.10} parent=5 // pred_check
      _
    $region42: #{forward.10} parent=5 // pred_check_branch
      %228 = sbr.rel (%p225) target = $region44
    $region43: #{forward.10} parent=5 // pred_region
      %s229 = ssub.s32 %s12, 1
      %s230 = smul.u32 4, %s17
      %p231 = scmp.lt.s32.totalorder %s230, 7
      %s232 = scalar_select %p231, %s230, 7
      %s233 = smul.addr %s232, 4
      %s234 = scalar_lea.vmem %s0, %s233
      %p235 = pneg %p38
      %p236 = pneg %p35
      %p237 = pneg %p59
      %p238 = pneg %p56
      %p239 = pneg %p80
      %p240 = pneg %p77
      %s241 = smul.u32 4, %s17
      %p242 = scmp.lt.s32.totalorder %s241, 7
      %s243 = scalar_select %p242, %s241, 7
      %s244 = smul.addr %s243, 4
      %s245 = scalar_lea.vmem %s3, %s244
      %p246 = pneg %p106
      %p247 = pneg %p103
      %p248 = pneg %p127
      %p249 = pneg %p124
      %p250 = pneg %p148
      %p251 = pneg %p145
      %p252 = pneg %p174
      %p253 = pneg %p171
      %s254 = smul.u32 4, %s17
      %p255 = scmp.lt.s32.totalorder %s254, 7
      %s256 = scalar_select %p255, %s254, 7
      %s257 = smul.addr %s256, 4
      %s258 = scalar_lea.vmem %s6, %s257
      %s259 = smul.u32 4, %s17
      %p260 = scmp.lt.s32.totalorder %s259, 7
      %s261 = scalar_select %p260, %s259, 7
      %s262 = smul.addr %s261, 4
      %s263 = scalar_lea.vmem %s0, %s262
      %s264 = smul.u32 4, %s17
      %s265 = smul.u32 4, %s17
      %p266 = scmp.lt.s32.totalorder %s265, 7
      %s267 = scalar_select %p266, %s265, 7
      %s268 = smul.addr %s267, 4
      %s269 = scalar_lea.vmem %s3, %s268
      %s270 = smul.u32 4, %s17
      %s271 = smul.u32 4, %s17
      %p272 = scmp.lt.s32.totalorder %s271, 7
      %s273 = scalar_select %p272, %s271, 7
      %s274 = smul.addr %s273, 4
      %s275 = scalar_lea.vmem %s6, %s274
      %s276 = smul.u32 4, %s17
      %v277 = vld [vmem:[%s263] sm:$0xf]
      %v278 = vld [vmem:[%s263 + $0x4] sm:$0xf]
      %v279 = vld [vmem:[%s263 + $0x8] sm:$0xf]
      %v280 = vld [vmem:[%s263 + $0xc] sm:$0xf]
      %v281 = vunpack.c.l.bf16 %v277
      %v282 = vunpack.c.l.bf16 %v278
      %v283 = vunpack.c.l.bf16 %v279
      %v284 = vunpack.c.l.bf16 %v280
      %v285 = vld [vmem:[%s1] sm:$0x1]
      %v287 = vperm.slane %v285, 0
      %v289 = vmul.f32 %v281, %v287
      %v290 = vmul.f32 %v282, %v287
      %v291 = vmul.f32 %v283, %v287
      %v292 = vmul.f32 %v284, %v287
      %v293 = vld [vmem:[%s2] sm:$0x1]
      %v295 = vperm.slane %v293, 0
      %v297 = vadd.f32 %v289, %v295
      %v298 = vadd.f32 %v290, %v295
      %v299 = vadd.f32 %v291, %v295
      %v300 = vadd.f32 %v292, %v295
      %v301 = vld [vmem:[%s269] sm:$0xf]
      %v302 = vld [vmem:[%s269 + $0x4] sm:$0xf]
      %v303 = vld [vmem:[%s269 + $0x8] sm:$0xf]
      %v304 = vld [vmem:[%s269 + $0xc] sm:$0xf]
      %v305 = vunpack.c.l.bf16 %v301
      %v306 = vunpack.c.l.bf16 %v302
      %v307 = vunpack.c.l.bf16 %v303
      %v308 = vunpack.c.l.bf16 %v304
      %v309 = vld [vmem:[%s4] sm:$0x1]
      %v311 = vperm.slane %v309, 0
      %v313 = vmul.f32 %v305, %v311
      %v314 = vmul.f32 %v306, %v311
      %v315 = vmul.f32 %v307, %v311
      %v316 = vmul.f32 %v308, %v311
      %v317 = vadd.f32 %v297, %v313
      %v318 = vadd.f32 %v298, %v314
      %v319 = vadd.f32 %v299, %v315
      %v320 = vadd.f32 %v300, %v316
      %v321 = vld [vmem:[%s5] sm:$0x1]
      %v323 = vperm.slane %v321, 0
      %v325 = vadd.f32 %v317, %v323
      %v326 = vadd.f32 %v318, %v323
      %v327 = vadd.f32 %v319, %v323
      %v328 = vadd.f32 %v320, %v323
      %v329 = vmax.f32 %v325, 0.0
      %v330 = vmax.f32 %v326, 0.0
      %v331 = vmax.f32 %v327, 0.0
      %v332 = vmax.f32 %v328, 0.0
      %v333 = vpack.c.bf16 %v329, %v329
      %v334 = vpack.c.bf16 %v330, %v330
      %v335 = vpack.c.bf16 %v331, %v331
      %v336 = vpack.c.bf16 %v332, %v332
      %337 = vst [vmem:[%s275] sm:$0xf] %v333
      %338 = vst [vmem:[%s275 + $0x4] sm:$0xf] %v334
      %339 = vst [vmem:[%s275 + $0x8] sm:$0xf] %v335
      %340 = vst [vmem:[%s275 + $0xc] sm:$0xf] %v336
      %s341 = smul.u32 4, %s17
      %p342 = scmp.lt.s32.totalorder %s341, 7
      %s343 = scalar_select %p342, %s341, 7
      %s344 = smul.addr %s343, 4
      %s345 = scalar_lea.vmem %s6, %s344
      // Predicated region
      $region45: #{forward.10} parent=43 // pred_check
        %p346 = pneg %p171
      $region46: #{forward.10} parent=43 // pred_check_branch
        %348 = sbr.rel (%p346) target = $region48
      $region47: #{forward.10} parent=43 // pred_region
        %s349 = smul.u32 4, %s17
      $region48: #{forward.10} parent=43 // pred_fallthru
        _
    $region44: #{forward.10} parent=5 // pred_fallthru
      _
    %p350 = scmp.le.s32.totalorder 2, %s12
    // Predicated region
    $region49: #{forward.10} parent=5 // pred_check
      %p351 = pneg %p350
    $region50: #{forward.10} parent=5 // pred_check_branch
      %353 = sbr.rel (%p351) target = $region52
    $region51: #{forward.10} parent=5 // pred_region
      %s354 = ssub.s32 %s12, 2
      // Predicated region
      $region53: #{forward.10} parent=51 // pred_check
        %p355 = pneg %p177
      $region54: #{forward.10} parent=51 // pred_check_branch
        %357 = sbr.rel (%p355) target = $region56
      $region55: #{forward.10} parent=51 // pred_region
        %s358 = smul.u32 4, %s18
        %p359 = scmp.lt.s32.totalorder %s358, 7
        %s360 = scalar_select %p359, %s358, 7
        %s361 = smul.addr %s360, 4
        %s362 = scalar_lea.vmem %s6, %s361
      $region56: #{forward.10} parent=51 // pred_fallthru
        _
    $region52: #{forward.10} parent=5 // pred_fallthru
      _
  $region6: #{forward.10} parent=0 // loop_footer
    %s16 = sadd.s32 1, %s12
  $region7: #{forward.10} parent=0 // loop_footer_branch
    %11 = sbr.rel target = $region3
  $region8: #{forward.10} parent=0 // loop_exit
    _

// kernel: forward.13
$region0: #{forward.13}
  #allocation0 [shape = 'u32[]', space=smem, size = 0x4, offset = 0x4, fixed_abs, tag = 'smem constant byte address 0x4 - core index']
  #allocation1 [shape = 'u32[72,128]{1,0:T(1,128)}', space=vmem, size = 0x9000, scoped, tag = 'internal scratch']
  %s0 = inlined_call_operand.vmem [shape: bf16[64,128], index: 0, kind: input, shape index: {}]
  %s1 = inlined_call_operand.vmem [shape: f32[1,128], index: 1, kind: input, shape index: {}]
  %s2 = inlined_call_operand.vmem [shape: f32[1,128], index: 2, kind: input, shape index: {}]
  %s3 = inlined_call_operand.vmem [shape: bf16[64,128], index: 3, kind: input, shape index: {}]
  %s4 = inlined_call_operand.vmem [shape: bf16[64,128], index: 4, kind: output, shape index: {}]
  %s5 = sld [smem:[#allocation0]]
  $region49: #{forward.13} parent=0
    _
  %s7 = ssub.s32 1, %s5
  %s8 = scalar_select 0, %s7, %s5
  loop: start=0, step=1, limit=4
  $region2: #{forward.13} parent=0 // loop_pre_header
    _
  $region3: #{forward.13} parent=0 // loop_header
    %s10 = sphi 0, %s14
    %p11 = scmp.ge.s32.totalorder %s10, 4
    %s20 = sphi 0, %s22
    %s23 = sphi 0, %s20
    %s24 = sphi 0, %s23
    %s40 = sphi 0, %s24
    %s44 = sphi 0, %s44
    %s46 = sphi 0, %s44
    %s47 = sphi 0, %s46
    %s61 = sphi 0, %s47
    %s65 = sphi 0, %s65
    %s67 = sphi 0, %s65
    %s68 = sphi 0, %s67
    %s82 = sphi 0, %s68
    %s88 = sphi 0, %s90
    %s91 = sphi 0, %s88
    %s92 = sphi 0, %s91
    %s108 = sphi 0, %s92
    %s114 = sphi 0, %s116
    %s117 = sphi 0, %s114
    %s118 = sphi 0, %s117
    %s134 = sphi 0, %s118
  $region4: #{forward.13} parent=0 // loop_header_branch
    %13 = sbr.rel (%p11) target = $region8
  $region5: #{forward.13} parent=0 // loop_body
    %s15 = ssub.s32 %s10, 1
    %s16 = ssub.s32 %s10, 2
    %s17 = sadd.s32 %s10, 1
    %s18 = ssub.s32 %s10, %s17
    %p19 = scmp.eq.s32.totalorder %s18, 0
    %s21 = sadd.s32 %s20, 1
    %s22 = scalar_select %p19, %s20, %s21
    %p25 = pneg %p19
    %p26 = scmp.eq.s32.totalorder %s10, 1
    %p27 = por %p25, %p26
    %p28 = scmp.ne.s32.totalorder %s20, %s23
    %p29 = scmp.eq.s32.totalorder %s10, 0
    %p30 = por %p28, %p29
    %p31 = scmp.ne.s32.totalorder %s20, %s23
    %p32 = scmp.eq.s32.totalorder %s15, 1
    %p33 = por %p31, %p32
    %p34 = scmp.ne.s32.totalorder %s23, %s24
    %p35 = scmp.eq.s32.totalorder %s15, 0
    %p36 = por %p34, %p35
    %p37 = scmp.ne.s32.totalorder %s23, %s24
    %p38 = scmp.eq.s32.totalorder %s16, 1
    %p39 = por %p37, %p38
    %p41 = scmp.ne.s32.totalorder %s24, %s40
    %p42 = scmp.eq.s32.totalorder %s16, 0
    %p43 = por %p41, %p42
    %s45 = sadd.s32 %s44, 1
    %p48 = scmp.eq.s32.totalorder %s10, 1
    %p49 = scmp.ne.s32.totalorder %s44, %s46
    %p50 = scmp.eq.s32.totalorder %s10, 0
    %p51 = por %p49, %p50
    %p52 = scmp.ne.s32.totalorder %s44, %s46
    %p53 = scmp.eq.s32.totalorder %s15, 1
    %p54 = por %p52, %p53
    %p55 = scmp.ne.s32.totalorder %s46, %s47
    %p56 = scmp.eq.s32.totalorder %s15, 0
    %p57 = por %p55, %p56
    %p58 = scmp.ne.s32.totalorder %s46, %s47
    %p59 = scmp.eq.s32.totalorder %s16, 1
    %p60 = por %p58, %p59
    %p62 = scmp.ne.s32.totalorder %s47, %s61
    %p63 = scmp.eq.s32.totalorder %s16, 0
    %p64 = por %p62, %p63
    %s66 = sadd.s32 %s65, 1
    %p69 = scmp.eq.s32.totalorder %s10, 1
    %p70 = scmp.ne.s32.totalorder %s65, %s67
    %p71 = scmp.eq.s32.totalorder %s10, 0
    %p72 = por %p70, %p71
    %p73 = scmp.ne.s32.totalorder %s65, %s67
    %p74 = scmp.eq.s32.totalorder %s15, 1
    %p75 = por %p73, %p74
    %p76 = scmp.ne.s32.totalorder %s67, %s68
    %p77 = scmp.eq.s32.totalorder %s15, 0
    %p78 = por %p76, %p77
    %p79 = scmp.ne.s32.totalorder %s67, %s68
    %p80 = scmp.eq.s32.totalorder %s16, 1
    %p81 = por %p79, %p80
    %p83 = scmp.ne.s32.totalorder %s68, %s82
    %p84 = scmp.eq.s32.totalorder %s16, 0
    %p85 = por %p83, %p84
    %s86 = ssub.s32 %s10, %s17
    %p87 = scmp.eq.s32.totalorder %s86, 0
    %s89 = sadd.s32 %s88, 1
    %s90 = scalar_select %p87, %s88, %s89
    %p93 = pneg %p87
    %p94 = scmp.eq.s32.totalorder %s10, 1
    %p95 = por %p93, %p94
    %p96 = scmp.ne.s32.totalorder %s88, %s91
    %p97 = scmp.eq.s32.totalorder %s10, 0
    %p98 = por %p96, %p97
    %p99 = scmp.ne.s32.totalorder %s88, %s91
    %p100 = scmp.eq.s32.totalorder %s15, 1
    %p101 = por %p99, %p100
    %p102 = scmp.ne.s32.totalorder %s91, %s92
    %p103 = scmp.eq.s32.totalorder %s15, 0
    %p104 = por %p102, %p103
    %p105 = scmp.ne.s32.totalorder %s91, %s92
    %p106 = scmp.eq.s32.totalorder %s16, 1
    %p107 = por %p105, %p106
    %p109 = scmp.ne.s32.totalorder %s92, %s108
    %p110 = scmp.eq.s32.totalorder %s16, 0
    %p111 = por %p109, %p110
    %s112 = ssub.s32 %s10, %s17
    %p113 = scmp.eq.s32.totalorder %s112, 0
    %s115 = sadd.s32 %s114, 1
    %s116 = scalar_select %p113, %s114, %s115
    %p119 = pneg %p113
    %p120 = scmp.eq.s32.totalorder %s10, 1
    %p121 = por %p119, %p120
    %p122 = scmp.ne.s32.totalorder %s114, %s117
    %p123 = scmp.eq.s32.totalorder %s10, 0
    %p124 = por %p122, %p123
    %p125 = scmp.ne.s32.totalorder %s114, %s117
    %p126 = scmp.eq.s32.totalorder %s15, 1
    %p127 = por %p125, %p126
    %p128 = scmp.ne.s32.totalorder %s117, %s118
    %p129 = scmp.eq.s32.totalorder %s15, 0
    %p130 = por %p128, %p129
    %p131 = scmp.ne.s32.totalorder %s117, %s118
    %p132 = scmp.eq.s32.totalorder %s16, 1
    %p133 = por %p131, %p132
    %p135 = scmp.ne.s32.totalorder %s118, %s134
    %p136 = scmp.eq.s32.totalorder %s16, 0
    %p137 = por %p135, %p136
    %p138 = scmp.le.s32.totalorder 1, %s10
    %p139 = scmp.lt.s32.totalorder %s10, 3
    %p140 = pnand %p138, %p139
    %p141 = pneg %p140
    // Predicated region
    $region9: #{forward.13} parent=5 // pred_check
      _
    $region10: #{forward.13} parent=5 // pred_check_branch
      %143 = sbr.rel (%p140) target = $region12
    $region11: #{forward.13} parent=5 // pred_region
      %s144 = ssub.s32 %s10, 1
      // Predicated region
      $region13: #{forward.13} parent=11 // pred_check
        %p145 = pneg %p57
      $region14: #{forward.13} parent=11 // pred_check_branch
        %147 = sbr.rel (%p145) target = $region16
      $region15: #{forward.13} parent=11 // pred_region
        _
      $region16: #{forward.13} parent=11 // pred_fallthru
        _
      // Predicated region
      $region17: #{forward.13} parent=11 // pred_check
        %p148 = pneg %p78
      $region18: #{forward.13} parent=11 // pred_check_branch
        %150 = sbr.rel (%p148) target = $region20
      $region19: #{forward.13} parent=11 // pred_region
        _
      $region20: #{forward.13} parent=11 // pred_fallthru
        _
    $region12: #{forward.13} parent=5 // pred_fallthru
      _
    %p151 = scmp.lt.s32.totalorder %s10, 2
    // Predicated region
    $region21: #{forward.13} parent=5 // pred_check
      %p152 = pneg %p151
    $region22: #{forward.13} parent=5 // pred_check_branch
      %154 = sbr.rel (%p152) target = $region24
    $region23: #{forward.13} parent=5 // pred_region
      // Predicated region
      $region25: #{forward.13} parent=23 // pred_check
        %p155 = pneg %p30
      $region26: #{forward.13} parent=23 // pred_check_branch
        %157 = sbr.rel (%p155) target = $region28
      $region27: #{forward.13} parent=23 // pred_region
        %s158 = smul.u32 4, %s10
        %p159 = scmp.lt.s32.totalorder %s158, 7
        %s160 = scalar_select %p159, %s158, 7
        %s161 = smul.addr %s160, 4
        %s162 = scalar_lea.vmem %s0, %s161
        %s163 = smul.u32 4, %s10
      $region28: #{forward.13} parent=23 // pred_fallthru
        _
      // Predicated region
      $region29: #{forward.13} parent=23 // pred_check
        %p164 = pneg %p98
      $region30: #{forward.13} parent=23 // pred_check_branch
        %166 = sbr.rel (%p164) target = $region32
      $region31: #{forward.13} parent=23 // pred_region
        %s167 = smul.u32 4, %s10
        %p168 = scmp.lt.s32.totalorder %s167, 7
        %s169 = scalar_select %p168, %s167, 7
        %s170 = smul.addr %s169, 4
        %s171 = scalar_lea.vmem %s3, %s170
        %s172 = smul.u32 4, %s10
      $region32: #{forward.13} parent=23 // pred_fallthru
        _
    $region24: #{forward.13} parent=5 // pred_fallthru
      _
    %p173 = scmp.le.s32.totalorder 1, %s10
    %p174 = scmp.lt.s32.totalorder %s10, 3
    %p175 = pnand %p173, %p174
    %p176 = pneg %p175
    // Predicated region
    $region33: #{forward.13} parent=5 // pred_check
      _
    $region34: #{forward.13} parent=5 // pred_check_branch
      %178 = sbr.rel (%p175) target = $region36
    $region35: #{forward.13} parent=5 // pred_region
      %s179 = ssub.s32 %s10, 1
      %s180 = smul.u32 4, %s15
      %p181 = scmp.lt.s32.totalorder %s180, 7
      %s182 = scalar_select %p181, %s180, 7
      %s183 = smul.addr %s182, 4
      %s184 = scalar_lea.vmem %s0, %s183
      %p185 = pneg %p36
      %p186 = pneg %p33
      %p187 = pneg %p57
      %p188 = pneg %p54
      %p189 = pneg %p78
      %p190 = pneg %p75
      %s191 = smul.u32 4, %s15
      %p192 = scmp.lt.s32.totalorder %s191, 7
      %s193 = scalar_select %p192, %s191, 7
      %s194 = smul.addr %s193, 4
      %s195 = scalar_lea.vmem %s3, %s194
      %p196 = pneg %p104
      %p197 = pneg %p101
      %p198 = pneg %p130
      %p199 = pneg %p127
      %s200 = smul.u32 4, %s15
      %p201 = scmp.lt.s32.totalorder %s200, 7
      %s202 = scalar_select %p201, %s200, 7
      %s203 = smul.addr %s202, 4
      %s204 = scalar_lea.vmem %s4, %s203
      %s205 = smul.u32 4, %s15
      %p206 = scmp.lt.s32.totalorder %s205, 7
      %s207 = scalar_select %p206, %s205, 7
      %s208 = smul.addr %s207, 4
      %s209 = scalar_lea.vmem %s0, %s208
      %s210 = smul.u32 4, %s15
      %s211 = smul.u32 4, %s15
      %p212 = scmp.lt.s32.totalorder %s211, 7
      %s213 = scalar_select %p212, %s211, 7
      %s214 = smul.addr %s213, 4
      %s215 = scalar_lea.vmem %s3, %s214
      %s216 = smul.u32 4, %s15
      %s217 = smul.u32 4, %s15
      %p218 = scmp.lt.s32.totalorder %s217, 7
      %s219 = scalar_select %p218, %s217, 7
      %s220 = smul.addr %s219, 4
      %s221 = scalar_lea.vmem %s4, %s220
      %s222 = smul.u32 4, %s15
      %v223 = vld [vmem:[%s209] sm:$0xf]
      %v224 = vld [vmem:[%s209 + $0x4] sm:$0xf]
      %v225 = vld [vmem:[%s209 + $0x8] sm:$0xf]
      %v226 = vld [vmem:[%s209 + $0xc] sm:$0xf]
      %v227 = vunpack.c.l.bf16 %v223
      %v228 = vunpack.c.l.bf16 %v224
      %v229 = vunpack.c.l.bf16 %v225
      %v230 = vunpack.c.l.bf16 %v226
      %v231 = vld [vmem:[%s1] sm:$0x1]
      %v233 = vperm.slane %v231, 0
      %v235 = vmul.f32 %v227, %v233
      %v236 = vmul.f32 %v228, %v233
      %v237 = vmul.f32 %v229, %v233
      %v238 = vmul.f32 %v230, %v233
      %v239 = vld [vmem:[%s2] sm:$0x1]
      %v241 = vperm.slane %v239, 0
      %v243 = vadd.f32 %v235, %v241
      %v244 = vadd.f32 %v236, %v241
      %v245 = vadd.f32 %v237, %v241
      %v246 = vadd.f32 %v238, %v241
      %v247 = vld [vmem:[%s215] sm:$0xf]
      %v248 = vld [vmem:[%s215 + $0x4] sm:$0xf]
      %v249 = vld [vmem:[%s215 + $0x8] sm:$0xf]
      %v250 = vld [vmem:[%s215 + $0xc] sm:$0xf]
      %v251 = vunpack.c.l.bf16 %v247
      %v252 = vunpack.c.l.bf16 %v248
      %v253 = vunpack.c.l.bf16 %v249
      %v254 = vunpack.c.l.bf16 %v250
      %v255 = vadd.f32 %v243, %v251
      %v256 = vadd.f32 %v244, %v252
      %v257 = vadd.f32 %v245, %v253
      %v258 = vadd.f32 %v246, %v254
      %v259 = vmax.f32 %v255, 0.0
      %v260 = vmax.f32 %v256, 0.0
      %v261 = vmax.f32 %v257, 0.0
      %v262 = vmax.f32 %v258, 0.0
      %v263 = vpack.c.bf16 %v259, %v259
      %v264 = vpack.c.bf16 %v260, %v260
      %v265 = vpack.c.bf16 %v261, %v261
      %v266 = vpack.c.bf16 %v262, %v262
      %267 = vst [vmem:[%s221] sm:$0xf] %v263
      %268 = vst [vmem:[%s221 + $0x4] sm:$0xf] %v264
      %269 = vst [vmem:[%s221 + $0x8] sm:$0xf] %v265
      %270 = vst [vmem:[%s221 + $0xc] sm:$0xf] %v266
      %s271 = smul.u32 4, %s15
      %p272 = scmp.lt.s32.totalorder %s271, 7
      %s273 = scalar_select %p272, %s271, 7
      %s274 = smul.addr %s273, 4
      %s275 = scalar_lea.vmem %s4, %s274
      // Predicated region
      $region37: #{forward.13} parent=35 // pred_check
        %p276 = pneg %p127
      $region38: #{forward.13} parent=35 // pred_check_branch
        %278 = sbr.rel (%p276) target = $region40
      $region39: #{forward.13} parent=35 // pred_region
        %s279 = smul.u32 4, %s15
      $region40: #{forward.13} parent=35 // pred_fallthru
        _
    $region36: #{forward.13} parent=5 // pred_fallthru
      _
    %p280 = scmp.le.s32.totalorder 2, %s10
    // Predicated region
    $region41: #{forward.13} parent=5 // pred_check
      %p281 = pneg %p280
    $region42: #{forward.13} parent=5 // pred_check_branch
      %283 = sbr.rel (%p281) target = $region44
    $region43: #{forward.13} parent=5 // pred_region
      %s284 = ssub.s32 %s10, 2
      // Predicated region
      $region45: #{forward.13} parent=43 // pred_check
        %p285 = pneg %p133
      $region46: #{forward.13} parent=43 // pred_check_branch
        %287 = sbr.rel (%p285) target = $region48
      $region47: #{forward.13} parent=43 // pred_region
        %s288 = smul.u32 4, %s16
        %p289 = scmp.lt.s32.totalorder %s288, 7
        %s290 = scalar_select %p289, %s288, 7
        %s291 = smul.addr %s290, 4
        %s292 = scalar_lea.vmem %s4, %s291
      $region48: #{forward.13} parent=43 // pred_fallthru
        _
    $region44: #{forward.13} parent=5 // pred_fallthru
      _
  $region6: #{forward.13} parent=0 // loop_footer
    %s14 = sadd.s32 1, %s10
  $region7: #{forward.13} parent=0 // loop_footer_branch
    %9 = sbr.rel target = $region3
  $region8: #{forward.13} parent=0 // loop_exit
    _

// kernel: forward.11
$region0: #{forward.11}
  #allocation0 [shape = 'u32[]', space=smem, size = 0x4, offset = 0x4, fixed_abs, tag = 'smem constant byte address 0x4 - core index']
  #allocation1 [shape = 'u32[72,128]{1,0:T(1,128)}', space=vmem, size = 0x9000, scoped, tag = 'internal scratch']
  %s0 = inlined_call_operand.vmem [shape: bf16[2,1,104,64], index: 0, kind: input, shape index: {}]
  %s1 = inlined_call_operand.vmem [shape: bf16[9,64,64], index: 1, kind: input, shape index: {}]
  %s2 = inlined_call_operand.vmem [shape: f32[80,1], index: 2, kind: input, shape index: {}]
  %s3 = inlined_call_operand.vmem [shape: bf16[2,80,64], index: 3, kind: output, shape index: {0}]
  %s4 = inlined_call_operand.vmem [shape: f32[2,1,64], index: 4, kind: output, shape index: {1}]
  %s5 = inlined_call_operand.vmem [shape: f32[2,1,64], index: 5, kind: output, shape index: {2}]
  %6 = xla_tuple %s3, %s4, %s5
  %s7 = sld [smem:[#allocation0]]
  $region61: #{forward.11} parent=0
    _
  %s9 = ssub.s32 1, %s7
  %s10 = scalar_select 0, %s9, %s7
  loop: start=0, step=1, limit=4
  $region2: #{forward.11} parent=0 // loop_pre_header
    _
  $region3: #{forward.11} parent=0 // loop_header
    %s12 = sphi 0, %s16
    %p13 = scmp.ge.s32.totalorder %s12, 4
    %s22 = sphi 0, %s24
    %s25 = sphi 0, %s22
    %s26 = sphi 0, %s25
    %s42 = sphi 0, %s26
    %s46 = sphi 0, %s46
    %s48 = sphi 0, %s46
    %s49 = sphi 0, %s48
    %s63 = sphi 0, %s49
    %s67 = sphi 0, %s67
    %s69 = sphi 0, %s67
    %s70 = sphi 0, %s69
    %s84 = sphi 0, %s70
    %s90 = sphi 0, %s92
    %s93 = sphi 0, %s90
    %s94 = sphi 0, %s93
    %s110 = sphi 0, %s94
    %s116 = sphi 0, %s118
    %s119 = sphi 0, %s116
    %s120 = sphi 0, %s119
    %s136 = sphi 0, %s120
    %s142 = sphi 0, %s144
    %s145 = sphi 0, %s142
    %s146 = sphi 0, %s145
    %s162 = sphi 0, %s146
  $region4: #{forward.11} parent=0 // loop_header_branch
    %15 = sbr.rel (%p13) target = $region8
  $region5: #{forward.11} parent=0 // loop_body
    %s17 = ssub.s32 %s12, 1
    %s18 = ssub.s32 %s12, 2
    %s19 = sadd.s32 %s12, 1
    %s20 = ssub.s32 %s12, %s19
    %p21 = scmp.eq.s32.totalorder %s20, 0
    %s23 = sadd.s32 %s22, 1
    %s24 = scalar_select %p21, %s22, %s23
    %p27 = pneg %p21
    %p28 = scmp.eq.s32.totalorder %s12, 1
    %p29 = por %p27, %p28
    %p30 = scmp.ne.s32.totalorder %s22, %s25
    %p31 = scmp.eq.s32.totalorder %s12, 0
    %p32 = por %p30, %p31
    %p33 = scmp.ne.s32.totalorder %s22, %s25
    %p34 = scmp.eq.s32.totalorder %s17, 1
    %p35 = por %p33, %p34
    %p36 = scmp.ne.s32.totalorder %s25, %s26
    %p37 = scmp.eq.s32.totalorder %s17, 0
    %p38 = por %p36, %p37
    %p39 = scmp.ne.s32.totalorder %s25, %s26
    %p40 = scmp.eq.s32.totalorder %s18, 1
    %p41 = por %p39, %p40
    %p43 = scmp.ne.s32.totalorder %s26, %s42
    %p44 = scmp.eq.s32.totalorder %s18, 0
    %p45 = por %p43, %p44
    %s47 = sadd.s32 %s46, 1
    %p50 = scmp.eq.s32.totalorder %s12, 1
    %p51 = scmp.ne.s32.totalorder %s46, %s48
    %p52 = scmp.eq.s32.totalorder %s12, 0
    %p53 = por %p51, %p52
    %p54 = scmp.ne.s32.totalorder %s46, %s48
    %p55 = scmp.eq.s32.totalorder %s17, 1
    %p56 = por %p54, %p55
    %p57 = scmp.ne.s32.totalorder %s48, %s49
    %p58 = scmp.eq.s32.totalorder %s17, 0
    %p59 = por %p57, %p58
    %p60 = scmp.ne.s32.totalorder %s48, %s49
    %p61 = scmp.eq.s32.totalorder %s18, 1
    %p62 = por %p60, %p61
    %p64 = scmp.ne.s32.totalorder %s49, %s63
    %p65 = scmp.eq.s32.totalorder %s18, 0
    %p66 = por %p64, %p65
    %s68 = sadd.s32 %s67, 1
    %p71 = scmp.eq.s32.totalorder %s12, 1
    %p72 = scmp.ne.s32.totalorder %s67, %s69
    %p73 = scmp.eq.s32.totalorder %s12, 0
    %p74 = por %p72, %p73
    %p75 = scmp.ne.s32.totalorder %s67, %s69
    %p76 = scmp.eq.s32.totalorder %s17, 1
    %p77 = por %p75, %p76
    %p78 = scmp.ne.s32.totalorder %s69, %s70
    %p79 = scmp.eq.s32.totalorder %s17, 0
    %p80 = por %p78, %p79
    %p81 = scmp.ne.s32.totalorder %s69, %s70
    %p82 = scmp.eq.s32.totalorder %s18, 1
    %p83 = por %p81, %p82
    %p85 = scmp.ne.s32.totalorder %s70, %s84
    %p86 = scmp.eq.s32.totalorder %s18, 0
    %p87 = por %p85, %p86
    %s88 = ssub.s32 %s12, %s19
    %p89 = scmp.eq.s32.totalorder %s88, 0
    %s91 = sadd.s32 %s90, 1
    %s92 = scalar_select %p89, %s90, %s91
    %p95 = pneg %p89
    %p96 = scmp.eq.s32.totalorder %s12, 1
    %p97 = por %p95, %p96
    %p98 = scmp.ne.s32.totalorder %s90, %s93
    %p99 = scmp.eq.s32.totalorder %s12, 0
    %p100 = por %p98, %p99
    %p101 = scmp.ne.s32.totalorder %s90, %s93
    %p102 = scmp.eq.s32.totalorder %s17, 1
    %p103 = por %p101, %p102
    %p104 = scmp.ne.s32.totalorder %s93, %s94
    %p105 = scmp.eq.s32.totalorder %s17, 0
    %p106 = por %p104, %p105
    %p107 = scmp.ne.s32.totalorder %s93, %s94
    %p108 = scmp.eq.s32.totalorder %s18, 1
    %p109 = por %p107, %p108
    %p111 = scmp.ne.s32.totalorder %s94, %s110
    %p112 = scmp.eq.s32.totalorder %s18, 0
    %p113 = por %p111, %p112
    %s114 = ssub.s32 %s12, %s19
    %p115 = scmp.eq.s32.totalorder %s114, 0
    %s117 = sadd.s32 %s116, 1
    %s118 = scalar_select %p115, %s116, %s117
    %p121 = pneg %p115
    %p122 = scmp.eq.s32.totalorder %s12, 1
    %p123 = por %p121, %p122
    %p124 = scmp.ne.s32.totalorder %s116, %s119
    %p125 = scmp.eq.s32.totalorder %s12, 0
    %p126 = por %p124, %p125
    %p127 = scmp.ne.s32.totalorder %s116, %s119
    %p128 = scmp.eq.s32.totalorder %s17, 1
    %p129 = por %p127, %p128
    %p130 = scmp.ne.s32.totalorder %s119, %s120
    %p131 = scmp.eq.s32.totalorder %s17, 0
    %p132 = por %p130, %p131
    %p133 = scmp.ne.s32.totalorder %s119, %s120
    %p134 = scmp.eq.s32.totalorder %s18, 1
    %p135 = por %p133, %p134
    %p137 = scmp.ne.s32.totalorder %s120, %s136
    %p138 = scmp.eq.s32.totalorder %s18, 0
    %p139 = por %p137, %p138
    %s140 = ssub.s32 %s12, %s19
    %p141 = scmp.eq.s32.totalorder %s140, 0
    %s143 = sadd.s32 %s142, 1
    %s144 = scalar_select %p141, %s142, %s143
    %p147 = pneg %p141
    %p148 = scmp.eq.s32.totalorder %s12, 1
    %p149 = por %p147, %p148
    %p150 = scmp.ne.s32.totalorder %s142, %s145
    %p151 = scmp.eq.s32.totalorder %s12, 0
    %p152 = por %p150, %p151
    %p153 = scmp.ne.s32.totalorder %s142, %s145
    %p154 = scmp.eq.s32.totalorder %s17, 1
    %p155 = por %p153, %p154
    %p156 = scmp.ne.s32.totalorder %s145, %s146
    %p157 = scmp.eq.s32.totalorder %s17, 0
    %p158 = por %p156, %p157
    %p159 = scmp.ne.s32.totalorder %s145, %s146
    %p160 = scmp.eq.s32.totalorder %s18, 1
    %p161 = por %p159, %p160
    %p163 = scmp.ne.s32.totalorder %s146, %s162
    %p164 = scmp.eq.s32.totalorder %s18, 0
    %p165 = por %p163, %p164
    %p166 = scmp.le.s32.totalorder 1, %s12
    %p167 = scmp.lt.s32.totalorder %s12, 3
    %p168 = pnand %p166, %p167
    %p169 = pneg %p168
    // Predicated region
    $region9: #{forward.11} parent=5 // pred_check
      _
    $region10: #{forward.11} parent=5 // pred_check_branch
      %171 = sbr.rel (%p168) target = $region12
    $region11: #{forward.11} parent=5 // pred_region
      %s172 = ssub.s32 %s12, 1
      // Predicated region
      $region13: #{forward.11} parent=11 // pred_check
        %p173 = pneg %p59
      $region14: #{forward.11} parent=11 // pred_check_branch
        %175 = sbr.rel (%p173) target = $region16
      $region15: #{forward.11} parent=11 // pred_region
        _
      $region16: #{forward.11} parent=11 // pred_fallthru
        _
      // Predicated region
      $region17: #{forward.11} parent=11 // pred_check
        %p176 = pneg %p80
      $region18: #{forward.11} parent=11 // pred_check_branch
        %178 = sbr.rel (%p176) target = $region20
      $region19: #{forward.11} parent=11 // pred_region
        _
      $region20: #{forward.11} parent=11 // pred_fallthru
        _
    $region12: #{forward.11} parent=5 // pred_fallthru
      _
    %p179 = scmp.lt.s32.totalorder %s12, 2
    // Predicated region
    $region21: #{forward.11} parent=5 // pred_check
      %p180 = pneg %p179
    $region22: #{forward.11} parent=5 // pred_check_branch
      %182 = sbr.rel (%p180) target = $region24
    $region23: #{forward.11} parent=5 // pred_region
      // Predicated region
      $region25: #{forward.11} parent=23 // pred_check
        %p183 = pneg %p32
      $region26: #{forward.11} parent=23 // pred_check_branch
        %185 = sbr.rel (%p183) target = $region28
      $region27: #{forward.11} parent=23 // pred_region
        %p186 = scmp.lt.s32.totalorder %s12, 1
        %s187 = scalar_select %p186, %s12, 1
        %s188 = smul.addr %s187, 13
        %s189 = smul.addr %s188, 4
        %s190 = scalar_lea.vmem %s0, %s189
      $region28: #{forward.11} parent=23 // pred_fallthru
        _
    $region24: #{forward.11} parent=5 // pred_fallthru
      _
    %p191 = scmp.le.s32.totalorder 1, %s12
    %p192 = scmp.lt.s32.totalorder %s12, 3
    %p193 = pnand %p191, %p192
    %p194 = pneg %p193
    // Predicated region
    $region29: #{forward.11} parent=5 // pred_check
      _
    $region30: #{forward.11} parent=5 // pred_check_branch
      %196 = sbr.rel (%p193) target = $region32
    $region31: #{forward.11} parent=5 // pred_region
      %s197 = ssub.s32 %s12, 1
      %p198 = scmp.lt.s32.totalorder %s17, 1
      %s199 = scalar_select %p198, %s17, 1
      %s200 = smul.addr %s199, 13
      %s201 = smul.addr %s200, 4
      %s202 = scalar_lea.vmem %s0, %s201
      %p203 = pneg %p38
      %p204 = pneg %p35
      %p205 = pneg %p59
      %p206 = pneg %p56
      %p207 = pneg %p80
      %p208 = pneg %p77
      %p209 = pneg %p106
      %p210 = pneg %p103
      %p211 = scmp.lt.s32.totalorder %s17, 1
      %s212 = scalar_select %p211, %s17, 1
      %s213 = smul.addr %s212, 10
      %s214 = smul.addr %s213, 4
      %s215 = scalar_lea.vmem %s3, %s214
      %p216 = pneg %p132
      %p217 = pneg %p129
      %p218 = scmp.lt.s32.totalorder %s17, 1
      %s219 = scalar_select %p218, %s17, 1
      %s220 = scalar_lea.vmem %s4, %s219
      %p221 = pneg %p158
      %p222 = pneg %p155
      %p223 = scmp.lt.s32.totalorder %s17, 1
      %s224 = scalar_select %p223, %s17, 1
      %s225 = scalar_lea.vmem %s5, %s224
      %p226 = scmp.lt.s32.totalorder %s17, 1
      %s227 = scalar_select %p226, %s17, 1
      %s228 = smul.addr %s227, 13
      %s229 = smul.addr %s228, 4
      %s230 = scalar_lea.vmem %s0, %s229
      %p231 = scmp.lt.s32.totalorder %s17, 1
      %s232 = scalar_select %p231, %s17, 1
      %s233 = smul.addr %s232, 10
      %s234 = smul.addr %s233, 4
      %s235 = scalar_lea.vmem %s3, %s234
      %p236 = scmp.lt.s32.totalorder %s17, 1
      %s237 = scalar_select %p236, %s17, 1
      %s238 = scalar_lea.vmem %s4, %s237
      %p239 = scmp.lt.s32.totalorder %s17, 1
      %s240 = scalar_select %p239, %s17, 1
      %s241 = scalar_lea.vmem %s5, %s240
      %v243 = vld [vmem:[%s230] sm:$0xf]
      %v244 = vld [vmem:[%s230 + $0x4] sm:$0xf]
      %v245 = vld [vmem:[%s230 + $0x8] sm:$0xf]
      %v246 = vld [vmem:[%s230 + $0xc] sm:$0xf]
      %v247 = vld [vmem:[%s230 + $0x10] sm:$0xf]
      %v248 = vld [vmem:[%s230 + $0x14] sm:$0xf]
      %v249 = vld [vmem:[%s230 + $0x18] sm:$0xf]
      %v250 = vld [vmem:[%s230 + $0x1c] sm:$0xf]
      %v251 = vld [vmem:[%s230 + $0x20] sm:$0xf]
      %v252 = vld [vmem:[%s230 + $0x24] sm:$0xf]
      %v253 = vld [vmem:[%s1] sm:$0xf]
      %v254 = vld [vmem:[%s1 + $0x4] sm:$0xf]
      %v255 = vld [vmem:[%s1 + $0x8] sm:$0xf]
      %v256 = vld [vmem:[%s1 + $0xc] sm:$0xf]
      %v257 = vld [vmem:[%s1 + $0x10] sm:$0xf]
      %v258 = vld [vmem:[%s1 + $0x14] sm:$0xf]
      %v259 = vld [vmem:[%s1 + $0x18] sm:$0xf]
      %v260 = vld [vmem:[%s1 + $0x1c] sm:$0xf]
      %v261 = vld [vmem:[%s230 + $0x28] sm:$0x1]
      %s262 = scalar_lea.vmem %s1, 32
      %v263 = vld [vmem:[%s262] sm:$0xf]
      %v264 = vld [vmem:[%s262 + $0x4] sm:$0xf]
      %v265 = vld [vmem:[%s262 + $0x8] sm:$0xf]
      %v266 = vld [vmem:[%s262 + $0xc] sm:$0xf]
      %v267 = vld [vmem:[%s262 + $0x10] sm:$0xf]
      %v268 = vld [vmem:[%s262 + $0x14] sm:$0xf]
      %v269 = vld [vmem:[%s262 + $0x18] sm:$0xf]
      %v270 = vld [vmem:[%s262 + $0x1c] sm:$0xf]
      %v282 = vunpack.c.l.b16 %v243
      %v283 = vunpack.c.l.b16 %v244
      %v284 = vunpack.c.l.b16 %v245
      %v285 = vunpack.c.l.b16 %v246
      %v286 = vunpack.c.l.b16 %v247
      %v287 = vunpack.c.l.b16 %v248
      %v288 = vunpack.c.l.b16 %v249
      %v289 = vunpack.c.l.b16 %v250
      %v290 = vunpack.c.l.b16 %v251
      %v291 = vunpack.c.l.b16 %v252
      %v292 = vunpack.c.l.b16 %v261
      %v293 = vpack.c.b16 %v283, %v282
      %v294 = vpack.c.b16 %v285, %v284
      %v295 = vpack.c.b16 %v287, %v286
      %v296 = vpack.c.b16 %v289, %v288
      %v297 = vpack.c.b16 %v291, %v290
      %v298 = vpack.c.b16 %v292, %v292
      %vm299 = vsmask.f32 7424
      %v301 = vshrl.u32 %v293, 16
      %v303 = vshll.u32 %v293, 16
      %v305 = vrot.slane %v303, 1
      %v306 = vor.u32 %v301, %v305
      %v308 = vshll.u32 %v294, 16
      %v310 = vrot.slane %v308, 1
      %v311 = vsel %vm299, %v306, %v310
      %v312 = vshrl.u32 %v294, 16
      %v314 = vor.u32 %v312, %v310
      %v316 = vshll.u32 %v295, 16
      %v318 = vrot.slane %v316, 1
      %v319 = vsel %vm299, %v314, %v318
      %v320 = vshrl.u32 %v295, 16
      %v322 = vor.u32 %v320, %v318
      %v324 = vshll.u32 %v296, 16
      %v326 = vrot.slane %v324, 1
      %v327 = vsel %vm299, %v322, %v326
      %v328 = vshrl.u32 %v296, 16
      %v330 = vor.u32 %v328, %v326
      %v332 = vshll.u32 %v297, 16
      %v334 = vrot.slane %v332, 1
      %v335 = vsel %vm299, %v330, %v334
      %v336 = vshrl.u32 %v297, 16
      %v338 = vor.u32 %v336, %v334
      %v340 = vshll.u32 %v298, 16
      %v342 = vrot.slane %v340, 1
      %v343 = vsel %vm299, %v338, %v342
      %v352 = vunpack.c.l.b16 %v263
      %v353 = vunpack.c.l.b16 %v264
      %v354 = vunpack.c.l.b16 %v265
      %v355 = vunpack.c.l.b16 %v266
      %v356 = vunpack.c.l.b16 %v267
      %v357 = vunpack.c.l.b16 %v268
      %v358 = vunpack.c.l.b16 %v269
      %v359 = vunpack.c.l.b16 %v270
      %v360 = vpack.c.b16 %v353, %v352
      %v361 = vpack.c.b16 %v355, %v354
      %v362 = vpack.c.b16 %v357, %v356
      %v363 = vpack.c.b16 %v359, %v358
      %vm368 = vcmask 523264
      %v370 = vsel %vm368, %v311, 0
      %v373 = vsel %vm368, %v319, 0
      %v376 = vsel %vm368, %v327, 0
      %v379 = vsel %vm368, %v335, 0
      %v382 = vsel %vm368, %v343, 0
      %384 = vmatpush.bf16.msra.mxu0 0
      %385 = vmatpush.bf16.msra.mxu0 0
      %386 = vmatpush.bf16.msra.mxu0 0
      %387 = vmatpush.bf16.msra.mxu0 0
      %388 = vmatpush.bf16.msra.mxu0 %v363
      %389 = vmatpush.bf16.msra.mxu0 %v362
      %390 = vmatpush.bf16.msra.mxu0 %v361
      %391 = vmatpush.bf16.msra.mxu0 %v360
      %392 = vmatmul.bf16.gmra.mxu0 %v370
      %v393 = vpop.f32.mrf.mxu0
      %v394 = vadd.f32 0.0, %v393
      %v395 = vpop.f32.mrf.mxu0
      %v396 = vadd.f32 0.0, %v395
      %397 = vmatmul.bf16.gmra.mxu0 %v373
      %v398 = vpop.f32.mrf.mxu0
      %v399 = vadd.f32 0.0, %v398
      %v400 = vpop.f32.mrf.mxu0
      %v401 = vadd.f32 0.0, %v400
      %402 = vmatmul.bf16.gmra.mxu0 %v376
      %v403 = vpop.f32.mrf.mxu0
      %v404 = vadd.f32 0.0, %v403
      %v405 = vpop.f32.mrf.mxu0
      %v406 = vadd.f32 0.0, %v405
      %407 = vmatmul.bf16.gmra.mxu0 %v379
      %v408 = vpop.f32.mrf.mxu0
      %v409 = vadd.f32 0.0, %v408
      %v410 = vpop.f32.mrf.mxu0
      %v411 = vadd.f32 0.0, %v410
      %412 = vmatmul.bf16.gmra.mxu0 %v382
      %v413 = vpop.f32.mrf.mxu0
      %v414 = vadd.f32 0.0, %v413
      %v415 = vpop.f32.mrf.mxu0
      %v416 = vadd.f32 0.0, %v415
      %417 = vdwg.mxu0
      %v426 = vunpack.c.l.b16 %v253
      %v427 = vunpack.c.l.b16 %v254
      %v428 = vunpack.c.l.b16 %v255
      %v429 = vunpack.c.l.b16 %v256
      %v430 = vunpack.c.l.b16 %v257
      %v431 = vunpack.c.l.b16 %v258
      %v432 = vunpack.c.l.b16 %v259
      %v433 = vunpack.c.l.b16 %v260
      %v434 = vpack.c.b16 %v427, %v426
      %v435 = vpack.c.b16 %v429, %v428
      %v436 = vpack.c.b16 %v431, %v430
      %v437 = vpack.c.b16 %v433, %v432
      %v442 = vsel %vm368, %v293, 0
      %v444 = vsel %vm368, %v294, 0
      %v446 = vsel %vm368, %v295, 0
      %v448 = vsel %vm368, %v296, 0
      %v450 = vsel %vm368, %v297, 0
      %452 = vmatpush.bf16.msra.mxu0 0
      %453 = vmatpush.bf16.msra.mxu0 0
      %454 = vmatpush.bf16.msra.mxu0 0
      %455 = vmatpush.bf16.msra.mxu0 0
      %456 = vmatpush.bf16.msra.mxu0 %v437
      %457 = vmatpush.bf16.msra.mxu0 %v436
      %458 = vmatpush.bf16.msra.mxu0 %v435
      %459 = vmatpush.bf16.msra.mxu0 %v434
      %460 = vmatmul.bf16.gmra.mxu0 %v442
      %v461 = vpop.f32.mrf.mxu0
      %v462 = vadd.f32 %v394, %v461
      %v463 = vpop.f32.mrf.mxu0
      %v464 = vadd.f32 %v396, %v463
      %465 = vmatmul.bf16.gmra.mxu0 %v444
      %v466 = vpop.f32.mrf.mxu0
      %v467 = vadd.f32 %v399, %v466
      %v468 = vpop.f32.mrf.mxu0
      %v469 = vadd.f32 %v401, %v468
      %470 = vmatmul.bf16.gmra.mxu0 %v446
      %v471 = vpop.f32.mrf.mxu0
      %v472 = vadd.f32 %v404, %v471
      %v473 = vpop.f32.mrf.mxu0
      %v474 = vadd.f32 %v406, %v473
      %475 = vmatmul.bf16.gmra.mxu0 %v448
      %v476 = vpop.f32.mrf.mxu0
      %v477 = vadd.f32 %v409, %v476
      %v478 = vpop.f32.mrf.mxu0
      %v479 = vadd.f32 %v411, %v478
      %480 = vmatmul.bf16.gmra.mxu0 %v450
      %v481 = vpop.f32.mrf.mxu0
      %v482 = vadd.f32 %v414, %v481
      %v483 = vpop.f32.mrf.mxu0
      %v484 = vadd.f32 %v416, %v483
      %485 = vdwg.mxu0
      %v486 = vld [vmem:[%s230] sm:$0xe]
      %s487 = scalar_lea.vmem %s1, 64
      %v488 = vld [vmem:[%s487] sm:$0xf]
      %v489 = vld [vmem:[%s487 + $0x4] sm:$0xf]
      %v490 = vld [vmem:[%s487 + $0x8] sm:$0xf]
      %v491 = vld [vmem:[%s487 + $0xc] sm:$0xf]
      %v492 = vld [vmem:[%s487 + $0x10] sm:$0xf]
      %v493 = vld [vmem:[%s487 + $0x14] sm:$0xf]
      %v494 = vld [vmem:[%s487 + $0x18] sm:$0xf]
      %v495 = vld [vmem:[%s487 + $0x1c] sm:$0xf]
      %v497 = vunpack.c.l.b16 %v486
      %v498 = vpack.c.b16 %v283, %v497
      %vm499 = vcmask 1046528
      %v500 = vrot.slane %v498, 1
      %v501 = vrot.slane %v294, 1
      %v502 = vsel %vm499, %v500, %v501
      %v503 = vrot.slane %v295, 1
      %v504 = vsel %vm499, %v501, %v503
      %v505 = vrot.slane %v296, 1
      %v506 = vsel %vm499, %v503, %v505
      %v507 = vrot.slane %v297, 1
      %v508 = vsel %vm499, %v505, %v507
      %v509 = vrot.slane %v298, 1
      %v510 = vsel %vm499, %v507, %v509
      %v519 = vunpack.c.l.b16 %v488
      %v520 = vunpack.c.l.b16 %v489
      %v521 = vunpack.c.l.b16 %v490
      %v522 = vunpack.c.l.b16 %v491
      %v523 = vunpack.c.l.b16 %v492
      %v524 = vunpack.c.l.b16 %v493
      %v525 = vunpack.c.l.b16 %v494
      %v526 = vunpack.c.l.b16 %v495
      %v527 = vpack.c.b16 %v520, %v519
      %v528 = vpack.c.b16 %v522, %v521
      %v529 = vpack.c.b16 %v524, %v523
      %v530 = vpack.c.b16 %v526, %v525
      %v536 = vsel %vm368, %v502, 0
      %v539 = vsel %vm368, %v504, 0
      %v542 = vsel %vm368, %v506, 0
      %v545 = vsel %vm368, %v508, 0
      %v548 = vsel %vm368, %v510, 0
      %550 = vmatpush.bf16.msra.mxu0 0
      %551 = vmatpush.bf16.msra.mxu0 0
      %552 = vmatpush.bf16.msra.mxu0 0
      %553 = vmatpush.bf16.msra.mxu0 0
      %554 = vmatpush.bf16.msra.mxu0 %v530
      %555 = vmatpush.bf16.msra.mxu0 %v529
      %556 = vmatpush.bf16.msra.mxu0 %v528
      %557 = vmatpush.bf16.msra.mxu0 %v527
      %558 = vmatmul.bf16.gmra.mxu0 %v536
      %v559 = vpop.f32.mrf.mxu0
      %v560 = vadd.f32 0.0, %v559
      %v561 = vpop.f32.mrf.mxu0
      %v562 = vadd.f32 0.0, %v561
      %563 = vmatmul.bf16.gmra.mxu0 %v539
      %v564 = vpop.f32.mrf.mxu0
      %v565 = vadd.f32 0.0, %v564
      %v566 = vpop.f32.mrf.mxu0
      %v567 = vadd.f32 0.0, %v566
      %568 = vmatmul.bf16.gmra.mxu0 %v542
      %v569 = vpop.f32.mrf.mxu0
      %v570 = vadd.f32 0.0, %v569
      %v571 = vpop.f32.mrf.mxu0
      %v572 = vadd.f32 0.0, %v571
      %573 = vmatmul.bf16.gmra.mxu0 %v545
      %v574 = vpop.f32.mrf.mxu0
      %v575 = vadd.f32 0.0, %v574
      %v576 = vpop.f32.mrf.mxu0
      %v577 = vadd.f32 0.0, %v576
      %578 = vmatmul.bf16.gmra.mxu0 %v548
      %v579 = vpop.f32.mrf.mxu0
      %v580 = vadd.f32 0.0, %v579
      %v581 = vpop.f32.mrf.mxu0
      %v582 = vadd.f32 0.0, %v581
      %583 = vdwg.mxu0
      %v584 = vadd.f32 %v462, %v560
      %v585 = vadd.f32 %v464, %v562
      %v586 = vadd.f32 %v467, %v565
      %v587 = vadd.f32 %v469, %v567
      %v588 = vadd.f32 %v472, %v570
      %v589 = vadd.f32 %v474, %v572
      %v590 = vadd.f32 %v477, %v575
      %v591 = vadd.f32 %v479, %v577
      %v592 = vadd.f32 %v482, %v580
      %v593 = vadd.f32 %v484, %v582
      %v594 = vld [vmem:[%s230 + $0x4] sm:$0xe]
      %v595 = vld [vmem:[%s230 + $0x8] sm:$0xf]
      %v596 = vld [vmem:[%s230 + $0xc] sm:$0xf]
      %v597 = vld [vmem:[%s230 + $0x10] sm:$0xf]
      %v598 = vld [vmem:[%s230 + $0x14] sm:$0xf]
      %v599 = vld [vmem:[%s230 + $0x18] sm:$0xf]
      %v600 = vld [vmem:[%s230 + $0x1c] sm:$0xf]
      %v601 = vld [vmem:[%s230 + $0x20] sm:$0xf]
      %v602 = vld [vmem:[%s230 + $0x24] sm:$0xf]
      %v603 = vld [vmem:[%s230 + $0x28] sm:$0xf]
      %v604 = vld [vmem:[%s230 + $0x2c] sm:$0x1]
      %s605 = scalar_lea.vmem %s1, 96
      %v606 = vld [vmem:[%s605] sm:$0xf]
      %v607 = vld [vmem:[%s605 + $0x4] sm:$0xf]
      %v608 = vld [vmem:[%s605 + $0x8] sm:$0xf]
      %v609 = vld [vmem:[%s605 + $0xc] sm:$0xf]
      %v610 = vld [vmem:[%s605 + $0x10] sm:$0xf]
      %v611 = vld [vmem:[%s605 + $0x14] sm:$0xf]
      %v612 = vld [vmem:[%s605 + $0x18] sm:$0xf]
      %v613 = vld [vmem:[%s605 + $0x1c] sm:$0xf]
      %v625 = vunpack.c.l.b16 %v594
      %v626 = vunpack.c.l.b16 %v595
      %v627 = vunpack.c.l.b16 %v596
      %v628 = vunpack.c.l.b16 %v597
      %v629 = vunpack.c.l.b16 %v598
      %v630 = vunpack.c.l.b16 %v599
      %v631 = vunpack.c.l.b16 %v600
      %v632 = vunpack.c.l.b16 %v601
      %v633 = vunpack.c.l.b16 %v602
      %v634 = vunpack.c.l.b16 %v603
      %v635 = vunpack.c.l.b16 %v604
      %v636 = vpack.c.b16 %v626, %v625
      %v637 = vpack.c.b16 %v628, %v627
      %v638 = vpack.c.b16 %v630, %v629
      %v639 = vpack.c.b16 %v632, %v631
      %v640 = vpack.c.b16 %v634, %v633
      %v641 = vpack.c.b16 %v635, %v635
      %v642 = vrot.slane %v636, 1
      %v643 = vrot.slane %v637, 1
      %v644 = vsel %vm499, %v642, %v643
      %v645 = vrot.slane %v638, 1
      %v646 = vsel %vm499, %v643, %v645
      %v647 = vrot.slane %v639, 1
      %v648 = vsel %vm499, %v645, %v647
      %v649 = vrot.slane %v640, 1
      %v650 = vsel %vm499, %v647, %v649
      %v651 = vrot.slane %v641, 1
      %v652 = vsel %vm499, %v649, %v651
      %v661 = vunpack.c.l.b16 %v606
      %v662 = vunpack.c.l.b16 %v607
      %v663 = vunpack.c.l.b16 %v608
      %v664 = vunpack.c.l.b16 %v609
      %v665 = vunpack.c.l.b16 %v610
      %v666 = vunpack.c.l.b16 %v611
      %v667 = vunpack.c.l.b16 %v612
      %v668 = vunpack.c.l.b16 %v613
      %v669 = vpack.c.b16 %v662, %v661
      %v670 = vpack.c.b16 %v664, %v663
      %v671 = vpack.c.b16 %v666, %v665
      %v672 = vpack.c.b16 %v668, %v667
      %v678 = vsel %vm368, %v644, 0
      %v681 = vsel %vm368, %v646, 0
      %v684 = vsel %vm368, %v648, 0
      %v687 = vsel %vm368, %v650, 0
      %v690 = vsel %vm368, %v652, 0
      %692 = vmatpush.bf16.msra.mxu0 0
      %693 = vmatpush.bf16.msra.mxu0 0
      %694 = vmatpush.bf16.msra.mxu0 0
      %695 = vmatpush.bf16.msra.mxu0 0
      %696 = vmatpush.bf16.msra.mxu0 %v672
      %697 = vmatpush.bf16.msra.mxu0 %v671
      %698 = vmatpush.bf16.msra.mxu0 %v670
      %699 = vmatpush.bf16.msra.mxu0 %v669
      %700 = vmatmul.bf16.gmra.mxu0 %v678
      %v701 = vpop.f32.mrf.mxu0
      %v702 = vadd.f32 0.0, %v701
      %v703 = vpop.f32.mrf.mxu0
      %v704 = vadd.f32 0.0, %v703
      %705 = vmatmul.bf16.gmra.mxu0 %v681
      %v706 = vpop.f32.mrf.mxu0
      %v707 = vadd.f32 0.0, %v706
      %v708 = vpop.f32.mrf.mxu0
      %v709 = vadd.f32 0.0, %v708
      %710 = vmatmul.bf16.gmra.mxu0 %v684
      %v711 = vpop.f32.mrf.mxu0
      %v712 = vadd.f32 0.0, %v711
      %v713 = vpop.f32.mrf.mxu0
      %v714 = vadd.f32 0.0, %v713
      %715 = vmatmul.bf16.gmra.mxu0 %v687
      %v716 = vpop.f32.mrf.mxu0
      %v717 = vadd.f32 0.0, %v716
      %v718 = vpop.f32.mrf.mxu0
      %v719 = vadd.f32 0.0, %v718
      %720 = vmatmul.bf16.gmra.mxu0 %v690
      %v721 = vpop.f32.mrf.mxu0
      %v722 = vadd.f32 0.0, %v721
      %v723 = vpop.f32.mrf.mxu0
      %v724 = vadd.f32 0.0, %v723
      %725 = vdwg.mxu0
      %v726 = vadd.f32 %v584, %v702
      %v727 = vadd.f32 %v585, %v704
      %v728 = vadd.f32 %v586, %v707
      %v729 = vadd.f32 %v587, %v709
      %v730 = vadd.f32 %v588, %v712
      %v731 = vadd.f32 %v589, %v714
      %v732 = vadd.f32 %v590, %v717
      %v733 = vadd.f32 %v591, %v719
      %v734 = vadd.f32 %v592, %v722
      %v735 = vadd.f32 %v593, %v724
      %v736 = vld [vmem:[%s230 + $0x2c] sm:$0x3]
      %s737 = scalar_lea.vmem %s1, 128
      %v738 = vld [vmem:[%s737] sm:$0xf]
      %v739 = vld [vmem:[%s737 + $0x4] sm:$0xf]
      %v740 = vld [vmem:[%s737 + $0x8] sm:$0xf]
      %v741 = vld [vmem:[%s737 + $0xc] sm:$0xf]
      %v742 = vld [vmem:[%s737 + $0x10] sm:$0xf]
      %v743 = vld [vmem:[%s737 + $0x14] sm:$0xf]
      %v744 = vld [vmem:[%s737 + $0x18] sm:$0xf]
      %v745 = vld [vmem:[%s737 + $0x1c] sm:$0xf]
      %v747 = vunpack.c.l.b16 %v736
      %v748 = vpack.c.b16 %v747, %v747
      %vm749 = vsmask.f32 6400
      %v751 = vshrl.u32 %v636, 16
      %v753 = vrot.slane %v751, 1
      %v754 = vshll.u32 %v636, 16
      %v756 = vrot.slane %v754, 2
      %v757 = vor.u32 %v753, %v756
      %v759 = vshrl.u32 %v637, 16
      %v761 = vrot.slane %v759, 1
      %v762 = vshll.u32 %v637, 16
      %v764 = vrot.slane %v762, 2
      %v765 = vor.u32 %v761, %v764
      %v766 = vsel %vm749, %v757, %v765
      %v768 = vshrl.u32 %v638, 16
      %v770 = vrot.slane %v768, 1
      %v771 = vshll.u32 %v638, 16
      %v773 = vrot.slane %v771, 2
      %v774 = vor.u32 %v770, %v773
      %v775 = vsel %vm749, %v765, %v774
      %v777 = vshrl.u32 %v639, 16
      %v779 = vrot.slane %v777, 1
      %v780 = vshll.u32 %v639, 16
      %v782 = vrot.slane %v780, 2
      %v783 = vor.u32 %v779, %v782
      %v784 = vsel %vm749, %v774, %v783
      %v786 = vshrl.u32 %v640, 16
      %v788 = vrot.slane %v786, 1
      %v789 = vshll.u32 %v640, 16
      %v791 = vrot.slane %v789, 2
      %v792 = vor.u32 %v788, %v791
      %v793 = vsel %vm749, %v783, %v792
      %v795 = vshrl.u32 %v748, 16
      %v797 = vrot.slane %v795, 1
      %v798 = vshll.u32 %v748, 16
      %v800 = vrot.slane %v798, 2
      %v801 = vor.u32 %v797, %v800
      %v802 = vsel %vm749, %v792, %v801
      %v811 = vunpack.c.l.b16 %v738
      %v812 = vunpack.c.l.b16 %v739
      %v813 = vunpack.c.l.b16 %v740
      %v814 = vunpack.c.l.b16 %v741
      %v815 = vunpack.c.l.b16 %v742
      %v816 = vunpack.c.l.b16 %v743
      %v817 = vunpack.c.l.b16 %v744
      %v818 = vunpack.c.l.b16 %v745
      %v819 = vpack.c.b16 %v812, %v811
      %v820 = vpack.c.b16 %v814, %v813
      %v821 = vpack.c.b16 %v816, %v815
      %v822 = vpack.c.b16 %v818, %v817
      %v828 = vsel %vm368, %v766, 0
      %v831 = vsel %vm368, %v775, 0
      %v834 = vsel %vm368, %v784, 0
      %v837 = vsel %vm368, %v793, 0
      %v840 = vsel %vm368, %v802, 0
      %842 = vmatpush.bf16.msra.mxu0 0
      %843 = vmatpush.bf16.msra.mxu0 0
      %844 = vmatpush.bf16.msra.mxu0 0
      %845 = vmatpush.bf16.msra.mxu0 0
      %846 = vmatpush.bf16.msra.mxu0 %v822
      %847 = vmatpush.bf16.msra.mxu0 %v821
      %848 = vmatpush.bf16.msra.mxu0 %v820
      %849 = vmatpush.bf16.msra.mxu0 %v819
      %850 = vmatmul.bf16.gmra.mxu0 %v828
      %v851 = vpop.f32.mrf.mxu0
      %v852 = vadd.f32 0.0, %v851
      %v853 = vpop.f32.mrf.mxu0
      %v854 = vadd.f32 0.0, %v853
      %855 = vmatmul.bf16.gmra.mxu0 %v831
      %v856 = vpop.f32.mrf.mxu0
      %v857 = vadd.f32 0.0, %v856
      %v858 = vpop.f32.mrf.mxu0
      %v859 = vadd.f32 0.0, %v858
      %860 = vmatmul.bf16.gmra.mxu0 %v834
      %v861 = vpop.f32.mrf.mxu0
      %v862 = vadd.f32 0.0, %v861
      %v863 = vpop.f32.mrf.mxu0
      %v864 = vadd.f32 0.0, %v863
      %865 = vmatmul.bf16.gmra.mxu0 %v837
      %v866 = vpop.f32.mrf.mxu0
      %v867 = vadd.f32 0.0, %v866
      %v868 = vpop.f32.mrf.mxu0
      %v869 = vadd.f32 0.0, %v868
      %870 = vmatmul.bf16.gmra.mxu0 %v840
      %v871 = vpop.f32.mrf.mxu0
      %v872 = vadd.f32 0.0, %v871
      %v873 = vpop.f32.mrf.mxu0
      %v874 = vadd.f32 0.0, %v873
      %875 = vdwg.mxu0
      %v876 = vadd.f32 %v726, %v852
      %v877 = vadd.f32 %v727, %v854
      %v878 = vadd.f32 %v728, %v857
      %v879 = vadd.f32 %v729, %v859
      %v880 = vadd.f32 %v730, %v862
      %v881 = vadd.f32 %v731, %v864
      %v882 = vadd.f32 %v732, %v867
      %v883 = vadd.f32 %v733, %v869
      %v884 = vadd.f32 %v734, %v872
      %v885 = vadd.f32 %v735, %v874
      %v886 = vld [vmem:[%s230 + $0x4] sm:$0xc]
      %s887 = scalar_lea.vmem %s1, 160
      %v888 = vld [vmem:[%s887] sm:$0xf]
      %v889 = vld [vmem:[%s887 + $0x4] sm:$0xf]
      %v890 = vld [vmem:[%s887 + $0x8] sm:$0xf]
      %v891 = vld [vmem:[%s887 + $0xc] sm:$0xf]
      %v892 = vld [vmem:[%s887 + $0x10] sm:$0xf]
      %v893 = vld [vmem:[%s887 + $0x14] sm:$0xf]
      %v894 = vld [vmem:[%s887 + $0x18] sm:$0xf]
      %v895 = vld [vmem:[%s887 + $0x1c] sm:$0xf]
      %v897 = vunpack.c.l.b16 %v886
      %v898 = vpack.c.b16 %v626, %v897
      %vm899 = vcmask 1045504
      %v900 = vrot.slane %v898, 2
      %v901 = vrot.slane %v637, 2
      %v902 = vsel %vm899, %v900, %v901
      %v903 = vrot.slane %v638, 2
      %v904 = vsel %vm899, %v901, %v903
      %v905 = vrot.slane %v639, 2
      %v906 = vsel %vm899, %v903, %v905
      %v907 = vrot.slane %v640, 2
      %v908 = vsel %vm899, %v905, %v907
      %v909 = vrot.slane %v748, 2
      %v910 = vsel %vm899, %v907, %v909
      %v919 = vunpack.c.l.b16 %v888
      %v920 = vunpack.c.l.b16 %v889
      %v921 = vunpack.c.l.b16 %v890
      %v922 = vunpack.c.l.b16 %v891
      %v923 = vunpack.c.l.b16 %v892
      %v924 = vunpack.c.l.b16 %v893
      %v925 = vunpack.c.l.b16 %v894
      %v926 = vunpack.c.l.b16 %v895
      %v927 = vpack.c.b16 %v920, %v919
      %v928 = vpack.c.b16 %v922, %v921
      %v929 = vpack.c.b16 %v924, %v923
      %v930 = vpack.c.b16 %v926, %v925
      %v936 = vsel %vm368, %v902, 0
      %v939 = vsel %vm368, %v904, 0
      %v942 = vsel %vm368, %v906, 0
      %v945 = vsel %vm368, %v908, 0
      %v948 = vsel %vm368, %v910, 0
      %950 = vmatpush.bf16.msra.mxu0 0
      %951 = vmatpush.bf16.msra.mxu0 0
      %952 = vmatpush.bf16.msra.mxu0 0
      %953 = vmatpush.bf16.msra.mxu0 0
      %954 = vmatpush.bf16.msra.mxu0 %v930
      %955 = vmatpush.bf16.msra.mxu0 %v929
      %956 = vmatpush.bf16.msra.mxu0 %v928
      %957 = vmatpush.bf16.msra.mxu0 %v927
      %958 = vmatmul.bf16.gmra.mxu0 %v936
      %v959 = vpop.f32.mrf.mxu0
      %v960 = vadd.f32 0.0, %v959
      %v961 = vpop.f32.mrf.mxu0
      %v962 = vadd.f32 0.0, %v961
      %963 = vmatmul.bf16.gmra.mxu0 %v939
      %v964 = vpop.f32.mrf.mxu0
      %v965 = vadd.f32 0.0, %v964
      %v966 = vpop.f32.mrf.mxu0
      %v967 = vadd.f32 0.0, %v966
      %968 = vmatmul.bf16.gmra.mxu0 %v942
      %v969 = vpop.f32.mrf.mxu0
      %v970 = vadd.f32 0.0, %v969
      %v971 = vpop.f32.mrf.mxu0
      %v972 = vadd.f32 0.0, %v971
      %973 = vmatmul.bf16.gmra.mxu0 %v945
      %v974 = vpop.f32.mrf.mxu0
      %v975 = vadd.f32 0.0, %v974
      %v976 = vpop.f32.mrf.mxu0
      %v977 = vadd.f32 0.0, %v976
      %978 = vmatmul.bf16.gmra.mxu0 %v948
      %v979 = vpop.f32.mrf.mxu0
      %v980 = vadd.f32 0.0, %v979
      %v981 = vpop.f32.mrf.mxu0
      %v982 = vadd.f32 0.0, %v981
      %983 = vdwg.mxu0
      %v984 = vadd.f32 %v876, %v960
      %v985 = vadd.f32 %v877, %v962
      %v986 = vadd.f32 %v878, %v965
      %v987 = vadd.f32 %v879, %v967
      %v988 = vadd.f32 %v880, %v970
      %v989 = vadd.f32 %v881, %v972
      %v990 = vadd.f32 %v882, %v975
      %v991 = vadd.f32 %v883, %v977
      %v992 = vadd.f32 %v884, %v980
      %v993 = vadd.f32 %v885, %v982
      %v994 = vld [vmem:[%s230 + $0x8] sm:$0xc]
      %v995 = vld [vmem:[%s230 + $0xc] sm:$0xf]
      %v996 = vld [vmem:[%s230 + $0x10] sm:$0xf]
      %v997 = vld [vmem:[%s230 + $0x14] sm:$0xf]
      %v998 = vld [vmem:[%s230 + $0x18] sm:$0xf]
      %v999 = vld [vmem:[%s230 + $0x1c] sm:$0xf]
      %v1000 = vld [vmem:[%s230 + $0x20] sm:$0xf]
      %v1001 = vld [vmem:[%s230 + $0x24] sm:$0xf]
      %v1002 = vld [vmem:[%s230 + $0x28] sm:$0xf]
      %v1003 = vld [vmem:[%s230 + $0x2c] sm:$0xf]
      %v1004 = vld [vmem:[%s230 + $0x30] sm:$0x3]
      %s1005 = scalar_lea.vmem %s1, 192
      %v1006 = vld [vmem:[%s1005] sm:$0xf]
      %v1007 = vld [vmem:[%s1005 + $0x4] sm:$0xf]
      %v1008 = vld [vmem:[%s1005 + $0x8] sm:$0xf]
      %v1009 = vld [vmem:[%s1005 + $0xc] sm:$0xf]
      %v1010 = vld [vmem:[%s1005 + $0x10] sm:$0xf]
      %v1011 = vld [vmem:[%s1005 + $0x14] sm:$0xf]
      %v1012 = vld [vmem:[%s1005 + $0x18] sm:$0xf]
      %v1013 = vld [vmem:[%s1005 + $0x1c] sm:$0xf]
      %v1025 = vunpack.c.l.b16 %v994
      %v1026 = vunpack.c.l.b16 %v995
      %v1027 = vunpack.c.l.b16 %v996
      %v1028 = vunpack.c.l.b16 %v997
      %v1029 = vunpack.c.l.b16 %v998
      %v1030 = vunpack.c.l.b16 %v999
      %v1031 = vunpack.c.l.b16 %v1000
      %v1032 = vunpack.c.l.b16 %v1001
      %v1033 = vunpack.c.l.b16 %v1002
      %v1034 = vunpack.c.l.b16 %v1003
      %v1035 = vunpack.c.l.b16 %v1004
      %v1036 = vpack.c.b16 %v1026, %v1025
      %v1037 = vpack.c.b16 %v1028, %v1027
      %v1038 = vpack.c.b16 %v1030, %v1029
      %v1039 = vpack.c.b16 %v1032, %v1031
      %v1040 = vpack.c.b16 %v1034, %v1033
      %v1041 = vpack.c.b16 %v1035, %v1035
      %v1042 = vrot.slane %v1036, 2
      %v1043 = vrot.slane %v1037, 2
      %v1044 = vsel %vm899, %v1042, %v1043
      %v1045 = vrot.slane %v1038, 2
      %v1046 = vsel %vm899, %v1043, %v1045
      %v1047 = vrot.slane %v1039, 2
      %v1048 = vsel %vm899, %v1045, %v1047
      %v1049 = vrot.slane %v1040, 2
      %v1050 = vsel %vm899, %v1047, %v1049
      %v1051 = vrot.slane %v1041, 2
      %v1052 = vsel %vm899, %v1049, %v1051
      %v1061 = vunpack.c.l.b16 %v1006
      %v1062 = vunpack.c.l.b16 %v1007
      %v1063 = vunpack.c.l.b16 %v1008
      %v1064 = vunpack.c.l.b16 %v1009
      %v1065 = vunpack.c.l.b16 %v1010
      %v1066 = vunpack.c.l.b16 %v1011
      %v1067 = vunpack.c.l.b16 %v1012
      %v1068 = vunpack.c.l.b16 %v1013
      %v1069 = vpack.c.b16 %v1062, %v1061
      %v1070 = vpack.c.b16 %v1064, %v1063
      %v1071 = vpack.c.b16 %v1066, %v1065
      %v1072 = vpack.c.b16 %v1068, %v1067
      %v1078 = vsel %vm368, %v1044, 0
      %v1081 = vsel %vm368, %v1046, 0
      %v1084 = vsel %vm368, %v1048, 0
      %v1087 = vsel %vm368, %v1050, 0
      %v1090 = vsel %vm368, %v1052, 0
      %1092 = vmatpush.bf16.msra.mxu0 0
      %1093 = vmatpush.bf16.msra.mxu0 0
      %1094 = vmatpush.bf16.msra.mxu0 0
      %1095 = vmatpush.bf16.msra.mxu0 0
      %1096 = vmatpush.bf16.msra.mxu0 %v1072
      %1097 = vmatpush.bf16.msra.mxu0 %v1071
      %1098 = vmatpush.bf16.msra.mxu0 %v1070
      %1099 = vmatpush.bf16.msra.mxu0 %v1069
      %1100 = vmatmul.bf16.gmra.mxu0 %v1078
      %v1101 = vpop.f32.mrf.mxu0
      %v1102 = vadd.f32 0.0, %v1101
      %v1103 = vpop.f32.mrf.mxu0
      %v1104 = vadd.f32 0.0, %v1103
      %1105 = vmatmul.bf16.gmra.mxu0 %v1081
      %v1106 = vpop.f32.mrf.mxu0
      %v1107 = vadd.f32 0.0, %v1106
      %v1108 = vpop.f32.mrf.mxu0
      %v1109 = vadd.f32 0.0, %v1108
      %1110 = vmatmul.bf16.gmra.mxu0 %v1084
      %v1111 = vpop.f32.mrf.mxu0
      %v1112 = vadd.f32 0.0, %v1111
      %v1113 = vpop.f32.mrf.mxu0
      %v1114 = vadd.f32 0.0, %v1113
      %1115 = vmatmul.bf16.gmra.mxu0 %v1087
      %v1116 = vpop.f32.mrf.mxu0
      %v1117 = vadd.f32 0.0, %v1116
      %v1118 = vpop.f32.mrf.mxu0
      %v1119 = vadd.f32 0.0, %v1118
      %1120 = vmatmul.bf16.gmra.mxu0 %v1090
      %v1121 = vpop.f32.mrf.mxu0
      %v1122 = vadd.f32 0.0, %v1121
      %v1123 = vpop.f32.mrf.mxu0
      %v1124 = vadd.f32 0.0, %v1123
      %1125 = vdwg.mxu0
      %v1126 = vadd.f32 %v984, %v1102
      %v1127 = vadd.f32 %v985, %v1104
      %v1128 = vadd.f32 %v986, %v1107
      %v1129 = vadd.f32 %v987, %v1109
      %v1130 = vadd.f32 %v988, %v1112
      %v1131 = vadd.f32 %v989, %v1114
      %v1132 = vadd.f32 %v990, %v1117
      %v1133 = vadd.f32 %v991, %v1119
      %v1134 = vadd.f32 %v992, %v1122
      %v1135 = vadd.f32 %v993, %v1124
      %v1136 = vld [vmem:[%s230 + $0x30] sm:$0x7]
      %s1137 = scalar_lea.vmem %s1, 224
      %v1138 = vld [vmem:[%s1137] sm:$0xf]
      %v1139 = vld [vmem:[%s1137 + $0x4] sm:$0xf]
      %v1140 = vld [vmem:[%s1137 + $0x8] sm:$0xf]
      %v1141 = vld [vmem:[%s1137 + $0xc] sm:$0xf]
      %v1142 = vld [vmem:[%s1137 + $0x10] sm:$0xf]
      %v1143 = vld [vmem:[%s1137 + $0x14] sm:$0xf]
      %v1144 = vld [vmem:[%s1137 + $0x18] sm:$0xf]
      %v1145 = vld [vmem:[%s1137 + $0x1c] sm:$0xf]
      %v1147 = vunpack.c.l.b16 %v1136
      %v1148 = vpack.c.b16 %v1147, %v1147
      %vm1149 = vsmask.f32 5376
      %v1151 = vshrl.u32 %v1036, 16
      %v1153 = vrot.slane %v1151, 2
      %v1154 = vshll.u32 %v1036, 16
      %v1156 = vrot.slane %v1154, 3
      %v1157 = vor.u32 %v1153, %v1156
      %v1159 = vshrl.u32 %v1037, 16
      %v1161 = vrot.slane %v1159, 2
      %v1162 = vshll.u32 %v1037, 16
      %v1164 = vrot.slane %v1162, 3
      %v1165 = vor.u32 %v1161, %v1164
      %v1166 = vsel %vm1149, %v1157, %v1165
      %v1168 = vshrl.u32 %v1038, 16
      %v1170 = vrot.slane %v1168, 2
      %v1171 = vshll.u32 %v1038, 16
      %v1173 = vrot.slane %v1171, 3
      %v1174 = vor.u32 %v1170, %v1173
      %v1175 = vsel %vm1149, %v1165, %v1174
      %v1177 = vshrl.u32 %v1039, 16
      %v1179 = vrot.slane %v1177, 2
      %v1180 = vshll.u32 %v1039, 16
      %v1182 = vrot.slane %v1180, 3
      %v1183 = vor.u32 %v1179, %v1182
      %v1184 = vsel %vm1149, %v1174, %v1183
      %v1186 = vshrl.u32 %v1040, 16
      %v1188 = vrot.slane %v1186, 2
      %v1189 = vshll.u32 %v1040, 16
      %v1191 = vrot.slane %v1189, 3
      %v1192 = vor.u32 %v1188, %v1191
      %v1193 = vsel %vm1149, %v1183, %v1192
      %v1195 = vshrl.u32 %v1148, 16
      %v1197 = vrot.slane %v1195, 2
      %v1198 = vshll.u32 %v1148, 16
      %v1200 = vrot.slane %v1198, 3
      %v1201 = vor.u32 %v1197, %v1200
      %v1202 = vsel %vm1149, %v1192, %v1201
      %v1211 = vunpack.c.l.b16 %v1138
      %v1212 = vunpack.c.l.b16 %v1139
      %v1213 = vunpack.c.l.b16 %v1140
      %v1214 = vunpack.c.l.b16 %v1141
      %v1215 = vunpack.c.l.b16 %v1142
      %v1216 = vunpack.c.l.b16 %v1143
      %v1217 = vunpack.c.l.b16 %v1144
      %v1218 = vunpack.c.l.b16 %v1145
      %v1219 = vpack.c.b16 %v1212, %v1211
      %v1220 = vpack.c.b16 %v1214, %v1213
      %v1221 = vpack.c.b16 %v1216, %v1215
      %v1222 = vpack.c.b16 %v1218, %v1217
      %v1228 = vsel %vm368, %v1166, 0
      %v1231 = vsel %vm368, %v1175, 0
      %v1234 = vsel %vm368, %v1184, 0
      %v1237 = vsel %vm368, %v1193, 0
      %v1240 = vsel %vm368, %v1202, 0
      %1242 = vmatpush.bf16.msra.mxu0 0
      %1243 = vmatpush.bf16.msra.mxu0 0
      %1244 = vmatpush.bf16.msra.mxu0 0
      %1245 = vmatpush.bf16.msra.mxu0 0
      %1246 = vmatpush.bf16.msra.mxu0 %v1222
      %1247 = vmatpush.bf16.msra.mxu0 %v1221
      %1248 = vmatpush.bf16.msra.mxu0 %v1220
      %1249 = vmatpush.bf16.msra.mxu0 %v1219
      %1250 = vmatmul.bf16.gmra.mxu0 %v1228
      %v1251 = vpop.f32.mrf.mxu0
      %v1252 = vadd.f32 0.0, %v1251
      %v1253 = vpop.f32.mrf.mxu0
      %v1254 = vadd.f32 0.0, %v1253
      %1255 = vmatmul.bf16.gmra.mxu0 %v1231
      %v1256 = vpop.f32.mrf.mxu0
      %v1257 = vadd.f32 0.0, %v1256
      %v1258 = vpop.f32.mrf.mxu0
      %v1259 = vadd.f32 0.0, %v1258
      %1260 = vmatmul.bf16.gmra.mxu0 %v1234
      %v1261 = vpop.f32.mrf.mxu0
      %v1262 = vadd.f32 0.0, %v1261
      %v1263 = vpop.f32.mrf.mxu0
      %v1264 = vadd.f32 0.0, %v1263
      %1265 = vmatmul.bf16.gmra.mxu0 %v1237
      %v1266 = vpop.f32.mrf.mxu0
      %v1267 = vadd.f32 0.0, %v1266
      %v1268 = vpop.f32.mrf.mxu0
      %v1269 = vadd.f32 0.0, %v1268
      %1270 = vmatmul.bf16.gmra.mxu0 %v1240
      %v1271 = vpop.f32.mrf.mxu0
      %v1272 = vadd.f32 0.0, %v1271
      %v1273 = vpop.f32.mrf.mxu0
      %v1274 = vadd.f32 0.0, %v1273
      %1275 = vdwg.mxu0
      %v1276 = vadd.f32 %v1126, %v1252
      %v1277 = vadd.f32 %v1127, %v1254
      %v1278 = vadd.f32 %v1128, %v1257
      %v1279 = vadd.f32 %v1129, %v1259
      %v1280 = vadd.f32 %v1130, %v1262
      %v1281 = vadd.f32 %v1131, %v1264
      %v1282 = vadd.f32 %v1132, %v1267
      %v1283 = vadd.f32 %v1133, %v1269
      %v1284 = vadd.f32 %v1134, %v1272
      %v1285 = vadd.f32 %v1135, %v1274
      %v1286 = vld [vmem:[%s230 + $0x8] sm:$0x8]
      %s1287 = scalar_lea.vmem %s1, 256
      %v1288 = vld [vmem:[%s1287] sm:$0xf]
      %v1289 = vld [vmem:[%s1287 + $0x4] sm:$0xf]
      %v1290 = vld [vmem:[%s1287 + $0x8] sm:$0xf]
      %v1291 = vld [vmem:[%s1287 + $0xc] sm:$0xf]
      %v1292 = vld [vmem:[%s1287 + $0x10] sm:$0xf]
      %v1293 = vld [vmem:[%s1287 + $0x14] sm:$0xf]
      %v1294 = vld [vmem:[%s1287 + $0x18] sm:$0xf]
      %v1295 = vld [vmem:[%s1287 + $0x1c] sm:$0xf]
      %v1297 = vunpack.c.l.b16 %v1286
      %v1298 = vpack.c.b16 %v1026, %v1297
      %vm1299 = vcmask 1044480
      %v1300 = vrot.slane %v1298, 3
      %v1301 = vrot.slane %v1037, 3
      %v1302 = vsel %vm1299, %v1300, %v1301
      %v1303 = vrot.slane %v1038, 3
      %v1304 = vsel %vm1299, %v1301, %v1303
      %v1305 = vrot.slane %v1039, 3
      %v1306 = vsel %vm1299, %v1303, %v1305
      %v1307 = vrot.slane %v1040, 3
      %v1308 = vsel %vm1299, %v1305, %v1307
      %v1309 = vrot.slane %v1148, 3
      %v1310 = vsel %vm1299, %v1307, %v1309
      %v1319 = vunpack.c.l.b16 %v1288
      %v1320 = vunpack.c.l.b16 %v1289
      %v1321 = vunpack.c.l.b16 %v1290
      %v1322 = vunpack.c.l.b16 %v1291
      %v1323 = vunpack.c.l.b16 %v1292
      %v1324 = vunpack.c.l.b16 %v1293
      %v1325 = vunpack.c.l.b16 %v1294
      %v1326 = vunpack.c.l.b16 %v1295
      %v1327 = vpack.c.b16 %v1320, %v1319
      %v1328 = vpack.c.b16 %v1322, %v1321
      %v1329 = vpack.c.b16 %v1324, %v1323
      %v1330 = vpack.c.b16 %v1326, %v1325
      %v1336 = vsel %vm368, %v1302, 0
      %v1339 = vsel %vm368, %v1304, 0
      %v1342 = vsel %vm368, %v1306, 0
      %v1345 = vsel %vm368, %v1308, 0
      %v1348 = vsel %vm368, %v1310, 0
      %1350 = vmatpush.bf16.msra.mxu0 0
      %1351 = vmatpush.bf16.msra.mxu0 0
      %1352 = vmatpush.bf16.msra.mxu0 0
      %1353 = vmatpush.bf16.msra.mxu0 0
      %1354 = vmatpush.bf16.msra.mxu0 %v1330
      %1355 = vmatpush.bf16.msra.mxu0 %v1329
      %1356 = vmatpush.bf16.msra.mxu0 %v1328
      %1357 = vmatpush.bf16.msra.mxu0 %v1327
      %1358 = vmatmul.bf16.gmra.mxu0 %v1336
      %v1359 = vpop.f32.mrf.mxu0
      %v1360 = vadd.f32 0.0, %v1359
      %v1361 = vpop.f32.mrf.mxu0
      %v1362 = vadd.f32 0.0, %v1361
      %1363 = vmatmul.bf16.gmra.mxu0 %v1339
      %v1364 = vpop.f32.mrf.mxu0
      %v1365 = vadd.f32 0.0, %v1364
      %v1366 = vpop.f32.mrf.mxu0
      %v1367 = vadd.f32 0.0, %v1366
      %1368 = vmatmul.bf16.gmra.mxu0 %v1342
      %v1369 = vpop.f32.mrf.mxu0
      %v1370 = vadd.f32 0.0, %v1369
      %v1371 = vpop.f32.mrf.mxu0
      %v1372 = vadd.f32 0.0, %v1371
      %1373 = vmatmul.bf16.gmra.mxu0 %v1345
      %v1374 = vpop.f32.mrf.mxu0
      %v1375 = vadd.f32 0.0, %v1374
      %v1376 = vpop.f32.mrf.mxu0
      %v1377 = vadd.f32 0.0, %v1376
      %1378 = vmatmul.bf16.gmra.mxu0 %v1348
      %v1379 = vpop.f32.mrf.mxu0
      %v1380 = vadd.f32 0.0, %v1379
      %v1381 = vpop.f32.mrf.mxu0
      %v1382 = vadd.f32 0.0, %v1381
      %1383 = vdwg.mxu0
      %v1384 = vadd.f32 %v1276, %v1360
      %v1385 = vadd.f32 %v1277, %v1362
      %v1386 = vadd.f32 %v1278, %v1365
      %v1387 = vadd.f32 %v1279, %v1367
      %v1388 = vadd.f32 %v1280, %v1370
      %v1389 = vadd.f32 %v1281, %v1372
      %v1390 = vadd.f32 %v1282, %v1375
      %v1391 = vadd.f32 %v1283, %v1377
      %v1392 = vadd.f32 %v1284, %v1380
      %v1393 = vadd.f32 %v1285, %v1382
      %v1394 = vpack.c.bf16 %v1384, %v1384
      %v1395 = vpack.c.bf16 %v1385, %v1385
      %v1396 = vpack.c.bf16 %v1386, %v1386
      %v1397 = vpack.c.bf16 %v1387, %v1387
      %v1398 = vpack.c.bf16 %v1388, %v1388
      %v1399 = vpack.c.bf16 %v1389, %v1389
      %v1400 = vpack.c.bf16 %v1390, %v1390
      %v1401 = vpack.c.bf16 %v1391, %v1391
      %v1402 = vpack.c.bf16 %v1392, %v1392
      %v1403 = vpack.c.bf16 %v1393, %v1393
      %vm1404 = vcmask 519168
      %1405 = vst.msk [vmem:[%s235] sm:$0xf] %vm1404, %v1394
      %1406 = vst.msk [vmem:[%s235 + $0x4] sm:$0xf] %vm1404, %v1395
      %1407 = vst.msk [vmem:[%s235 + $0x8] sm:$0xf] %vm1404, %v1396
      %1408 = vst.msk [vmem:[%s235 + $0xc] sm:$0xf] %vm1404, %v1397
      %1409 = vst.msk [vmem:[%s235 + $0x10] sm:$0xf] %vm1404, %v1398
      %1410 = vst.msk [vmem:[%s235 + $0x14] sm:$0xf] %vm1404, %v1399
      %1411 = vst.msk [vmem:[%s235 + $0x18] sm:$0xf] %vm1404, %v1400
      %1412 = vst.msk [vmem:[%s235 + $0x1c] sm:$0xf] %vm1404, %v1401
      %1413 = vst.msk [vmem:[%s235 + $0x20] sm:$0xf] %vm1404, %v1402
      %1414 = vst.msk [vmem:[%s235 + $0x24] sm:$0xf] %vm1404, %v1403
      %v1415 = vld [vmem:[%s2] sm:$0xff]
      %v1416 = vld [vmem:[%s2 + $0x8] sm:$0xff]
      %v1417 = vld [vmem:[%s2 + $0x10] sm:$0xff]
      %v1418 = vld [vmem:[%s2 + $0x18] sm:$0xff]
      %v1419 = vld [vmem:[%s2 + $0x20] sm:$0xff]
      %v1420 = vld [vmem:[%s2 + $0x28] sm:$0xff]
      %v1421 = vld [vmem:[%s2 + $0x30] sm:$0xff]
      %v1422 = vld [vmem:[%s2 + $0x38] sm:$0xff]
      %v1423 = vld [vmem:[%s2 + $0x40] sm:$0xff]
      %v1424 = vld [vmem:[%s2 + $0x48] sm:$0xff]
      %1426 = vset.pattern.permute.xlu0 0
      %1427 = vperm.xlu0 %1426, %v1415
      %v1428 = vpop.permute.xlu0 %1427
      %1431 = vset.pattern.permute.xlu0 0
      %1432 = vperm.xlu0 %1431, %v1416
      %v1433 = vpop.permute.xlu0 %1432
      %1436 = vset.pattern.permute.xlu0 0
      %1437 = vperm.xlu0 %1436, %v1417
      %v1438 = vpop.permute.xlu0 %1437
      %1441 = vset.pattern.permute.xlu0 0
      %1442 = vperm.xlu0 %1441, %v1418
      %v1443 = vpop.permute.xlu0 %1442
      %1446 = vset.pattern.permute.xlu0 0
      %1447 = vperm.xlu0 %1446, %v1419
      %v1448 = vpop.permute.xlu0 %1447
      %1451 = vset.pattern.permute.xlu0 0
      %1452 = vperm.xlu0 %1451, %v1420
      %v1453 = vpop.permute.xlu0 %1452
      %1456 = vset.pattern.permute.xlu0 0
      %1457 = vperm.xlu0 %1456, %v1421
      %v1458 = vpop.permute.xlu0 %1457
      %1461 = vset.pattern.permute.xlu0 0
      %1462 = vperm.xlu0 %1461, %v1422
      %v1463 = vpop.permute.xlu0 %1462
      %1466 = vset.pattern.permute.xlu0 0
      %1467 = vperm.xlu0 %1466, %v1423
      %v1468 = vpop.permute.xlu0 %1467
      %1471 = vset.pattern.permute.xlu0 0
      %1472 = vperm.xlu0 %1471, %v1424
      %v1473 = vpop.permute.xlu0 %1472
      %v1475 = vmul.f32 %v1384, %v1428
      %v1476 = vmul.f32 %v1385, %v1433
      %v1477 = vmul.f32 %v1386, %v1438
      %v1478 = vmul.f32 %v1387, %v1443
      %v1479 = vmul.f32 %v1388, %v1448
      %v1480 = vmul.f32 %v1389, %v1453
      %v1481 = vmul.f32 %v1390, %v1458
      %v1482 = vmul.f32 %v1391, %v1463
      %v1483 = vmul.f32 %v1392, %v1468
      %v1484 = vmul.f32 %v1393, %v1473
      %v1485 = vsel %vm368, %v1475, 0.0
      %v1486 = vsel %vm368, %v1476, 0.0
      %v1487 = vadd.f32 %v1485, %v1486
      %v1488 = vsel %vm368, %v1477, 0.0
      %v1489 = vadd.f32 %v1487, %v1488
      %v1490 = vsel %vm368, %v1478, 0.0
      %v1491 = vadd.f32 %v1489, %v1490
      %v1492 = vsel %vm368, %v1479, 0.0
      %v1493 = vadd.f32 %v1491, %v1492
      %v1494 = vsel %vm368, %v1480, 0.0
      %v1495 = vadd.f32 %v1493, %v1494
      %v1496 = vsel %vm368, %v1481, 0.0
      %v1497 = vadd.f32 %v1495, %v1496
      %v1498 = vsel %vm368, %v1482, 0.0
      %v1499 = vadd.f32 %v1497, %v1498
      %v1500 = vsel %vm368, %v1483, 0.0
      %v1501 = vadd.f32 %v1499, %v1500
      %v1502 = vsel %vm368, %v1484, 0.0
      %v1503 = vadd.f32 %v1501, %v1502
      %v1504 = vrot.slane %v1503, 4
      %v1505 = vadd.f32 %v1503, %v1504
      %v1506 = vrot.slane %v1505, 2
      %v1507 = vadd.f32 %v1505, %v1506
      %v1508 = vrot.slane %v1507, 1
      %v1509 = vadd.f32 %v1507, %v1508
      %vm1510 = vcmask 516096
      %1511 = vst.msk [vmem:[%s238] sm:$0x1] %vm1510, %v1509
      %v1512 = vmul.f32 %v1475, %v1384
      %v1513 = vmul.f32 %v1476, %v1385
      %v1514 = vmul.f32 %v1477, %v1386
      %v1515 = vmul.f32 %v1478, %v1387
      %v1516 = vmul.f32 %v1479, %v1388
      %v1517 = vmul.f32 %v1480, %v1389
      %v1518 = vmul.f32 %v1481, %v1390
      %v1519 = vmul.f32 %v1482, %v1391
      %v1520 = vmul.f32 %v1483, %v1392
      %v1521 = vmul.f32 %v1484, %v1393
      %v1522 = vsel %vm368, %v1512, 0.0
      %v1523 = vsel %vm368, %v1513, 0.0
      %v1524 = vadd.f32 %v1522, %v1523
      %v1525 = vsel %vm368, %v1514, 0.0
      %v1526 = vadd.f32 %v1524, %v1525
      %v1527 = vsel %vm368, %v1515, 0.0
      %v1528 = vadd.f32 %v1526, %v1527
      %v1529 = vsel %vm368, %v1516, 0.0
      %v1530 = vadd.f32 %v1528, %v1529
      %v1531 = vsel %vm368, %v1517, 0.0
      %v1532 = vadd.f32 %v1530, %v1531
      %v1533 = vsel %vm368, %v1518, 0.0
      %v1534 = vadd.f32 %v1532, %v1533
      %v1535 = vsel %vm368, %v1519, 0.0
      %v1536 = vadd.f32 %v1534, %v1535
      %v1537 = vsel %vm368, %v1520, 0.0
      %v1538 = vadd.f32 %v1536, %v1537
      %v1539 = vsel %vm368, %v1521, 0.0
      %v1540 = vadd.f32 %v1538, %v1539
      %v1541 = vrot.slane %v1540, 4
      %v1542 = vadd.f32 %v1540, %v1541
      %v1543 = vrot.slane %v1542, 2
      %v1544 = vadd.f32 %v1542, %v1543
      %v1545 = vrot.slane %v1544, 1
      %v1546 = vadd.f32 %v1544, %v1545
      %1547 = vst.msk [vmem:[%s241] sm:$0x1] %vm1510, %v1546
      %p1548 = scmp.lt.s32.totalorder %s17, 1
      %s1549 = scalar_select %p1548, %s17, 1
      %s1550 = smul.addr %s1549, 10
      %s1551 = smul.addr %s1550, 4
      %s1552 = scalar_lea.vmem %s3, %s1551
      %p1553 = scmp.lt.s32.totalorder %s17, 1
      %s1554 = scalar_select %p1553, %s17, 1
      %s1555 = scalar_lea.vmem %s4, %s1554
      %p1556 = scmp.lt.s32.totalorder %s17, 1
      %s1557 = scalar_select %p1556, %s17, 1
      %s1558 = scalar_lea.vmem %s5, %s1557
      // Predicated region
      $region33: #{forward.11} parent=31 // pred_check
        %p1559 = pneg %p103
      $region34: #{forward.11} parent=31 // pred_check_branch
        %1561 = sbr.rel (%p1559) target = $region36
      $region35: #{forward.11} parent=31 // pred_region
        _
      $region36: #{forward.11} parent=31 // pred_fallthru
        _
      // Predicated region
      $region37: #{forward.11} parent=31 // pred_check
        %p1562 = pneg %p129
      $region38: #{forward.11} parent=31 // pred_check_branch
        %1564 = sbr.rel (%p1562) target = $region40
      $region39: #{forward.11} parent=31 // pred_region
        _
      $region40: #{forward.11} parent=31 // pred_fallthru
        _
      // Predicated region
      $region41: #{forward.11} parent=31 // pred_check
        %p1565 = pneg %p155
      $region42: #{forward.11} parent=31 // pred_check_branch
        %1567 = sbr.rel (%p1565) target = $region44
      $region43: #{forward.11} parent=31 // pred_region
        _
      $region44: #{forward.11} parent=31 // pred_fallthru
        _
    $region32: #{forward.11} parent=5 // pred_fallthru
      _
    %p1568 = scmp.le.s32.totalorder 2, %s12
    // Predicated region
    $region45: #{forward.11} parent=5 // pred_check
      %p1569 = pneg %p1568
    $region46: #{forward.11} parent=5 // pred_check_branch
      %1571 = sbr.rel (%p1569) target = $region48
    $region47: #{forward.11} parent=5 // pred_region
      %s1572 = ssub.s32 %s12, 2
      // Predicated region
      $region49: #{forward.11} parent=47 // pred_check
        %p1573 = pneg %p109
      $region50: #{forward.11} parent=47 // pred_check_branch
        %1575 = sbr.rel (%p1573) target = $region52
      $region51: #{forward.11} parent=47 // pred_region
        %p1576 = scmp.lt.s32.totalorder %s18, 1
        %s1577 = scalar_select %p1576, %s18, 1
        %s1578 = smul.addr %s1577, 10
        %s1579 = smul.addr %s1578, 4
        %s1580 = scalar_lea.vmem %s3, %s1579
      $region52: #{forward.11} parent=47 // pred_fallthru
        _
      // Predicated region
      $region53: #{forward.11} parent=47 // pred_check
        %p1581 = pneg %p135
      $region54: #{forward.11} parent=47 // pred_check_branch
        %1583 = sbr.rel (%p1581) target = $region56
      $region55: #{forward.11} parent=47 // pred_region
        %p1584 = scmp.lt.s32.totalorder %s18, 1
        %s1585 = scalar_select %p1584, %s18, 1
        %s1586 = scalar_lea.vmem %s4, %s1585
      $region56: #{forward.11} parent=47 // pred_fallthru
        _
      // Predicated region
      $region57: #{forward.11} parent=47 // pred_check
        %p1587 = pneg %p161
      $region58: #{forward.11} parent=47 // pred_check_branch
        %1589 = sbr.rel (%p1587) target = $region60
      $region59: #{forward.11} parent=47 // pred_region
        %p1590 = scmp.lt.s32.totalorder %s18, 1
        %s1591 = scalar_select %p1590, %s18, 1
        %s1592 = scalar_lea.vmem %s5, %s1591
      $region60: #{forward.11} parent=47 // pred_fallthru
        _
    $region48: #{forward.11} parent=5 // pred_fallthru
      _
  $region6: #{forward.11} parent=0 // loop_footer
    %s16 = sadd.s32 1, %s12
  $region7: #{forward.11} parent=0 // loop_footer_branch
    %11 = sbr.rel target = $region3
  $region8: #{forward.11} parent=0 // loop_exit
    _

</llo_original>
